<compile_context>
chip_gen: v7x
topology: tpu7x:2x2x1
jax: 0.10.0
libtpu: 0.0.40
codegen_flags: <defaults>
</compile_context>

<pallas_src>
import functools
import math

import jax
import jax.numpy as jnp
from jax import lax
from jax.experimental import pallas as pl
from jax.experimental.pallas import tpu as pltpu


# ----------------------------- config ---------------------------------------
CFG = dict(
    project_hidden=64,   # config.project_hidden_size
    adapter=32,          # config.adapter_size (== encoder hidden_size)
    heads=2,             # config.num_attention_heads
    layers=2,            # config.num_hidden_layers
    inter=64,            # config.intermediate_size
    ln_eps=1e-12,
)


# --------------------------- fused Pallas kernel -----------------------------
def _adapter_kernel(hs_ref, mask_ref,
                    down_w_ref, down_b_ref,
                    qkv_w_ref, qkv_b_ref,
                    ao_w_ref, ao_b_ref, a_ln_g_ref, a_ln_b_ref,
                    i_w_ref, i_b_ref,
                    o_w_ref, o_b_ref, o_ln_g_ref, o_ln_b_ref,
                    up_w_ref, up_b_ref,
                    out_ref,
                    *, S, A, nh, dh, L, eps):
    f32 = jnp.float32
    bf16 = jnp.bfloat16
    scale = 1.0 / math.sqrt(dh)

    def dense(x, w, b):
        # bf16 MXU operands, f32 accumulation; bias add in f32 on the VPU.
        return jnp.dot(x.astype(bf16), w, preferred_element_type=f32) + b

    def layernorm(x, g, b):
        mu = jnp.mean(x, axis=-1, keepdims=True)
        var = jnp.mean(jnp.square(x - mu), axis=-1, keepdims=True)
        return (x - mu) * lax.rsqrt(var + eps) * g + b

    def gelu(x):
        # TODO(synk): HF BERT "gelu" is exact erf; tanh approximation is used
        # here (~1e-3 relative difference) since erf has no guaranteed Mosaic
        # lowering.
        c = math.sqrt(2.0 / math.pi)
        return 0.5 * x * (1.0 + jnp.tanh(c * (x + 0.044715 * x * x * x)))

    mb = mask_ref[0]                                         # (1, S) additive bias

    # down_project (the residual source hs_ref is re-read at the very end,
    # so no (S, P) value is held live across the layers).
    x = dense(hs_ref[...], down_w_ref[...], down_b_ref[...])  # (S, A) f32

    # BertEncoder layers.  L=2 -> static unroll is fine; at real depth this
    # should become lax.fori_loop with dynamic ref indexing.
    for l in range(L):
        # Q/K/V split along a leading (non-lane) axis of the stacked weight.
        q = dense(x, qkv_w_ref[l, 0], qkv_b_ref[l, 0])       # (S, A) f32
        k = dense(x, qkv_w_ref[l, 1], qkv_b_ref[l, 1])
        v = dense(x, qkv_w_ref[l, 2], qkv_b_ref[l, 2])

        ao_w = ao_w_ref[l]                                   # (A, A) bf16

        # Per-head attention; the context is folded straight into the output
        # projection so no context slab / scratch / masked store is needed.
        # TODO(synk): at real nh, replace the Python head loop with a batched
        # einsum ('hqd,hkd->hqk') or a grid axis.
        attn = jnp.zeros((S, A), f32)
        for h in range(nh):
            c0 = h * dh
            qh = q[:, c0:c0 + dh].astype(bf16)               # (S, dh)
            kh = k[:, c0:c0 + dh].astype(bf16)
            vh = v[:, c0:c0 + dh].astype(bf16)
            # contract the dh axes directly -> no explicit K transpose.
            s = lax.dot_general(qh, kh, (((1,), (1,)), ((), ())),
                                preferred_element_type=f32) * scale
            s = s + mb                                       # (S, S) + (1, S)
            s = s - jnp.max(s, axis=-1, keepdims=True)
            e = jnp.exp(s)
            p = e * pl.reciprocal(jnp.sum(e, axis=-1, keepdims=True),
                                  approx=True)
            ctx_h = jnp.dot(p.astype(bf16), vh,
                            preferred_element_type=f32)      # (S, dh)
            attn = attn + jnp.dot(ctx_h.astype(bf16), ao_w[c0:c0 + dh, :],
                                  preferred_element_type=f32)
        attn = attn + ao_b_ref[l]

        # attention output: residual + LayerNorm (fused)
        x = layernorm(attn + x, a_ln_g_ref[l], a_ln_b_ref[l])

        # FFN: intermediate + GELU, output + residual + LayerNorm (fused)
        inter = gelu(dense(x, i_w_ref[l], i_b_ref[l]))       # (S, I) f32
        ffo = dense(inter, o_w_ref[l], o_b_ref[l])           # (S, A) f32
        x = layernorm(ffo + x, o_ln_g_ref[l], o_ln_b_ref[l])

    # up_project + outer residual (hs re-read from the resident input block).
    up = dense(x, up_w_ref[...], up_b_ref[...])              # (S, P) f32
    out_ref[...] = (hs_ref[...] + up).astype(out_ref.dtype)


# ------------------------------ wrapper --------------------------------------
def adapter_forward(params, hidden_states, attention_mask):
    B, S, P = hidden_states.shape
    A = CFG["adapter"]
    nh = CFG["heads"]
    dh = A // nh
    L = CFG["layers"]
    assert nh * dh == A

    hs_flat = hidden_states.reshape(B * S, P).astype(jnp.float32)
    # HF get_extended_attention_mask (2-D mask path): (1 - m) * -10000,
    # broadcast over heads and query positions (the spec uses -10000.0).
    mask_bias = ((1.0 - attention_mask.astype(jnp.float32)) * -10000.0
                 ).reshape(B, 1, S)

    enc = params["encoder"]
    weights = [
        params["down"]["w"], params["down"]["b"],
        enc["qkv_w"], enc["qkv_b"],
        enc["ao_w"], enc["ao_b"], enc["a_ln_g"], enc["a_ln_b"],
        enc["i_w"], enc["i_b"],
        enc["o_w"], enc["o_b"], enc["o_ln_g"], enc["o_ln_b"],
        params["up"]["w"], params["up"]["b"],
    ]

    kernel = functools.partial(_adapter_kernel, S=S, A=A, nh=nh, dh=dh,
                               L=L, eps=CFG["ln_eps"])

    def const_spec(a):
        nd = a.ndim
        # Whole array resident in VMEM; constant block index -> no re-DMA
        # across grid steps.
        return pl.BlockSpec(a.shape, lambda b, _nd=nd: (0,) * _nd)

    in_specs = (
        [pl.BlockSpec((S, P), lambda b: (b, 0)),        # rows of batch b
         pl.BlockSpec((1, 1, S), lambda b: (b, 0, 0))]  # mask bias of batch b
        + [const_spec(a) for a in weights]
    )

    out_flat = pl.pallas_call(
        kernel,
        out_shape=jax.ShapeDtypeStruct((B * S, P), jnp.float32),
        grid=(B,),
        in_specs=in_specs,
        out_specs=pl.BlockSpec((S, P), lambda b: (b, 0)),
        compiler_params=pltpu.CompilerParams(
            dimension_semantics=("parallel",),
            vmem_limit_bytes=32 * 1024 * 1024),
    )(hs_flat, mask_bias, *weights)
    return out_flat.reshape(B, S, P)


# ------------------------- parameter construction ----------------------------
def init_params(key):
    P, A, I, L = CFG["project_hidden"], CFG["adapter"], CFG["inter"], CFG["layers"]
    adapter_init_range = 0.02   # config.adapter_initializer_range
    init_range = 0.02           # encoder initializer_range
    f32, bf16 = jnp.float32, jnp.bfloat16

    keys = jax.random.split(key, 2 + 6 * L)

    def normal(k, shape, std, dtype):
        return (std * jax.random.normal(k, shape, f32)).astype(dtype)

    params = dict(
        down=dict(w=normal(keys[0], (P, A), adapter_init_range, bf16),
                  b=jnp.zeros((1, A), f32)),
        up=dict(w=normal(keys[1], (A, P), adapter_init_range, bf16),
                b=jnp.zeros((1, P), f32)),
    )

    qkv_w, ao_w, i_w, o_w = [], [], [], []
    for l in range(L):
        lk = keys[2 + 6 * l: 2 + 6 * (l + 1)]
        wq = normal(lk[0], (A, A), init_range, bf16)
        wk = normal(lk[1], (A, A), init_range, bf16)
        wv = normal(lk[2], (A, A), init_range, bf16)
        qkv_w.append(jnp.stack([wq, wk, wv], axis=0))        # (3, A, A)
        ao_w.append(normal(lk[3], (A, A), init_range, bf16))
        i_w.append(normal(lk[4], (A, I), init_range, bf16))
        o_w.append(normal(lk[5], (I, A), init_range, bf16))

    params["encoder"] = dict(
        qkv_w=jnp.stack(qkv_w),                              # (L, 3, A, A) bf16
        qkv_b=jnp.zeros((L, 3, 1, A), f32),
        ao_w=jnp.stack(ao_w), ao_b=jnp.zeros((L, 1, A), f32),
        a_ln_g=jnp.ones((L, 1, A), f32), a_ln_b=jnp.zeros((L, 1, A), f32),
        i_w=jnp.stack(i_w), i_b=jnp.zeros((L, 1, I), f32),
        o_w=jnp.stack(o_w), o_b=jnp.zeros((L, 1, A), f32),
        o_ln_g=jnp.ones((L, 1, A), f32), o_ln_b=jnp.zeros((L, 1, A), f32),
    )
    return params


# --------------------------------- main ---------------------------------------
if __name__ == "__main__":
    key = jax.random.PRNGKey(0)
    kp, kh = jax.random.split(key)

    B, S, P = 2, 8, CFG["project_hidden"]
    params = init_params(kp)

    hidden_states = jax.random.normal(kh, (B, S, P), jnp.float32)
    # attention_mask: last two tokens of batch element 1 are padding.
    attention_mask = jnp.ones((B, S), jnp.int32).at[1, 6:].set(0)

    out = jax.jit(adapter_forward)(params, hidden_states, attention_mask)
    out = jax.block_until_ready(out)

    assert out.shape == (B, S, P)
    assert bool(jnp.all(jnp.isfinite(out)))
    print("KERNEL_OK")
</pallas_src>

<mosaic_0001>
module attributes {stable_mosaic.version = 11 : i64} {
  func.func @_adapter_kernel(%arg0: i32, %arg1: memref<8x64xf32, #tpu.memory_space<vmem>>, %arg2: memref<1x1x8xf32, #tpu.memory_space<vmem>>, %arg3: memref<64x32xbf16, #tpu.memory_space<vmem>>, %arg4: memref<1x32xf32, #tpu.memory_space<vmem>>, %arg5: memref<2x3x32x32xbf16, #tpu.memory_space<vmem>>, %arg6: memref<2x3x1x32xf32, #tpu.memory_space<vmem>>, %arg7: memref<2x32x32xbf16, #tpu.memory_space<vmem>>, %arg8: memref<2x1x32xf32, #tpu.memory_space<vmem>>, %arg9: memref<2x1x32xf32, #tpu.memory_space<vmem>>, %arg10: memref<2x1x32xf32, #tpu.memory_space<vmem>>, %arg11: memref<2x32x64xbf16, #tpu.memory_space<vmem>>, %arg12: memref<2x1x64xf32, #tpu.memory_space<vmem>>, %arg13: memref<2x64x32xbf16, #tpu.memory_space<vmem>>, %arg14: memref<2x1x32xf32, #tpu.memory_space<vmem>>, %arg15: memref<2x1x32xf32, #tpu.memory_space<vmem>>, %arg16: memref<2x1x32xf32, #tpu.memory_space<vmem>>, %arg17: memref<32x64xbf16, #tpu.memory_space<vmem>>, %arg18: memref<1x64xf32, #tpu.memory_space<vmem>>, %arg19: memref<8x64xf32, #tpu.memory_space<vmem>>) attributes {dimension_semantics = [#tpu.dimension_semantics<parallel>], iteration_bounds = array<i64: 2>, scalar_prefetch = 0 : i64, scratch_operands = 0 : i64, tpu.core_type = #tpu.core_type<tc>, window_params = [{transform_indices = @transform_0, window_bounds = array<i64: 8, 64>}, {transform_indices = @transform_1, window_bounds = array<i64: 1, 1, 8>}, {pipeline_mode = #tpu.pipeline_mode<synchronous>, transform_indices = @transform_2, window_bounds = array<i64: 64, 32>}, {pipeline_mode = #tpu.pipeline_mode<synchronous>, transform_indices = @transform_3, window_bounds = array<i64: 1, 32>}, {pipeline_mode = #tpu.pipeline_mode<synchronous>, transform_indices = @transform_4, window_bounds = array<i64: 2, 3, 32, 32>}, {pipeline_mode = #tpu.pipeline_mode<synchronous>, transform_indices = @transform_5, window_bounds = array<i64: 2, 3, 1, 32>}, {pipeline_mode = #tpu.pipeline_mode<synchronous>, transform_indices = @transform_6, window_bounds = array<i64: 2, 32, 32>}, {pipeline_mode = #tpu.pipeline_mode<synchronous>, transform_indices = @transform_7, window_bounds = array<i64: 2, 1, 32>}, {pipeline_mode = #tpu.pipeline_mode<synchronous>, transform_indices = @transform_8, window_bounds = array<i64: 2, 1, 32>}, {pipeline_mode = #tpu.pipeline_mode<synchronous>, transform_indices = @transform_9, window_bounds = array<i64: 2, 1, 32>}, {pipeline_mode = #tpu.pipeline_mode<synchronous>, transform_indices = @transform_10, window_bounds = array<i64: 2, 32, 64>}, {pipeline_mode = #tpu.pipeline_mode<synchronous>, transform_indices = @transform_11, window_bounds = array<i64: 2, 1, 64>}, {pipeline_mode = #tpu.pipeline_mode<synchronous>, transform_indices = @transform_12, window_bounds = array<i64: 2, 64, 32>}, {pipeline_mode = #tpu.pipeline_mode<synchronous>, transform_indices = @transform_13, window_bounds = array<i64: 2, 1, 32>}, {pipeline_mode = #tpu.pipeline_mode<synchronous>, transform_indices = @transform_14, window_bounds = array<i64: 2, 1, 32>}, {pipeline_mode = #tpu.pipeline_mode<synchronous>, transform_indices = @transform_15, window_bounds = array<i64: 2, 1, 32>}, {pipeline_mode = #tpu.pipeline_mode<synchronous>, transform_indices = @transform_16, window_bounds = array<i64: 32, 64>}, {pipeline_mode = #tpu.pipeline_mode<synchronous>, transform_indices = @transform_17, window_bounds = array<i64: 1, 64>}, {transform_indices = @transform_18, window_bounds = array<i64: 8, 64>}]} {
    %c0 = arith.constant 0 : index
    %c0_0 = arith.constant 0 : index
    %c0_1 = arith.constant 0 : index
    %0 = vector.load %arg2[%c0, %c0_0, %c0_1] : memref<1x1x8xf32, #tpu.memory_space<vmem>>, vector<1x1x8xf32>
    %1 = vector.shape_cast %0 : vector<1x1x8xf32> to vector<1x8xf32>
    %c0_2 = arith.constant 0 : index
    %c0_3 = arith.constant 0 : index
    %2 = vector.load %arg1[%c0_2, %c0_3] : memref<8x64xf32, #tpu.memory_space<vmem>>, vector<8x64xf32>
    %c0_4 = arith.constant 0 : index
    %c0_5 = arith.constant 0 : index
    %3 = vector.load %arg3[%c0_4, %c0_5] : memref<64x32xbf16, #tpu.memory_space<vmem>>, vector<64x32xbf16>
    %c0_6 = arith.constant 0 : index
    %c0_7 = arith.constant 0 : index
    %4 = vector.load %arg4[%c0_6, %c0_7] : memref<1x32xf32, #tpu.memory_space<vmem>>, vector<1x32xf32>
    %5 = arith.truncf %2 : vector<8x64xf32> to vector<8x64xbf16>
    %cst = arith.constant dense<0.000000e+00> : vector<8x32xf32>
    %6 = tpu.matmul %5, %3, %cst {dimension_numbers = #tpu.dot_dimension_numbers<[1], [0], [0], [1], [0, 0, 1, 1], [], []>} : vector<8x64xbf16>, vector<64x32xbf16>, vector<8x32xf32> -> vector<8x32xf32>
    %7 = vector.broadcast %4 : vector<1x32xf32> to vector<8x32xf32>
    %8 = arith.addf %6, %7 : vector<8x32xf32>
    %c0_8 = arith.constant 0 : index
    %c0_9 = arith.constant 0 : index
    %c0_10 = arith.constant 0 : index
    %c0_11 = arith.constant 0 : index
    %9 = vector.load %arg5[%c0_8, %c0_9, %c0_10, %c0_11] : memref<2x3x32x32xbf16, #tpu.memory_space<vmem>>, vector<1x1x32x32xbf16>
    %10 = vector.shape_cast %9 : vector<1x1x32x32xbf16> to vector<32x32xbf16>
    %c0_12 = arith.constant 0 : index
    %c0_13 = arith.constant 0 : index
    %c0_14 = arith.constant 0 : index
    %c0_15 = arith.constant 0 : index
    %11 = vector.load %arg6[%c0_12, %c0_13, %c0_14, %c0_15] : memref<2x3x1x32xf32, #tpu.memory_space<vmem>>, vector<1x1x1x32xf32>
    %12 = vector.shape_cast %11 : vector<1x1x1x32xf32> to vector<1x32xf32>
    %13 = arith.truncf %8 : vector<8x32xf32> to vector<8x32xbf16>
    %cst_16 = arith.constant dense<0.000000e+00> : vector<8x32xf32>
    %14 = tpu.matmul %13, %10, %cst_16 {dimension_numbers = #tpu.dot_dimension_numbers<[1], [0], [0], [1], [0, 0, 1, 1], [], []>} : vector<8x32xbf16>, vector<32x32xbf16>, vector<8x32xf32> -> vector<8x32xf32>
    %15 = vector.broadcast %12 : vector<1x32xf32> to vector<8x32xf32>
    %16 = arith.addf %14, %15 : vector<8x32xf32>
    %c0_17 = arith.constant 0 : index
    %c1 = arith.constant 1 : index
    %c0_18 = arith.constant 0 : index
    %c0_19 = arith.constant 0 : index
    %17 = vector.load %arg5[%c0_17, %c1, %c0_18, %c0_19] : memref<2x3x32x32xbf16, #tpu.memory_space<vmem>>, vector<1x1x32x32xbf16>
    %18 = vector.shape_cast %17 : vector<1x1x32x32xbf16> to vector<32x32xbf16>
    %c0_20 = arith.constant 0 : index
    %c1_21 = arith.constant 1 : index
    %c0_22 = arith.constant 0 : index
    %c0_23 = arith.constant 0 : index
    %19 = vector.load %arg6[%c0_20, %c1_21, %c0_22, %c0_23] : memref<2x3x1x32xf32, #tpu.memory_space<vmem>>, vector<1x1x1x32xf32>
    %20 = vector.shape_cast %19 : vector<1x1x1x32xf32> to vector<1x32xf32>
    %21 = arith.truncf %8 : vector<8x32xf32> to vector<8x32xbf16>
    %cst_24 = arith.constant dense<0.000000e+00> : vector<8x32xf32>
    %22 = tpu.matmul %21, %18, %cst_24 {dimension_numbers = #tpu.dot_dimension_numbers<[1], [0], [0], [1], [0, 0, 1, 1], [], []>} : vector<8x32xbf16>, vector<32x32xbf16>, vector<8x32xf32> -> vector<8x32xf32>
    %23 = vector.broadcast %20 : vector<1x32xf32> to vector<8x32xf32>
    %24 = arith.addf %22, %23 : vector<8x32xf32>
    %c0_25 = arith.constant 0 : index
    %c2 = arith.constant 2 : index
    %c0_26 = arith.constant 0 : index
    %c0_27 = arith.constant 0 : index
    %25 = vector.load %arg5[%c0_25, %c2, %c0_26, %c0_27] : memref<2x3x32x32xbf16, #tpu.memory_space<vmem>>, vector<1x1x32x32xbf16>
    %26 = vector.shape_cast %25 : vector<1x1x32x32xbf16> to vector<32x32xbf16>
    %c0_28 = arith.constant 0 : index
    %c2_29 = arith.constant 2 : index
    %c0_30 = arith.constant 0 : index
    %c0_31 = arith.constant 0 : index
    %27 = vector.load %arg6[%c0_28, %c2_29, %c0_30, %c0_31] : memref<2x3x1x32xf32, #tpu.memory_space<vmem>>, vector<1x1x1x32xf32>
    %28 = vector.shape_cast %27 : vector<1x1x1x32xf32> to vector<1x32xf32>
    %29 = arith.truncf %8 : vector<8x32xf32> to vector<8x32xbf16>
    %cst_32 = arith.constant dense<0.000000e+00> : vector<8x32xf32>
    %30 = tpu.matmul %29, %26, %cst_32 {dimension_numbers = #tpu.dot_dimension_numbers<[1], [0], [0], [1], [0, 0, 1, 1], [], []>} : vector<8x32xbf16>, vector<32x32xbf16>, vector<8x32xf32> -> vector<8x32xf32>
    %31 = vector.broadcast %28 : vector<1x32xf32> to vector<8x32xf32>
    %32 = arith.addf %30, %31 : vector<8x32xf32>
    %c0_33 = arith.constant 0 : index
    %c0_34 = arith.constant 0 : index
    %c0_35 = arith.constant 0 : index
    %33 = vector.load %arg7[%c0_33, %c0_34, %c0_35] : memref<2x32x32xbf16, #tpu.memory_space<vmem>>, vector<1x32x32xbf16>
    %34 = vector.shape_cast %33 : vector<1x32x32xbf16> to vector<32x32xbf16>
    %cst_36 = arith.constant 0.000000e+00 : f32
    %35 = vector.broadcast %cst_36 : f32 to vector<8x32xf32>
    %36 = vector.extract_strided_slice %16 {offsets = [0, 0], sizes = [8, 16], strides = [1, 1]} : vector<8x32xf32> to vector<8x16xf32>
    %37 = arith.truncf %36 : vector<8x16xf32> to vector<8x16xbf16>
    %38 = vector.extract_strided_slice %24 {offsets = [0, 0], sizes = [8, 16], strides = [1, 1]} : vector<8x32xf32> to vector<8x16xf32>
    %39 = arith.truncf %38 : vector<8x16xf32> to vector<8x16xbf16>
    %40 = vector.extract_strided_slice %32 {offsets = [0, 0], sizes = [8, 16], strides = [1, 1]} : vector<8x32xf32> to vector<8x16xf32>
    %41 = arith.truncf %40 : vector<8x16xf32> to vector<8x16xbf16>
    %cst_37 = arith.constant dense<0.000000e+00> : vector<8x8xf32>
    %42 = tpu.matmul %37, %39, %cst_37 {dimension_numbers = #tpu.dot_dimension_numbers<[1], [1], [0], [0], [0, 0, 1, 0], [], []>} : vector<8x16xbf16>, vector<8x16xbf16>, vector<8x8xf32> -> vector<8x8xf32>
    %cst_38 = arith.constant 2.500000e-01 : f32
    %43 = vector.broadcast %cst_38 : f32 to vector<8x8xf32>
    %44 = arith.mulf %42, %43 : vector<8x8xf32>
    %45 = vector.broadcast %1 : vector<1x8xf32> to vector<8x8xf32>
    %46 = arith.addf %44, %45 : vector<8x8xf32>
    %cst_39 = arith.constant dense<0xFF800000> : vector<8xf32>
    %47 = vector.multi_reduction <maximumf>, %46, %cst_39 [1] : vector<8x8xf32> to vector<8xf32>
    %48 = vector.shape_cast %47 : vector<8xf32> to vector<8x1xf32>
    %49 = vector.broadcast %48 : vector<8x1xf32> to vector<8x8xf32>
    %50 = arith.subf %46, %49 : vector<8x8xf32>
    %51 = math.exp %50 : vector<8x8xf32>
    %cst_40 = arith.constant dense<0.000000e+00> : vector<8xf32>
    %52 = vector.multi_reduction <add>, %51, %cst_40 [1] : vector<8x8xf32> to vector<8xf32>
    %53 = vector.shape_cast %52 : vector<8xf32> to vector<8x1xf32>
    %54 = tpu.reciprocal %53 {approx = true} : vector<8x1xf32> -> vector<8x1xf32>
    %55 = vector.broadcast %54 : vector<8x1xf32> to vector<8x8xf32>
    %56 = arith.mulf %51, %55 : vector<8x8xf32>
    %57 = arith.truncf %56 : vector<8x8xf32> to vector<8x8xbf16>
    %cst_41 = arith.constant dense<0.000000e+00> : vector<8x16xf32>
    %58 = tpu.matmul %57, %41, %cst_41 {dimension_numbers = #tpu.dot_dimension_numbers<[1], [0], [0], [1], [0, 0, 1, 1], [], []>} : vector<8x8xbf16>, vector<8x16xbf16>, vector<8x16xf32> -> vector<8x16xf32>
    %59 = arith.truncf %58 : vector<8x16xf32> to vector<8x16xbf16>
    %60 = vector.extract_strided_slice %34 {offsets = [0, 0], sizes = [16, 32], strides = [1, 1]} : vector<32x32xbf16> to vector<16x32xbf16>
    %cst_42 = arith.constant dense<0.000000e+00> : vector<8x32xf32>
    %61 = tpu.matmul %59, %60, %cst_42 {dimension_numbers = #tpu.dot_dimension_numbers<[1], [0], [0], [1], [0, 0, 1, 1], [], []>} : vector<8x16xbf16>, vector<16x32xbf16>, vector<8x32xf32> -> vector<8x32xf32>
    %62 = arith.addf %35, %61 : vector<8x32xf32>
    %63 = vector.extract_strided_slice %16 {offsets = [0, 16], sizes = [8, 16], strides = [1, 1]} : vector<8x32xf32> to vector<8x16xf32>
    %64 = arith.truncf %63 : vector<8x16xf32> to vector<8x16xbf16>
    %65 = vector.extract_strided_slice %24 {offsets = [0, 16], sizes = [8, 16], strides = [1, 1]} : vector<8x32xf32> to vector<8x16xf32>
    %66 = arith.truncf %65 : vector<8x16xf32> to vector<8x16xbf16>
    %67 = vector.extract_strided_slice %32 {offsets = [0, 16], sizes = [8, 16], strides = [1, 1]} : vector<8x32xf32> to vector<8x16xf32>
    %68 = arith.truncf %67 : vector<8x16xf32> to vector<8x16xbf16>
    %cst_43 = arith.constant dense<0.000000e+00> : vector<8x8xf32>
    %69 = tpu.matmul %64, %66, %cst_43 {dimension_numbers = #tpu.dot_dimension_numbers<[1], [1], [0], [0], [0, 0, 1, 0], [], []>} : vector<8x16xbf16>, vector<8x16xbf16>, vector<8x8xf32> -> vector<8x8xf32>
    %cst_44 = arith.constant 2.500000e-01 : f32
    %70 = vector.broadcast %cst_44 : f32 to vector<8x8xf32>
    %71 = arith.mulf %69, %70 : vector<8x8xf32>
    %72 = vector.broadcast %1 : vector<1x8xf32> to vector<8x8xf32>
    %73 = arith.addf %71, %72 : vector<8x8xf32>
    %cst_45 = arith.constant dense<0xFF800000> : vector<8xf32>
    %74 = vector.multi_reduction <maximumf>, %73, %cst_45 [1] : vector<8x8xf32> to vector<8xf32>
    %75 = vector.shape_cast %74 : vector<8xf32> to vector<8x1xf32>
    %76 = vector.broadcast %75 : vector<8x1xf32> to vector<8x8xf32>
    %77 = arith.subf %73, %76 : vector<8x8xf32>
    %78 = math.exp %77 : vector<8x8xf32>
    %cst_46 = arith.constant dense<0.000000e+00> : vector<8xf32>
    %79 = vector.multi_reduction <add>, %78, %cst_46 [1] : vector<8x8xf32> to vector<8xf32>
    %80 = vector.shape_cast %79 : vector<8xf32> to vector<8x1xf32>
    %81 = tpu.reciprocal %80 {approx = true} : vector<8x1xf32> -> vector<8x1xf32>
    %82 = vector.broadcast %81 : vector<8x1xf32> to vector<8x8xf32>
    %83 = arith.mulf %78, %82 : vector<8x8xf32>
    %84 = arith.truncf %83 : vector<8x8xf32> to vector<8x8xbf16>
    %cst_47 = arith.constant dense<0.000000e+00> : vector<8x16xf32>
    %85 = tpu.matmul %84, %68, %cst_47 {dimension_numbers = #tpu.dot_dimension_numbers<[1], [0], [0], [1], [0, 0, 1, 1], [], []>} : vector<8x8xbf16>, vector<8x16xbf16>, vector<8x16xf32> -> vector<8x16xf32>
    %86 = arith.truncf %85 : vector<8x16xf32> to vector<8x16xbf16>
    %87 = vector.extract_strided_slice %34 {offsets = [16, 0], sizes = [16, 32], strides = [1, 1]} : vector<32x32xbf16> to vector<16x32xbf16>
    %cst_48 = arith.constant dense<0.000000e+00> : vector<8x32xf32>
    %88 = tpu.matmul %86, %87, %cst_48 {dimension_numbers = #tpu.dot_dimension_numbers<[1], [0], [0], [1], [0, 0, 1, 1], [], []>} : vector<8x16xbf16>, vector<16x32xbf16>, vector<8x32xf32> -> vector<8x32xf32>
    %89 = arith.addf %62, %88 : vector<8x32xf32>
    %c0_49 = arith.constant 0 : index
    %c0_50 = arith.constant 0 : index
    %c0_51 = arith.constant 0 : index
    %90 = vector.load %arg8[%c0_49, %c0_50, %c0_51] : memref<2x1x32xf32, #tpu.memory_space<vmem>>, vector<1x1x32xf32>
    %91 = vector.shape_cast %90 : vector<1x1x32xf32> to vector<1x32xf32>
    %92 = vector.broadcast %91 : vector<1x32xf32> to vector<8x32xf32>
    %93 = arith.addf %89, %92 : vector<8x32xf32>
    %94 = arith.addf %93, %8 : vector<8x32xf32>
    %c0_52 = arith.constant 0 : index
    %c0_53 = arith.constant 0 : index
    %c0_54 = arith.constant 0 : index
    %95 = vector.load %arg9[%c0_52, %c0_53, %c0_54] : memref<2x1x32xf32, #tpu.memory_space<vmem>>, vector<1x1x32xf32>
    %96 = vector.shape_cast %95 : vector<1x1x32xf32> to vector<1x32xf32>
    %c0_55 = arith.constant 0 : index
    %c0_56 = arith.constant 0 : index
    %c0_57 = arith.constant 0 : index
    %97 = vector.load %arg10[%c0_55, %c0_56, %c0_57] : memref<2x1x32xf32, #tpu.memory_space<vmem>>, vector<1x1x32xf32>
    %98 = vector.shape_cast %97 : vector<1x1x32xf32> to vector<1x32xf32>
    %cst_58 = arith.constant dense<0.000000e+00> : vector<8xf32>
    %99 = vector.multi_reduction <add>, %94, %cst_58 [1] : vector<8x32xf32> to vector<8xf32>
    %100 = vector.shape_cast %99 : vector<8xf32> to vector<8x1xf32>
    %cst_59 = arith.constant 3.200000e+01 : f32
    %101 = vector.broadcast %cst_59 : f32 to vector<8x1xf32>
    %102 = arith.divf %100, %101 : vector<8x1xf32>
    %103 = vector.broadcast %102 : vector<8x1xf32> to vector<8x32xf32>
    %104 = arith.subf %94, %103 : vector<8x32xf32>
    %105 = arith.mulf %104, %104 : vector<8x32xf32>
    %cst_60 = arith.constant dense<0.000000e+00> : vector<8xf32>
    %106 = vector.multi_reduction <add>, %105, %cst_60 [1] : vector<8x32xf32> to vector<8xf32>
    %107 = vector.shape_cast %106 : vector<8xf32> to vector<8x1xf32>
    %cst_61 = arith.constant 3.200000e+01 : f32
    %108 = vector.broadcast %cst_61 : f32 to vector<8x1xf32>
    %109 = arith.divf %107, %108 : vector<8x1xf32>
    %110 = vector.broadcast %102 : vector<8x1xf32> to vector<8x32xf32>
    %111 = arith.subf %94, %110 : vector<8x32xf32>
    %cst_62 = arith.constant 9.99999996E-13 : f32
    %112 = vector.broadcast %cst_62 : f32 to vector<8x1xf32>
    %113 = arith.addf %109, %112 : vector<8x1xf32>
    %114 = math.rsqrt %113 : vector<8x1xf32>
    %115 = vector.broadcast %114 : vector<8x1xf32> to vector<8x32xf32>
    %116 = arith.mulf %111, %115 : vector<8x32xf32>
    %117 = vector.broadcast %96 : vector<1x32xf32> to vector<8x32xf32>
    %118 = arith.mulf %116, %117 : vector<8x32xf32>
    %119 = vector.broadcast %98 : vector<1x32xf32> to vector<8x32xf32>
    %120 = arith.addf %118, %119 : vector<8x32xf32>
    %c0_63 = arith.constant 0 : index
    %c0_64 = arith.constant 0 : index
    %c0_65 = arith.constant 0 : index
    %121 = vector.load %arg11[%c0_63, %c0_64, %c0_65] : memref<2x32x64xbf16, #tpu.memory_space<vmem>>, vector<1x32x64xbf16>
    %122 = vector.shape_cast %121 : vector<1x32x64xbf16> to vector<32x64xbf16>
    %c0_66 = arith.constant 0 : index
    %c0_67 = arith.constant 0 : index
    %c0_68 = arith.constant 0 : index
    %123 = vector.load %arg12[%c0_66, %c0_67, %c0_68] : memref<2x1x64xf32, #tpu.memory_space<vmem>>, vector<1x1x64xf32>
    %124 = vector.shape_cast %123 : vector<1x1x64xf32> to vector<1x64xf32>
    %125 = arith.truncf %120 : vector<8x32xf32> to vector<8x32xbf16>
    %cst_69 = arith.constant dense<0.000000e+00> : vector<8x64xf32>
    %126 = tpu.matmul %125, %122, %cst_69 {dimension_numbers = #tpu.dot_dimension_numbers<[1], [0], [0], [1], [0, 0, 1, 1], [], []>} : vector<8x32xbf16>, vector<32x64xbf16>, vector<8x64xf32> -> vector<8x64xf32>
    %127 = vector.broadcast %124 : vector<1x64xf32> to vector<8x64xf32>
    %128 = arith.addf %126, %127 : vector<8x64xf32>
    %cst_70 = arith.constant 5.000000e-01 : f32
    %129 = vector.broadcast %cst_70 : f32 to vector<8x64xf32>
    %130 = arith.mulf %129, %128 : vector<8x64xf32>
    %cst_71 = arith.constant 4.471500e-02 : f32
    %131 = vector.broadcast %cst_71 : f32 to vector<8x64xf32>
    %132 = arith.mulf %131, %128 : vector<8x64xf32>
    %133 = arith.mulf %132, %128 : vector<8x64xf32>
    %134 = arith.mulf %133, %128 : vector<8x64xf32>
    %135 = arith.addf %128, %134 : vector<8x64xf32>
    %cst_72 = arith.constant 0.797884583 : f32
    %136 = vector.broadcast %cst_72 : f32 to vector<8x64xf32>
    %137 = arith.mulf %136, %135 : vector<8x64xf32>
    %138 = math.tanh %137 : vector<8x64xf32>
    %cst_73 = arith.constant 1.000000e+00 : f32
    %139 = vector.broadcast %cst_73 : f32 to vector<8x64xf32>
    %140 = arith.addf %139, %138 : vector<8x64xf32>
    %141 = arith.mulf %130, %140 : vector<8x64xf32>
    %c0_74 = arith.constant 0 : index
    %c0_75 = arith.constant 0 : index
    %c0_76 = arith.constant 0 : index
    %142 = vector.load %arg13[%c0_74, %c0_75, %c0_76] : memref<2x64x32xbf16, #tpu.memory_space<vmem>>, vector<1x64x32xbf16>
    %143 = vector.shape_cast %142 : vector<1x64x32xbf16> to vector<64x32xbf16>
    %c0_77 = arith.constant 0 : index
    %c0_78 = arith.constant 0 : index
    %c0_79 = arith.constant 0 : index
    %144 = vector.load %arg14[%c0_77, %c0_78, %c0_79] : memref<2x1x32xf32, #tpu.memory_space<vmem>>, vector<1x1x32xf32>
    %145 = vector.shape_cast %144 : vector<1x1x32xf32> to vector<1x32xf32>
    %146 = arith.truncf %141 : vector<8x64xf32> to vector<8x64xbf16>
    %cst_80 = arith.constant dense<0.000000e+00> : vector<8x32xf32>
    %147 = tpu.matmul %146, %143, %cst_80 {dimension_numbers = #tpu.dot_dimension_numbers<[1], [0], [0], [1], [0, 0, 1, 1], [], []>} : vector<8x64xbf16>, vector<64x32xbf16>, vector<8x32xf32> -> vector<8x32xf32>
    %148 = vector.broadcast %145 : vector<1x32xf32> to vector<8x32xf32>
    %149 = arith.addf %147, %148 : vector<8x32xf32>
    %150 = arith.addf %149, %120 : vector<8x32xf32>
    %c0_81 = arith.constant 0 : index
    %c0_82 = arith.constant 0 : index
    %c0_83 = arith.constant 0 : index
    %151 = vector.load %arg15[%c0_81, %c0_82, %c0_83] : memref<2x1x32xf32, #tpu.memory_space<vmem>>, vector<1x1x32xf32>
    %152 = vector.shape_cast %151 : vector<1x1x32xf32> to vector<1x32xf32>
    %c0_84 = arith.constant 0 : index
    %c0_85 = arith.constant 0 : index
    %c0_86 = arith.constant 0 : index
    %153 = vector.load %arg16[%c0_84, %c0_85, %c0_86] : memref<2x1x32xf32, #tpu.memory_space<vmem>>, vector<1x1x32xf32>
    %154 = vector.shape_cast %153 : vector<1x1x32xf32> to vector<1x32xf32>
    %cst_87 = arith.constant dense<0.000000e+00> : vector<8xf32>
    %155 = vector.multi_reduction <add>, %150, %cst_87 [1] : vector<8x32xf32> to vector<8xf32>
    %156 = vector.shape_cast %155 : vector<8xf32> to vector<8x1xf32>
    %cst_88 = arith.constant 3.200000e+01 : f32
    %157 = vector.broadcast %cst_88 : f32 to vector<8x1xf32>
    %158 = arith.divf %156, %157 : vector<8x1xf32>
    %159 = vector.broadcast %158 : vector<8x1xf32> to vector<8x32xf32>
    %160 = arith.subf %150, %159 : vector<8x32xf32>
    %161 = arith.mulf %160, %160 : vector<8x32xf32>
    %cst_89 = arith.constant dense<0.000000e+00> : vector<8xf32>
    %162 = vector.multi_reduction <add>, %161, %cst_89 [1] : vector<8x32xf32> to vector<8xf32>
    %163 = vector.shape_cast %162 : vector<8xf32> to vector<8x1xf32>
    %cst_90 = arith.constant 3.200000e+01 : f32
    %164 = vector.broadcast %cst_90 : f32 to vector<8x1xf32>
    %165 = arith.divf %163, %164 : vector<8x1xf32>
    %166 = vector.broadcast %158 : vector<8x1xf32> to vector<8x32xf32>
    %167 = arith.subf %150, %166 : vector<8x32xf32>
    %cst_91 = arith.constant 9.99999996E-13 : f32
    %168 = vector.broadcast %cst_91 : f32 to vector<8x1xf32>
    %169 = arith.addf %165, %168 : vector<8x1xf32>
    %170 = math.rsqrt %169 : vector<8x1xf32>
    %171 = vector.broadcast %170 : vector<8x1xf32> to vector<8x32xf32>
    %172 = arith.mulf %167, %171 : vector<8x32xf32>
    %173 = vector.broadcast %152 : vector<1x32xf32> to vector<8x32xf32>
    %174 = arith.mulf %172, %173 : vector<8x32xf32>
    %175 = vector.broadcast %154 : vector<1x32xf32> to vector<8x32xf32>
    %176 = arith.addf %174, %175 : vector<8x32xf32>
    %c1_92 = arith.constant 1 : index
    %c0_93 = arith.constant 0 : index
    %c0_94 = arith.constant 0 : index
    %c0_95 = arith.constant 0 : index
    %177 = vector.load %arg5[%c1_92, %c0_93, %c0_94, %c0_95] : memref<2x3x32x32xbf16, #tpu.memory_space<vmem>>, vector<1x1x32x32xbf16>
    %178 = vector.shape_cast %177 : vector<1x1x32x32xbf16> to vector<32x32xbf16>
    %c1_96 = arith.constant 1 : index
    %c0_97 = arith.constant 0 : index
    %c0_98 = arith.constant 0 : index
    %c0_99 = arith.constant 0 : index
    %179 = vector.load %arg6[%c1_96, %c0_97, %c0_98, %c0_99] : memref<2x3x1x32xf32, #tpu.memory_space<vmem>>, vector<1x1x1x32xf32>
    %180 = vector.shape_cast %179 : vector<1x1x1x32xf32> to vector<1x32xf32>
    %181 = arith.truncf %176 : vector<8x32xf32> to vector<8x32xbf16>
    %cst_100 = arith.constant dense<0.000000e+00> : vector<8x32xf32>
    %182 = tpu.matmul %181, %178, %cst_100 {dimension_numbers = #tpu.dot_dimension_numbers<[1], [0], [0], [1], [0, 0, 1, 1], [], []>} : vector<8x32xbf16>, vector<32x32xbf16>, vector<8x32xf32> -> vector<8x32xf32>
    %183 = vector.broadcast %180 : vector<1x32xf32> to vector<8x32xf32>
    %184 = arith.addf %182, %183 : vector<8x32xf32>
    %c1_101 = arith.constant 1 : index
    %c1_102 = arith.constant 1 : index
    %c0_103 = arith.constant 0 : index
    %c0_104 = arith.constant 0 : index
    %185 = vector.load %arg5[%c1_101, %c1_102, %c0_103, %c0_104] : memref<2x3x32x32xbf16, #tpu.memory_space<vmem>>, vector<1x1x32x32xbf16>
    %186 = vector.shape_cast %185 : vector<1x1x32x32xbf16> to vector<32x32xbf16>
    %c1_105 = arith.constant 1 : index
    %c1_106 = arith.constant 1 : index
    %c0_107 = arith.constant 0 : index
    %c0_108 = arith.constant 0 : index
    %187 = vector.load %arg6[%c1_105, %c1_106, %c0_107, %c0_108] : memref<2x3x1x32xf32, #tpu.memory_space<vmem>>, vector<1x1x1x32xf32>
    %188 = vector.shape_cast %187 : vector<1x1x1x32xf32> to vector<1x32xf32>
    %189 = arith.truncf %176 : vector<8x32xf32> to vector<8x32xbf16>
    %cst_109 = arith.constant dense<0.000000e+00> : vector<8x32xf32>
    %190 = tpu.matmul %189, %186, %cst_109 {dimension_numbers = #tpu.dot_dimension_numbers<[1], [0], [0], [1], [0, 0, 1, 1], [], []>} : vector<8x32xbf16>, vector<32x32xbf16>, vector<8x32xf32> -> vector<8x32xf32>
    %191 = vector.broadcast %188 : vector<1x32xf32> to vector<8x32xf32>
    %192 = arith.addf %190, %191 : vector<8x32xf32>
    %c1_110 = arith.constant 1 : index
    %c2_111 = arith.constant 2 : index
    %c0_112 = arith.constant 0 : index
    %c0_113 = arith.constant 0 : index
    %193 = vector.load %arg5[%c1_110, %c2_111, %c0_112, %c0_113] : memref<2x3x32x32xbf16, #tpu.memory_space<vmem>>, vector<1x1x32x32xbf16>
    %194 = vector.shape_cast %193 : vector<1x1x32x32xbf16> to vector<32x32xbf16>
    %c1_114 = arith.constant 1 : index
    %c2_115 = arith.constant 2 : index
    %c0_116 = arith.constant 0 : index
    %c0_117 = arith.constant 0 : index
    %195 = vector.load %arg6[%c1_114, %c2_115, %c0_116, %c0_117] : memref<2x3x1x32xf32, #tpu.memory_space<vmem>>, vector<1x1x1x32xf32>
    %196 = vector.shape_cast %195 : vector<1x1x1x32xf32> to vector<1x32xf32>
    %197 = arith.truncf %176 : vector<8x32xf32> to vector<8x32xbf16>
    %cst_118 = arith.constant dense<0.000000e+00> : vector<8x32xf32>
    %198 = tpu.matmul %197, %194, %cst_118 {dimension_numbers = #tpu.dot_dimension_numbers<[1], [0], [0], [1], [0, 0, 1, 1], [], []>} : vector<8x32xbf16>, vector<32x32xbf16>, vector<8x32xf32> -> vector<8x32xf32>
    %199 = vector.broadcast %196 : vector<1x32xf32> to vector<8x32xf32>
    %200 = arith.addf %198, %199 : vector<8x32xf32>
    %c1_119 = arith.constant 1 : index
    %c0_120 = arith.constant 0 : index
    %c0_121 = arith.constant 0 : index
    %201 = vector.load %arg7[%c1_119, %c0_120, %c0_121] : memref<2x32x32xbf16, #tpu.memory_space<vmem>>, vector<1x32x32xbf16>
    %202 = vector.shape_cast %201 : vector<1x32x32xbf16> to vector<32x32xbf16>
    %cst_122 = arith.constant 0.000000e+00 : f32
    %203 = vector.broadcast %cst_122 : f32 to vector<8x32xf32>
    %204 = vector.extract_strided_slice %184 {offsets = [0, 0], sizes = [8, 16], strides = [1, 1]} : vector<8x32xf32> to vector<8x16xf32>
    %205 = arith.truncf %204 : vector<8x16xf32> to vector<8x16xbf16>
    %206 = vector.extract_strided_slice %192 {offsets = [0, 0], sizes = [8, 16], strides = [1, 1]} : vector<8x32xf32> to vector<8x16xf32>
    %207 = arith.truncf %206 : vector<8x16xf32> to vector<8x16xbf16>
    %208 = vector.extract_strided_slice %200 {offsets = [0, 0], sizes = [8, 16], strides = [1, 1]} : vector<8x32xf32> to vector<8x16xf32>
    %209 = arith.truncf %208 : vector<8x16xf32> to vector<8x16xbf16>
    %cst_123 = arith.constant dense<0.000000e+00> : vector<8x8xf32>
    %210 = tpu.matmul %205, %207, %cst_123 {dimension_numbers = #tpu.dot_dimension_numbers<[1], [1], [0], [0], [0, 0, 1, 0], [], []>} : vector<8x16xbf16>, vector<8x16xbf16>, vector<8x8xf32> -> vector<8x8xf32>
    %cst_124 = arith.constant 2.500000e-01 : f32
    %211 = vector.broadcast %cst_124 : f32 to vector<8x8xf32>
    %212 = arith.mulf %210, %211 : vector<8x8xf32>
    %213 = vector.broadcast %1 : vector<1x8xf32> to vector<8x8xf32>
    %214 = arith.addf %212, %213 : vector<8x8xf32>
    %cst_125 = arith.constant dense<0xFF800000> : vector<8xf32>
    %215 = vector.multi_reduction <maximumf>, %214, %cst_125 [1] : vector<8x8xf32> to vector<8xf32>
    %216 = vector.shape_cast %215 : vector<8xf32> to vector<8x1xf32>
    %217 = vector.broadcast %216 : vector<8x1xf32> to vector<8x8xf32>
    %218 = arith.subf %214, %217 : vector<8x8xf32>
    %219 = math.exp %218 : vector<8x8xf32>
    %cst_126 = arith.constant dense<0.000000e+00> : vector<8xf32>
    %220 = vector.multi_reduction <add>, %219, %cst_126 [1] : vector<8x8xf32> to vector<8xf32>
    %221 = vector.shape_cast %220 : vector<8xf32> to vector<8x1xf32>
    %222 = tpu.reciprocal %221 {approx = true} : vector<8x1xf32> -> vector<8x1xf32>
    %223 = vector.broadcast %222 : vector<8x1xf32> to vector<8x8xf32>
    %224 = arith.mulf %219, %223 : vector<8x8xf32>
    %225 = arith.truncf %224 : vector<8x8xf32> to vector<8x8xbf16>
    %cst_127 = arith.constant dense<0.000000e+00> : vector<8x16xf32>
    %226 = tpu.matmul %225, %209, %cst_127 {dimension_numbers = #tpu.dot_dimension_numbers<[1], [0], [0], [1], [0, 0, 1, 1], [], []>} : vector<8x8xbf16>, vector<8x16xbf16>, vector<8x16xf32> -> vector<8x16xf32>
    %227 = arith.truncf %226 : vector<8x16xf32> to vector<8x16xbf16>
    %228 = vector.extract_strided_slice %202 {offsets = [0, 0], sizes = [16, 32], strides = [1, 1]} : vector<32x32xbf16> to vector<16x32xbf16>
    %cst_128 = arith.constant dense<0.000000e+00> : vector<8x32xf32>
    %229 = tpu.matmul %227, %228, %cst_128 {dimension_numbers = #tpu.dot_dimension_numbers<[1], [0], [0], [1], [0, 0, 1, 1], [], []>} : vector<8x16xbf16>, vector<16x32xbf16>, vector<8x32xf32> -> vector<8x32xf32>
    %230 = arith.addf %203, %229 : vector<8x32xf32>
    %231 = vector.extract_strided_slice %184 {offsets = [0, 16], sizes = [8, 16], strides = [1, 1]} : vector<8x32xf32> to vector<8x16xf32>
    %232 = arith.truncf %231 : vector<8x16xf32> to vector<8x16xbf16>
    %233 = vector.extract_strided_slice %192 {offsets = [0, 16], sizes = [8, 16], strides = [1, 1]} : vector<8x32xf32> to vector<8x16xf32>
    %234 = arith.truncf %233 : vector<8x16xf32> to vector<8x16xbf16>
    %235 = vector.extract_strided_slice %200 {offsets = [0, 16], sizes = [8, 16], strides = [1, 1]} : vector<8x32xf32> to vector<8x16xf32>
    %236 = arith.truncf %235 : vector<8x16xf32> to vector<8x16xbf16>
    %cst_129 = arith.constant dense<0.000000e+00> : vector<8x8xf32>
    %237 = tpu.matmul %232, %234, %cst_129 {dimension_numbers = #tpu.dot_dimension_numbers<[1], [1], [0], [0], [0, 0, 1, 0], [], []>} : vector<8x16xbf16>, vector<8x16xbf16>, vector<8x8xf32> -> vector<8x8xf32>
    %cst_130 = arith.constant 2.500000e-01 : f32
    %238 = vector.broadcast %cst_130 : f32 to vector<8x8xf32>
    %239 = arith.mulf %237, %238 : vector<8x8xf32>
    %240 = vector.broadcast %1 : vector<1x8xf32> to vector<8x8xf32>
    %241 = arith.addf %239, %240 : vector<8x8xf32>
    %cst_131 = arith.constant dense<0xFF800000> : vector<8xf32>
    %242 = vector.multi_reduction <maximumf>, %241, %cst_131 [1] : vector<8x8xf32> to vector<8xf32>
    %243 = vector.shape_cast %242 : vector<8xf32> to vector<8x1xf32>
    %244 = vector.broadcast %243 : vector<8x1xf32> to vector<8x8xf32>
    %245 = arith.subf %241, %244 : vector<8x8xf32>
    %246 = math.exp %245 : vector<8x8xf32>
    %cst_132 = arith.constant dense<0.000000e+00> : vector<8xf32>
    %247 = vector.multi_reduction <add>, %246, %cst_132 [1] : vector<8x8xf32> to vector<8xf32>
    %248 = vector.shape_cast %247 : vector<8xf32> to vector<8x1xf32>
    %249 = tpu.reciprocal %248 {approx = true} : vector<8x1xf32> -> vector<8x1xf32>
    %250 = vector.broadcast %249 : vector<8x1xf32> to vector<8x8xf32>
    %251 = arith.mulf %246, %250 : vector<8x8xf32>
    %252 = arith.truncf %251 : vector<8x8xf32> to vector<8x8xbf16>
    %cst_133 = arith.constant dense<0.000000e+00> : vector<8x16xf32>
    %253 = tpu.matmul %252, %236, %cst_133 {dimension_numbers = #tpu.dot_dimension_numbers<[1], [0], [0], [1], [0, 0, 1, 1], [], []>} : vector<8x8xbf16>, vector<8x16xbf16>, vector<8x16xf32> -> vector<8x16xf32>
    %254 = arith.truncf %253 : vector<8x16xf32> to vector<8x16xbf16>
    %255 = vector.extract_strided_slice %202 {offsets = [16, 0], sizes = [16, 32], strides = [1, 1]} : vector<32x32xbf16> to vector<16x32xbf16>
    %cst_134 = arith.constant dense<0.000000e+00> : vector<8x32xf32>
    %256 = tpu.matmul %254, %255, %cst_134 {dimension_numbers = #tpu.dot_dimension_numbers<[1], [0], [0], [1], [0, 0, 1, 1], [], []>} : vector<8x16xbf16>, vector<16x32xbf16>, vector<8x32xf32> -> vector<8x32xf32>
    %257 = arith.addf %230, %256 : vector<8x32xf32>
    %c1_135 = arith.constant 1 : index
    %c0_136 = arith.constant 0 : index
    %c0_137 = arith.constant 0 : index
    %258 = vector.load %arg8[%c1_135, %c0_136, %c0_137] : memref<2x1x32xf32, #tpu.memory_space<vmem>>, vector<1x1x32xf32>
    %259 = vector.shape_cast %258 : vector<1x1x32xf32> to vector<1x32xf32>
    %260 = vector.broadcast %259 : vector<1x32xf32> to vector<8x32xf32>
    %261 = arith.addf %257, %260 : vector<8x32xf32>
    %262 = arith.addf %261, %176 : vector<8x32xf32>
    %c1_138 = arith.constant 1 : index
    %c0_139 = arith.constant 0 : index
    %c0_140 = arith.constant 0 : index
    %263 = vector.load %arg9[%c1_138, %c0_139, %c0_140] : memref<2x1x32xf32, #tpu.memory_space<vmem>>, vector<1x1x32xf32>
    %264 = vector.shape_cast %263 : vector<1x1x32xf32> to vector<1x32xf32>
    %c1_141 = arith.constant 1 : index
    %c0_142 = arith.constant 0 : index
    %c0_143 = arith.constant 0 : index
    %265 = vector.load %arg10[%c1_141, %c0_142, %c0_143] : memref<2x1x32xf32, #tpu.memory_space<vmem>>, vector<1x1x32xf32>
    %266 = vector.shape_cast %265 : vector<1x1x32xf32> to vector<1x32xf32>
    %cst_144 = arith.constant dense<0.000000e+00> : vector<8xf32>
    %267 = vector.multi_reduction <add>, %262, %cst_144 [1] : vector<8x32xf32> to vector<8xf32>
    %268 = vector.shape_cast %267 : vector<8xf32> to vector<8x1xf32>
    %cst_145 = arith.constant 3.200000e+01 : f32
    %269 = vector.broadcast %cst_145 : f32 to vector<8x1xf32>
    %270 = arith.divf %268, %269 : vector<8x1xf32>
    %271 = vector.broadcast %270 : vector<8x1xf32> to vector<8x32xf32>
    %272 = arith.subf %262, %271 : vector<8x32xf32>
    %273 = arith.mulf %272, %272 : vector<8x32xf32>
    %cst_146 = arith.constant dense<0.000000e+00> : vector<8xf32>
    %274 = vector.multi_reduction <add>, %273, %cst_146 [1] : vector<8x32xf32> to vector<8xf32>
    %275 = vector.shape_cast %274 : vector<8xf32> to vector<8x1xf32>
    %cst_147 = arith.constant 3.200000e+01 : f32
    %276 = vector.broadcast %cst_147 : f32 to vector<8x1xf32>
    %277 = arith.divf %275, %276 : vector<8x1xf32>
    %278 = vector.broadcast %270 : vector<8x1xf32> to vector<8x32xf32>
    %279 = arith.subf %262, %278 : vector<8x32xf32>
    %cst_148 = arith.constant 9.99999996E-13 : f32
    %280 = vector.broadcast %cst_148 : f32 to vector<8x1xf32>
    %281 = arith.addf %277, %280 : vector<8x1xf32>
    %282 = math.rsqrt %281 : vector<8x1xf32>
    %283 = vector.broadcast %282 : vector<8x1xf32> to vector<8x32xf32>
    %284 = arith.mulf %279, %283 : vector<8x32xf32>
    %285 = vector.broadcast %264 : vector<1x32xf32> to vector<8x32xf32>
    %286 = arith.mulf %284, %285 : vector<8x32xf32>
    %287 = vector.broadcast %266 : vector<1x32xf32> to vector<8x32xf32>
    %288 = arith.addf %286, %287 : vector<8x32xf32>
    %c1_149 = arith.constant 1 : index
    %c0_150 = arith.constant 0 : index
    %c0_151 = arith.constant 0 : index
    %289 = vector.load %arg11[%c1_149, %c0_150, %c0_151] : memref<2x32x64xbf16, #tpu.memory_space<vmem>>, vector<1x32x64xbf16>
    %290 = vector.shape_cast %289 : vector<1x32x64xbf16> to vector<32x64xbf16>
    %c1_152 = arith.constant 1 : index
    %c0_153 = arith.constant 0 : index
    %c0_154 = arith.constant 0 : index
    %291 = vector.load %arg12[%c1_152, %c0_153, %c0_154] : memref<2x1x64xf32, #tpu.memory_space<vmem>>, vector<1x1x64xf32>
    %292 = vector.shape_cast %291 : vector<1x1x64xf32> to vector<1x64xf32>
    %293 = arith.truncf %288 : vector<8x32xf32> to vector<8x32xbf16>
    %cst_155 = arith.constant dense<0.000000e+00> : vector<8x64xf32>
    %294 = tpu.matmul %293, %290, %cst_155 {dimension_numbers = #tpu.dot_dimension_numbers<[1], [0], [0], [1], [0, 0, 1, 1], [], []>} : vector<8x32xbf16>, vector<32x64xbf16>, vector<8x64xf32> -> vector<8x64xf32>
    %295 = vector.broadcast %292 : vector<1x64xf32> to vector<8x64xf32>
    %296 = arith.addf %294, %295 : vector<8x64xf32>
    %cst_156 = arith.constant 5.000000e-01 : f32
    %297 = vector.broadcast %cst_156 : f32 to vector<8x64xf32>
    %298 = arith.mulf %297, %296 : vector<8x64xf32>
    %cst_157 = arith.constant 4.471500e-02 : f32
    %299 = vector.broadcast %cst_157 : f32 to vector<8x64xf32>
    %300 = arith.mulf %299, %296 : vector<8x64xf32>
    %301 = arith.mulf %300, %296 : vector<8x64xf32>
    %302 = arith.mulf %301, %296 : vector<8x64xf32>
    %303 = arith.addf %296, %302 : vector<8x64xf32>
    %cst_158 = arith.constant 0.797884583 : f32
    %304 = vector.broadcast %cst_158 : f32 to vector<8x64xf32>
    %305 = arith.mulf %304, %303 : vector<8x64xf32>
    %306 = math.tanh %305 : vector<8x64xf32>
    %cst_159 = arith.constant 1.000000e+00 : f32
    %307 = vector.broadcast %cst_159 : f32 to vector<8x64xf32>
    %308 = arith.addf %307, %306 : vector<8x64xf32>
    %309 = arith.mulf %298, %308 : vector<8x64xf32>
    %c1_160 = arith.constant 1 : index
    %c0_161 = arith.constant 0 : index
    %c0_162 = arith.constant 0 : index
    %310 = vector.load %arg13[%c1_160, %c0_161, %c0_162] : memref<2x64x32xbf16, #tpu.memory_space<vmem>>, vector<1x64x32xbf16>
    %311 = vector.shape_cast %310 : vector<1x64x32xbf16> to vector<64x32xbf16>
    %c1_163 = arith.constant 1 : index
    %c0_164 = arith.constant 0 : index
    %c0_165 = arith.constant 0 : index
    %312 = vector.load %arg14[%c1_163, %c0_164, %c0_165] : memref<2x1x32xf32, #tpu.memory_space<vmem>>, vector<1x1x32xf32>
    %313 = vector.shape_cast %312 : vector<1x1x32xf32> to vector<1x32xf32>
    %314 = arith.truncf %309 : vector<8x64xf32> to vector<8x64xbf16>
    %cst_166 = arith.constant dense<0.000000e+00> : vector<8x32xf32>
    %315 = tpu.matmul %314, %311, %cst_166 {dimension_numbers = #tpu.dot_dimension_numbers<[1], [0], [0], [1], [0, 0, 1, 1], [], []>} : vector<8x64xbf16>, vector<64x32xbf16>, vector<8x32xf32> -> vector<8x32xf32>
    %316 = vector.broadcast %313 : vector<1x32xf32> to vector<8x32xf32>
    %317 = arith.addf %315, %316 : vector<8x32xf32>
    %318 = arith.addf %317, %288 : vector<8x32xf32>
    %c1_167 = arith.constant 1 : index
    %c0_168 = arith.constant 0 : index
    %c0_169 = arith.constant 0 : index
    %319 = vector.load %arg15[%c1_167, %c0_168, %c0_169] : memref<2x1x32xf32, #tpu.memory_space<vmem>>, vector<1x1x32xf32>
    %320 = vector.shape_cast %319 : vector<1x1x32xf32> to vector<1x32xf32>
    %c1_170 = arith.constant 1 : index
    %c0_171 = arith.constant 0 : index
    %c0_172 = arith.constant 0 : index
    %321 = vector.load %arg16[%c1_170, %c0_171, %c0_172] : memref<2x1x32xf32, #tpu.memory_space<vmem>>, vector<1x1x32xf32>
    %322 = vector.shape_cast %321 : vector<1x1x32xf32> to vector<1x32xf32>
    %cst_173 = arith.constant dense<0.000000e+00> : vector<8xf32>
    %323 = vector.multi_reduction <add>, %318, %cst_173 [1] : vector<8x32xf32> to vector<8xf32>
    %324 = vector.shape_cast %323 : vector<8xf32> to vector<8x1xf32>
    %cst_174 = arith.constant 3.200000e+01 : f32
    %325 = vector.broadcast %cst_174 : f32 to vector<8x1xf32>
    %326 = arith.divf %324, %325 : vector<8x1xf32>
    %327 = vector.broadcast %326 : vector<8x1xf32> to vector<8x32xf32>
    %328 = arith.subf %318, %327 : vector<8x32xf32>
    %329 = arith.mulf %328, %328 : vector<8x32xf32>
    %cst_175 = arith.constant dense<0.000000e+00> : vector<8xf32>
    %330 = vector.multi_reduction <add>, %329, %cst_175 [1] : vector<8x32xf32> to vector<8xf32>
    %331 = vector.shape_cast %330 : vector<8xf32> to vector<8x1xf32>
    %cst_176 = arith.constant 3.200000e+01 : f32
    %332 = vector.broadcast %cst_176 : f32 to vector<8x1xf32>
    %333 = arith.divf %331, %332 : vector<8x1xf32>
    %334 = vector.broadcast %326 : vector<8x1xf32> to vector<8x32xf32>
    %335 = arith.subf %318, %334 : vector<8x32xf32>
    %cst_177 = arith.constant 9.99999996E-13 : f32
    %336 = vector.broadcast %cst_177 : f32 to vector<8x1xf32>
    %337 = arith.addf %333, %336 : vector<8x1xf32>
    %338 = math.rsqrt %337 : vector<8x1xf32>
    %339 = vector.broadcast %338 : vector<8x1xf32> to vector<8x32xf32>
    %340 = arith.mulf %335, %339 : vector<8x32xf32>
    %341 = vector.broadcast %320 : vector<1x32xf32> to vector<8x32xf32>
    %342 = arith.mulf %340, %341 : vector<8x32xf32>
    %343 = vector.broadcast %322 : vector<1x32xf32> to vector<8x32xf32>
    %344 = arith.addf %342, %343 : vector<8x32xf32>
    %c0_178 = arith.constant 0 : index
    %c0_179 = arith.constant 0 : index
    %345 = vector.load %arg17[%c0_178, %c0_179] : memref<32x64xbf16, #tpu.memory_space<vmem>>, vector<32x64xbf16>
    %c0_180 = arith.constant 0 : index
    %c0_181 = arith.constant 0 : index
    %346 = vector.load %arg18[%c0_180, %c0_181] : memref<1x64xf32, #tpu.memory_space<vmem>>, vector<1x64xf32>
    %347 = arith.truncf %344 : vector<8x32xf32> to vector<8x32xbf16>
    %cst_182 = arith.constant dense<0.000000e+00> : vector<8x64xf32>
    %348 = tpu.matmul %347, %345, %cst_182 {dimension_numbers = #tpu.dot_dimension_numbers<[1], [0], [0], [1], [0, 0, 1, 1], [], []>} : vector<8x32xbf16>, vector<32x64xbf16>, vector<8x64xf32> -> vector<8x64xf32>
    %349 = vector.broadcast %346 : vector<1x64xf32> to vector<8x64xf32>
    %350 = arith.addf %348, %349 : vector<8x64xf32>
    %c0_183 = arith.constant 0 : index
    %c0_184 = arith.constant 0 : index
    %351 = vector.load %arg1[%c0_183, %c0_184] : memref<8x64xf32, #tpu.memory_space<vmem>>, vector<8x64xf32>
    %352 = arith.addf %351, %350 : vector<8x64xf32>
    %c0_185 = arith.constant 0 : index
    %c0_186 = arith.constant 0 : index
    %353 = vector.load %arg19[%c0_185, %c0_186] : memref<8x64xf32, #tpu.memory_space<vmem>>, vector<8x64xf32>
    tpu.vector_store %arg19[%c0_185, %c0_186], %352 {strides = array<i32>} : memref<8x64xf32, #tpu.memory_space<vmem>>, vector<8x64xf32>,
    return
  }
  func.func @transform_0(%arg0: i32) -> (i32, i32) {
    %c0_i32 = arith.constant 0 : i32
    %c0_i32_0 = arith.constant 0 : i32
    return %arg0, %c0_i32 : i32, i32
  }
  func.func @transform_1(%arg0: i32) -> (i32, i32, i32) {
    %c0_i32 = arith.constant 0 : i32
    %c0_i32_0 = arith.constant 0 : i32
    %c0_i32_1 = arith.constant 0 : i32
    return %arg0, %c0_i32, %c0_i32_0 : i32, i32, i32
  }
  func.func @transform_2(%arg0: i32) -> (i32, i32) {
    %c0_i32 = arith.constant 0 : i32
    %c0_i32_0 = arith.constant 0 : i32
    %c0_i32_1 = arith.constant 0 : i32
    return %c0_i32, %c0_i32_0 : i32, i32
  }
  func.func @transform_3(%arg0: i32) -> (i32, i32) {
    %c0_i32 = arith.constant 0 : i32
    %c0_i32_0 = arith.constant 0 : i32
    %c0_i32_1 = arith.constant 0 : i32
    return %c0_i32, %c0_i32_0 : i32, i32
  }
  func.func @transform_4(%arg0: i32) -> (i32, i32, i32, i32) {
    %c0_i32 = arith.constant 0 : i32
    %c0_i32_0 = arith.constant 0 : i32
    %c0_i32_1 = arith.constant 0 : i32
    %c0_i32_2 = arith.constant 0 : i32
    %c0_i32_3 = arith.constant 0 : i32
    return %c0_i32, %c0_i32_0, %c0_i32_1, %c0_i32_2 : i32, i32, i32, i32
  }
  func.func @transform_5(%arg0: i32) -> (i32, i32, i32, i32) {
    %c0_i32 = arith.constant 0 : i32
    %c0_i32_0 = arith.constant 0 : i32
    %c0_i32_1 = arith.constant 0 : i32
    %c0_i32_2 = arith.constant 0 : i32
    %c0_i32_3 = arith.constant 0 : i32
    return %c0_i32, %c0_i32_0, %c0_i32_1, %c0_i32_2 : i32, i32, i32, i32
  }
  func.func @transform_6(%arg0: i32) -> (i32, i32, i32) {
    %c0_i32 = arith.constant 0 : i32
    %c0_i32_0 = arith.constant 0 : i32
    %c0_i32_1 = arith.constant 0 : i32
    %c0_i32_2 = arith.constant 0 : i32
    return %c0_i32, %c0_i32_0, %c0_i32_1 : i32, i32, i32
  }
  func.func @transform_7(%arg0: i32) -> (i32, i32, i32) {
    %c0_i32 = arith.constant 0 : i32
    %c0_i32_0 = arith.constant 0 : i32
    %c0_i32_1 = arith.constant 0 : i32
    %c0_i32_2 = arith.constant 0 : i32
    return %c0_i32, %c0_i32_0, %c0_i32_1 : i32, i32, i32
  }
  func.func @transform_8(%arg0: i32) -> (i32, i32, i32) {
    %c0_i32 = arith.constant 0 : i32
    %c0_i32_0 = arith.constant 0 : i32
    %c0_i32_1 = arith.constant 0 : i32
    %c0_i32_2 = arith.constant 0 : i32
    return %c0_i32, %c0_i32_0, %c0_i32_1 : i32, i32, i32
  }
  func.func @transform_9(%arg0: i32) -> (i32, i32, i32) {
    %c0_i32 = arith.constant 0 : i32
    %c0_i32_0 = arith.constant 0 : i32
    %c0_i32_1 = arith.constant 0 : i32
    %c0_i32_2 = arith.constant 0 : i32
    return %c0_i32, %c0_i32_0, %c0_i32_1 : i32, i32, i32
  }
  func.func @transform_10(%arg0: i32) -> (i32, i32, i32) {
    %c0_i32 = arith.constant 0 : i32
    %c0_i32_0 = arith.constant 0 : i32
    %c0_i32_1 = arith.constant 0 : i32
    %c0_i32_2 = arith.constant 0 : i32
    return %c0_i32, %c0_i32_0, %c0_i32_1 : i32, i32, i32
  }
  func.func @transform_11(%arg0: i32) -> (i32, i32, i32) {
    %c0_i32 = arith.constant 0 : i32
    %c0_i32_0 = arith.constant 0 : i32
    %c0_i32_1 = arith.constant 0 : i32
    %c0_i32_2 = arith.constant 0 : i32
    return %c0_i32, %c0_i32_0, %c0_i32_1 : i32, i32, i32
  }
  func.func @transform_12(%arg0: i32) -> (i32, i32, i32) {
    %c0_i32 = arith.constant 0 : i32
    %c0_i32_0 = arith.constant 0 : i32
    %c0_i32_1 = arith.constant 0 : i32
    %c0_i32_2 = arith.constant 0 : i32
    return %c0_i32, %c0_i32_0, %c0_i32_1 : i32, i32, i32
  }
  func.func @transform_13(%arg0: i32) -> (i32, i32, i32) {
    %c0_i32 = arith.constant 0 : i32
    %c0_i32_0 = arith.constant 0 : i32
    %c0_i32_1 = arith.constant 0 : i32
    %c0_i32_2 = arith.constant 0 : i32
    return %c0_i32, %c0_i32_0, %c0_i32_1 : i32, i32, i32
  }
  func.func @transform_14(%arg0: i32) -> (i32, i32, i32) {
    %c0_i32 = arith.constant 0 : i32
    %c0_i32_0 = arith.constant 0 : i32
    %c0_i32_1 = arith.constant 0 : i32
    %c0_i32_2 = arith.constant 0 : i32
    return %c0_i32, %c0_i32_0, %c0_i32_1 : i32, i32, i32
  }
  func.func @transform_15(%arg0: i32) -> (i32, i32, i32) {
    %c0_i32 = arith.constant 0 : i32
    %c0_i32_0 = arith.constant 0 : i32
    %c0_i32_1 = arith.constant 0 : i32
    %c0_i32_2 = arith.constant 0 : i32
    return %c0_i32, %c0_i32_0, %c0_i32_1 : i32, i32, i32
  }
  func.func @transform_16(%arg0: i32) -> (i32, i32) {
    %c0_i32 = arith.constant 0 : i32
    %c0_i32_0 = arith.constant 0 : i32
    %c0_i32_1 = arith.constant 0 : i32
    return %c0_i32, %c0_i32_0 : i32, i32
  }
  func.func @transform_17(%arg0: i32) -> (i32, i32) {
    %c0_i32 = arith.constant 0 : i32
    %c0_i32_0 = arith.constant 0 : i32
    %c0_i32_1 = arith.constant 0 : i32
    return %c0_i32, %c0_i32_0 : i32, i32
  }
  func.func @transform_18(%arg0: i32) -> (i32, i32) {
    %c0_i32 = arith.constant 0 : i32
    %c0_i32_0 = arith.constant 0 : i32
    return %arg0, %c0_i32 : i32, i32
  }
}

</mosaic_0001>

<llo_original>
// kernel: adapter_forward.1
$region0: #{adapter_forward.1}
  #allocation0 [shape = 'u32[]', space=smem, size = 0x4, offset = 0x4, fixed_abs, tag = 'smem constant byte address 0x4 - core index']
  #allocation1 [shape = 'u32[144,128]{1,0:T(1,128)}', space=vmem, size = 0x12000, scoped, tag = 'internal scratch']
  %s0 = inlined_call_operand.vmem [shape: f32[16,64], index: 0, kind: input, shape index: {}]
  %s1 = inlined_call_operand.vmem [shape: f32[2,1,8], index: 1, kind: input, shape index: {}]
  %s2 = inlined_call_operand.vmem [shape: bf16[64,32], index: 2, kind: input, shape index: {}]
  %s3 = inlined_call_operand.hbm [shape: f32[1,32], index: 3, kind: input, shape index: {}]
  %s4 = inlined_call_operand.vmem [shape: bf16[2,3,32,32], index: 4, kind: input, shape index: {}]
  %s5 = inlined_call_operand.hbm [shape: f32[2,3,1,32], index: 5, kind: input, shape index: {}]
  %s6 = inlined_call_operand.vmem [shape: bf16[2,32,32], index: 6, kind: input, shape index: {}]
  %s7 = inlined_call_operand.hbm [shape: f32[2,1,32], index: 7, kind: input, shape index: {}]
  %s8 = inlined_call_operand.hbm [shape: f32[2,1,32], index: 8, kind: input, shape index: {}]
  %s9 = inlined_call_operand.hbm [shape: f32[2,1,32], index: 9, kind: input, shape index: {}]
  %s10 = inlined_call_operand.vmem [shape: bf16[2,32,64], index: 10, kind: input, shape index: {}]
  %s11 = inlined_call_operand.hbm [shape: f32[2,1,64], index: 11, kind: input, shape index: {}]
  %s12 = inlined_call_operand.vmem [shape: bf16[2,64,32], index: 12, kind: input, shape index: {}]
  %s13 = inlined_call_operand.hbm [shape: f32[2,1,32], index: 13, kind: input, shape index: {}]
  %s14 = inlined_call_operand.hbm [shape: f32[2,1,32], index: 14, kind: input, shape index: {}]
  %s15 = inlined_call_operand.hbm [shape: f32[2,1,32], index: 15, kind: input, shape index: {}]
  %s16 = inlined_call_operand.hbm [shape: bf16[32,64], index: 16, kind: input, shape index: {}]
  %s17 = inlined_call_operand.hbm [shape: f32[1,64], index: 17, kind: input, shape index: {}]
  %s18 = inlined_call_operand.hbm [shape: f32[16,64], index: 18, kind: output, shape index: {}]
  %s19 = sld [smem:[#allocation0]]
  $region149: #{adapter_forward.1} parent=0
    _
  %s21 = ssub.s32 1, %s19
  %s22 = scalar_select 0, %s21, %s19
  $region1: #{adapter_forward.1} parent=0
    #allocation2 [shape = 'u8[512]{0}', space=vmem, size = 0x400, scoped, tag = 'input window, operand 3, single buffered']
    #allocation3 [shape = 's32[2]{0}', space=sflag, size = 0x8, scoped, tag = 'scoped memory for adapter_forward.1']
    #allocation4 [shape = 's32[2]{0}', space=sflag, size = 0x8, scoped, tag = 'scoped memory for adapter_forward.1']
    #allocation5 [shape = 'u8[3072]{0}', space=vmem, size = 0xc00, scoped, tag = 'input window, operand 5, single buffered']
    #allocation6 [shape = 's32[1]{0}', space=sflag, size = 0x4, scoped, tag = 'scoped memory for adapter_forward.1']
    #allocation7 [shape = 'u8[1024]{0}', space=vmem, size = 0x400, scoped, tag = 'input window, operand 7, single buffered']
    #allocation8 [shape = 'u8[1024]{0}', space=vmem, size = 0x400, scoped, tag = 'input window, operand 8, single buffered']
    #allocation9 [shape = 's32[1]{0}', space=sflag, size = 0x4, scoped, tag = 'scoped memory for adapter_forward.1']
    #allocation10 [shape = 'u8[1024]{0}', space=vmem, size = 0x400, scoped, tag = 'input window, operand 9, single buffered']
    #allocation11 [shape = 'u8[1024]{0}', space=vmem, size = 0x400, scoped, tag = 'input window, operand 11, single buffered']
    #allocation12 [shape = 's32[1]{0}', space=sflag, size = 0x4, scoped, tag = 'scoped memory for adapter_forward.1']
    #allocation13 [shape = 'u8[1024]{0}', space=vmem, size = 0x400, scoped, tag = 'input window, operand 13, single buffered']
    #allocation14 [shape = 'u8[1024]{0}', space=vmem, size = 0x400, scoped, tag = 'input window, operand 14, single buffered']
    #allocation15 [shape = 's32[1]{0}', space=sflag, size = 0x4, scoped, tag = 'scoped memory for adapter_forward.1']
    #allocation16 [shape = 'u8[1024]{0}', space=vmem, size = 0x400, scoped, tag = 'input window, operand 15, single buffered']
    #allocation17 [shape = 'u8[8192]{0}', space=vmem, size = 0x2000, scoped, tag = 'input window, operand 16, single buffered']
    #allocation18 [shape = 's32[1]{0}', space=sflag, size = 0x4, scoped, tag = 'scoped memory for adapter_forward.1']
    #allocation19 [shape = 'u8[512]{0}', space=vmem, size = 0x400, scoped, tag = 'input window, operand 17, single buffered']
    #allocation20 [shape = 'u8[8192]{0}', space=vmem, size = 0x2000, scoped, tag = 'output window, operand 0']
    %23 = vsyncpa [#allocation3], 0
    %24 = vsyncpa [#allocation6], 0
    %25 = vsyncpa [#allocation9], 0
    %26 = vsyncpa [#allocation12], 0
    %27 = vsyncpa [#allocation15], 0
    %28 = vsyncpa [#allocation18], 0
    %29 = vsyncpa [#allocation4], 0
    %s30 = scalar_lea.sflag [#allocation4], 1
    %31 = vsyncpa %s30, 0
    loop: start=0, step=1, limit=4
    $region2: #{adapter_forward.1} parent=1 // loop_pre_header
      _
    $region3: #{adapter_forward.1} parent=1 // loop_header
      %s33 = sphi 0, %s37
      %p34 = scmp.ge.s32.totalorder %s33, 4
      %s43 = sphi 0, %s45
      %s46 = sphi 0, %s43
      %s47 = sphi 0, %s46
      %s63 = sphi 0, %s47
      %s69 = sphi 0, %s71
      %s72 = sphi 0, %s69
      %s73 = sphi 0, %s72
      %s89 = sphi 0, %s73
      %s93 = sphi 0, %s93
      %s95 = sphi 0, %s93
      %s96 = sphi 0, %s95
      %s110 = sphi 0, %s96
      %s114 = sphi 0, %s114
      %s116 = sphi 0, %s114
      %s117 = sphi 0, %s116
      %s131 = sphi 0, %s117
      %s135 = sphi 0, %s135
      %s137 = sphi 0, %s135
      %s138 = sphi 0, %s137
      %s152 = sphi 0, %s138
      %s156 = sphi 0, %s156
      %s158 = sphi 0, %s156
      %s159 = sphi 0, %s158
      %s173 = sphi 0, %s159
      %s177 = sphi 0, %s177
      %s179 = sphi 0, %s177
      %s180 = sphi 0, %s179
      %s194 = sphi 0, %s180
      %s198 = sphi 0, %s198
      %s200 = sphi 0, %s198
      %s201 = sphi 0, %s200
      %s215 = sphi 0, %s201
      %s219 = sphi 0, %s219
      %s221 = sphi 0, %s219
      %s222 = sphi 0, %s221
      %s236 = sphi 0, %s222
      %s240 = sphi 0, %s240
      %s242 = sphi 0, %s240
      %s243 = sphi 0, %s242
      %s257 = sphi 0, %s243
      %s261 = sphi 0, %s261
      %s263 = sphi 0, %s261
      %s264 = sphi 0, %s263
      %s278 = sphi 0, %s264
      %s282 = sphi 0, %s282
      %s284 = sphi 0, %s282
      %s285 = sphi 0, %s284
      %s299 = sphi 0, %s285
      %s303 = sphi 0, %s303
      %s305 = sphi 0, %s303
      %s306 = sphi 0, %s305
      %s320 = sphi 0, %s306
      %s324 = sphi 0, %s324
      %s326 = sphi 0, %s324
      %s327 = sphi 0, %s326
      %s341 = sphi 0, %s327
      %s345 = sphi 0, %s345
      %s347 = sphi 0, %s345
      %s348 = sphi 0, %s347
      %s362 = sphi 0, %s348
      %s366 = sphi 0, %s366
      %s368 = sphi 0, %s366
      %s369 = sphi 0, %s368
      %s383 = sphi 0, %s369
      %s387 = sphi 0, %s387
      %s389 = sphi 0, %s387
      %s390 = sphi 0, %s389
      %s404 = sphi 0, %s390
      %s408 = sphi 0, %s408
      %s410 = sphi 0, %s408
      %s411 = sphi 0, %s410
      %s425 = sphi 0, %s411
      %s431 = sphi 0, %s433
      %s434 = sphi 0, %s431
      %s435 = sphi 0, %s434
      %s451 = sphi 0, %s435
    $region4: #{adapter_forward.1} parent=1 // loop_header_branch
      %36 = sbr.rel (%p34) target = $region8
    $region5: #{adapter_forward.1} parent=1 // loop_body
      %s38 = ssub.s32 %s33, 1
      %s39 = ssub.s32 %s33, 2
      %s40 = sadd.s32 %s33, 1
      %s41 = ssub.s32 %s33, %s40
      %p42 = scmp.eq.s32.totalorder %s41, 0
      %s44 = sadd.s32 %s43, 1
      %s45 = scalar_select %p42, %s43, %s44
      %p48 = pneg %p42
      %p49 = scmp.eq.s32.totalorder %s33, 1
      %p50 = por %p48, %p49
      %p51 = scmp.ne.s32.totalorder %s43, %s46
      %p52 = scmp.eq.s32.totalorder %s33, 0
      %p53 = por %p51, %p52
      %p54 = scmp.ne.s32.totalorder %s43, %s46
      %p55 = scmp.eq.s32.totalorder %s38, 1
      %p56 = por %p54, %p55
      %p57 = scmp.ne.s32.totalorder %s46, %s47
      %p58 = scmp.eq.s32.totalorder %s38, 0
      %p59 = por %p57, %p58
      %p60 = scmp.ne.s32.totalorder %s46, %s47
      %p61 = scmp.eq.s32.totalorder %s39, 1
      %p62 = por %p60, %p61
      %p64 = scmp.ne.s32.totalorder %s47, %s63
      %p65 = scmp.eq.s32.totalorder %s39, 0
      %p66 = por %p64, %p65
      %s67 = ssub.s32 %s33, %s40
      %p68 = scmp.eq.s32.totalorder %s67, 0
      %s70 = sadd.s32 %s69, 1
      %s71 = scalar_select %p68, %s69, %s70
      %p74 = pneg %p68
      %p75 = scmp.eq.s32.totalorder %s33, 1
      %p76 = por %p74, %p75
      %p77 = scmp.ne.s32.totalorder %s69, %s72
      %p78 = scmp.eq.s32.totalorder %s33, 0
      %p79 = por %p77, %p78
      %p80 = scmp.ne.s32.totalorder %s69, %s72
      %p81 = scmp.eq.s32.totalorder %s38, 1
      %p82 = por %p80, %p81
      %p83 = scmp.ne.s32.totalorder %s72, %s73
      %p84 = scmp.eq.s32.totalorder %s38, 0
      %p85 = por %p83, %p84
      %p86 = scmp.ne.s32.totalorder %s72, %s73
      %p87 = scmp.eq.s32.totalorder %s39, 1
      %p88 = por %p86, %p87
      %p90 = scmp.ne.s32.totalorder %s73, %s89
      %p91 = scmp.eq.s32.totalorder %s39, 0
      %p92 = por %p90, %p91
      %s94 = sadd.s32 %s93, 1
      %p97 = scmp.eq.s32.totalorder %s33, 1
      %p98 = scmp.ne.s32.totalorder %s93, %s95
      %p99 = scmp.eq.s32.totalorder %s33, 0
      %p100 = por %p98, %p99
      %p101 = scmp.ne.s32.totalorder %s93, %s95
      %p102 = scmp.eq.s32.totalorder %s38, 1
      %p103 = por %p101, %p102
      %p104 = scmp.ne.s32.totalorder %s95, %s96
      %p105 = scmp.eq.s32.totalorder %s38, 0
      %p106 = por %p104, %p105
      %p107 = scmp.ne.s32.totalorder %s95, %s96
      %p108 = scmp.eq.s32.totalorder %s39, 1
      %p109 = por %p107, %p108
      %p111 = scmp.ne.s32.totalorder %s96, %s110
      %p112 = scmp.eq.s32.totalorder %s39, 0
      %p113 = por %p111, %p112
      %s115 = sadd.s32 %s114, 1
      %p118 = scmp.eq.s32.totalorder %s33, 1
      %p119 = scmp.ne.s32.totalorder %s114, %s116
      %p120 = scmp.eq.s32.totalorder %s33, 0
      %p121 = por %p119, %p120
      %p122 = scmp.ne.s32.totalorder %s114, %s116
      %p123 = scmp.eq.s32.totalorder %s38, 1
      %p124 = por %p122, %p123
      %p125 = scmp.ne.s32.totalorder %s116, %s117
      %p126 = scmp.eq.s32.totalorder %s38, 0
      %p127 = por %p125, %p126
      %p128 = scmp.ne.s32.totalorder %s116, %s117
      %p129 = scmp.eq.s32.totalorder %s39, 1
      %p130 = por %p128, %p129
      %p132 = scmp.ne.s32.totalorder %s117, %s131
      %p133 = scmp.eq.s32.totalorder %s39, 0
      %p134 = por %p132, %p133
      %s136 = sadd.s32 %s135, 1
      %p139 = scmp.eq.s32.totalorder %s33, 1
      %p140 = scmp.ne.s32.totalorder %s135, %s137
      %p141 = scmp.eq.s32.totalorder %s33, 0
      %p142 = por %p140, %p141
      %p143 = scmp.ne.s32.totalorder %s135, %s137
      %p144 = scmp.eq.s32.totalorder %s38, 1
      %p145 = por %p143, %p144
      %p146 = scmp.ne.s32.totalorder %s137, %s138
      %p147 = scmp.eq.s32.totalorder %s38, 0
      %p148 = por %p146, %p147
      %p149 = scmp.ne.s32.totalorder %s137, %s138
      %p150 = scmp.eq.s32.totalorder %s39, 1
      %p151 = por %p149, %p150
      %p153 = scmp.ne.s32.totalorder %s138, %s152
      %p154 = scmp.eq.s32.totalorder %s39, 0
      %p155 = por %p153, %p154
      %s157 = sadd.s32 %s156, 1
      %p160 = scmp.eq.s32.totalorder %s33, 1
      %p161 = scmp.ne.s32.totalorder %s156, %s158
      %p162 = scmp.eq.s32.totalorder %s33, 0
      %p163 = por %p161, %p162
      %p164 = scmp.ne.s32.totalorder %s156, %s158
      %p165 = scmp.eq.s32.totalorder %s38, 1
      %p166 = por %p164, %p165
      %p167 = scmp.ne.s32.totalorder %s158, %s159
      %p168 = scmp.eq.s32.totalorder %s38, 0
      %p169 = por %p167, %p168
      %p170 = scmp.ne.s32.totalorder %s158, %s159
      %p171 = scmp.eq.s32.totalorder %s39, 1
      %p172 = por %p170, %p171
      %p174 = scmp.ne.s32.totalorder %s159, %s173
      %p175 = scmp.eq.s32.totalorder %s39, 0
      %p176 = por %p174, %p175
      %s178 = sadd.s32 %s177, 1
      %p181 = scmp.eq.s32.totalorder %s33, 1
      %p182 = scmp.ne.s32.totalorder %s177, %s179
      %p183 = scmp.eq.s32.totalorder %s33, 0
      %p184 = por %p182, %p183
      %p185 = scmp.ne.s32.totalorder %s177, %s179
      %p186 = scmp.eq.s32.totalorder %s38, 1
      %p187 = por %p185, %p186
      %p188 = scmp.ne.s32.totalorder %s179, %s180
      %p189 = scmp.eq.s32.totalorder %s38, 0
      %p190 = por %p188, %p189
      %p191 = scmp.ne.s32.totalorder %s179, %s180
      %p192 = scmp.eq.s32.totalorder %s39, 1
      %p193 = por %p191, %p192
      %p195 = scmp.ne.s32.totalorder %s180, %s194
      %p196 = scmp.eq.s32.totalorder %s39, 0
      %p197 = por %p195, %p196
      %s199 = sadd.s32 %s198, 1
      %p202 = scmp.eq.s32.totalorder %s33, 1
      %p203 = scmp.ne.s32.totalorder %s198, %s200
      %p204 = scmp.eq.s32.totalorder %s33, 0
      %p205 = por %p203, %p204
      %p206 = scmp.ne.s32.totalorder %s198, %s200
      %p207 = scmp.eq.s32.totalorder %s38, 1
      %p208 = por %p206, %p207
      %p209 = scmp.ne.s32.totalorder %s200, %s201
      %p210 = scmp.eq.s32.totalorder %s38, 0
      %p211 = por %p209, %p210
      %p212 = scmp.ne.s32.totalorder %s200, %s201
      %p213 = scmp.eq.s32.totalorder %s39, 1
      %p214 = por %p212, %p213
      %p216 = scmp.ne.s32.totalorder %s201, %s215
      %p217 = scmp.eq.s32.totalorder %s39, 0
      %p218 = por %p216, %p217
      %s220 = sadd.s32 %s219, 1
      %p223 = scmp.eq.s32.totalorder %s33, 1
      %p224 = scmp.ne.s32.totalorder %s219, %s221
      %p225 = scmp.eq.s32.totalorder %s33, 0
      %p226 = por %p224, %p225
      %p227 = scmp.ne.s32.totalorder %s219, %s221
      %p228 = scmp.eq.s32.totalorder %s38, 1
      %p229 = por %p227, %p228
      %p230 = scmp.ne.s32.totalorder %s221, %s222
      %p231 = scmp.eq.s32.totalorder %s38, 0
      %p232 = por %p230, %p231
      %p233 = scmp.ne.s32.totalorder %s221, %s222
      %p234 = scmp.eq.s32.totalorder %s39, 1
      %p235 = por %p233, %p234
      %p237 = scmp.ne.s32.totalorder %s222, %s236
      %p238 = scmp.eq.s32.totalorder %s39, 0
      %p239 = por %p237, %p238
      %s241 = sadd.s32 %s240, 1
      %p244 = scmp.eq.s32.totalorder %s33, 1
      %p245 = scmp.ne.s32.totalorder %s240, %s242
      %p246 = scmp.eq.s32.totalorder %s33, 0
      %p247 = por %p245, %p246
      %p248 = scmp.ne.s32.totalorder %s240, %s242
      %p249 = scmp.eq.s32.totalorder %s38, 1
      %p250 = por %p248, %p249
      %p251 = scmp.ne.s32.totalorder %s242, %s243
      %p252 = scmp.eq.s32.totalorder %s38, 0
      %p253 = por %p251, %p252
      %p254 = scmp.ne.s32.totalorder %s242, %s243
      %p255 = scmp.eq.s32.totalorder %s39, 1
      %p256 = por %p254, %p255
      %p258 = scmp.ne.s32.totalorder %s243, %s257
      %p259 = scmp.eq.s32.totalorder %s39, 0
      %p260 = por %p258, %p259
      %s262 = sadd.s32 %s261, 1
      %p265 = scmp.eq.s32.totalorder %s33, 1
      %p266 = scmp.ne.s32.totalorder %s261, %s263
      %p267 = scmp.eq.s32.totalorder %s33, 0
      %p268 = por %p266, %p267
      %p269 = scmp.ne.s32.totalorder %s261, %s263
      %p270 = scmp.eq.s32.totalorder %s38, 1
      %p271 = por %p269, %p270
      %p272 = scmp.ne.s32.totalorder %s263, %s264
      %p273 = scmp.eq.s32.totalorder %s38, 0
      %p274 = por %p272, %p273
      %p275 = scmp.ne.s32.totalorder %s263, %s264
      %p276 = scmp.eq.s32.totalorder %s39, 1
      %p277 = por %p275, %p276
      %p279 = scmp.ne.s32.totalorder %s264, %s278
      %p280 = scmp.eq.s32.totalorder %s39, 0
      %p281 = por %p279, %p280
      %s283 = sadd.s32 %s282, 1
      %p286 = scmp.eq.s32.totalorder %s33, 1
      %p287 = scmp.ne.s32.totalorder %s282, %s284
      %p288 = scmp.eq.s32.totalorder %s33, 0
      %p289 = por %p287, %p288
      %p290 = scmp.ne.s32.totalorder %s282, %s284
      %p291 = scmp.eq.s32.totalorder %s38, 1
      %p292 = por %p290, %p291
      %p293 = scmp.ne.s32.totalorder %s284, %s285
      %p294 = scmp.eq.s32.totalorder %s38, 0
      %p295 = por %p293, %p294
      %p296 = scmp.ne.s32.totalorder %s284, %s285
      %p297 = scmp.eq.s32.totalorder %s39, 1
      %p298 = por %p296, %p297
      %p300 = scmp.ne.s32.totalorder %s285, %s299
      %p301 = scmp.eq.s32.totalorder %s39, 0
      %p302 = por %p300, %p301
      %s304 = sadd.s32 %s303, 1
      %p307 = scmp.eq.s32.totalorder %s33, 1
      %p308 = scmp.ne.s32.totalorder %s303, %s305
      %p309 = scmp.eq.s32.totalorder %s33, 0
      %p310 = por %p308, %p309
      %p311 = scmp.ne.s32.totalorder %s303, %s305
      %p312 = scmp.eq.s32.totalorder %s38, 1
      %p313 = por %p311, %p312
      %p314 = scmp.ne.s32.totalorder %s305, %s306
      %p315 = scmp.eq.s32.totalorder %s38, 0
      %p316 = por %p314, %p315
      %p317 = scmp.ne.s32.totalorder %s305, %s306
      %p318 = scmp.eq.s32.totalorder %s39, 1
      %p319 = por %p317, %p318
      %p321 = scmp.ne.s32.totalorder %s306, %s320
      %p322 = scmp.eq.s32.totalorder %s39, 0
      %p323 = por %p321, %p322
      %s325 = sadd.s32 %s324, 1
      %p328 = scmp.eq.s32.totalorder %s33, 1
      %p329 = scmp.ne.s32.totalorder %s324, %s326
      %p330 = scmp.eq.s32.totalorder %s33, 0
      %p331 = por %p329, %p330
      %p332 = scmp.ne.s32.totalorder %s324, %s326
      %p333 = scmp.eq.s32.totalorder %s38, 1
      %p334 = por %p332, %p333
      %p335 = scmp.ne.s32.totalorder %s326, %s327
      %p336 = scmp.eq.s32.totalorder %s38, 0
      %p337 = por %p335, %p336
      %p338 = scmp.ne.s32.totalorder %s326, %s327
      %p339 = scmp.eq.s32.totalorder %s39, 1
      %p340 = por %p338, %p339
      %p342 = scmp.ne.s32.totalorder %s327, %s341
      %p343 = scmp.eq.s32.totalorder %s39, 0
      %p344 = por %p342, %p343
      %s346 = sadd.s32 %s345, 1
      %p349 = scmp.eq.s32.totalorder %s33, 1
      %p350 = scmp.ne.s32.totalorder %s345, %s347
      %p351 = scmp.eq.s32.totalorder %s33, 0
      %p352 = por %p350, %p351
      %p353 = scmp.ne.s32.totalorder %s345, %s347
      %p354 = scmp.eq.s32.totalorder %s38, 1
      %p355 = por %p353, %p354
      %p356 = scmp.ne.s32.totalorder %s347, %s348
      %p357 = scmp.eq.s32.totalorder %s38, 0
      %p358 = por %p356, %p357
      %p359 = scmp.ne.s32.totalorder %s347, %s348
      %p360 = scmp.eq.s32.totalorder %s39, 1
      %p361 = por %p359, %p360
      %p363 = scmp.ne.s32.totalorder %s348, %s362
      %p364 = scmp.eq.s32.totalorder %s39, 0
      %p365 = por %p363, %p364
      %s367 = sadd.s32 %s366, 1
      %p370 = scmp.eq.s32.totalorder %s33, 1
      %p371 = scmp.ne.s32.totalorder %s366, %s368
      %p372 = scmp.eq.s32.totalorder %s33, 0
      %p373 = por %p371, %p372
      %p374 = scmp.ne.s32.totalorder %s366, %s368
      %p375 = scmp.eq.s32.totalorder %s38, 1
      %p376 = por %p374, %p375
      %p377 = scmp.ne.s32.totalorder %s368, %s369
      %p378 = scmp.eq.s32.totalorder %s38, 0
      %p379 = por %p377, %p378
      %p380 = scmp.ne.s32.totalorder %s368, %s369
      %p381 = scmp.eq.s32.totalorder %s39, 1
      %p382 = por %p380, %p381
      %p384 = scmp.ne.s32.totalorder %s369, %s383
      %p385 = scmp.eq.s32.totalorder %s39, 0
      %p386 = por %p384, %p385
      %s388 = sadd.s32 %s387, 1
      %p391 = scmp.eq.s32.totalorder %s33, 1
      %p392 = scmp.ne.s32.totalorder %s387, %s389
      %p393 = scmp.eq.s32.totalorder %s33, 0
      %p394 = por %p392, %p393
      %p395 = scmp.ne.s32.totalorder %s387, %s389
      %p396 = scmp.eq.s32.totalorder %s38, 1
      %p397 = por %p395, %p396
      %p398 = scmp.ne.s32.totalorder %s389, %s390
      %p399 = scmp.eq.s32.totalorder %s38, 0
      %p400 = por %p398, %p399
      %p401 = scmp.ne.s32.totalorder %s389, %s390
      %p402 = scmp.eq.s32.totalorder %s39, 1
      %p403 = por %p401, %p402
      %p405 = scmp.ne.s32.totalorder %s390, %s404
      %p406 = scmp.eq.s32.totalorder %s39, 0
      %p407 = por %p405, %p406
      %s409 = sadd.s32 %s408, 1
      %p412 = scmp.eq.s32.totalorder %s33, 1
      %p413 = scmp.ne.s32.totalorder %s408, %s410
      %p414 = scmp.eq.s32.totalorder %s33, 0
      %p415 = por %p413, %p414
      %p416 = scmp.ne.s32.totalorder %s408, %s410
      %p417 = scmp.eq.s32.totalorder %s38, 1
      %p418 = por %p416, %p417
      %p419 = scmp.ne.s32.totalorder %s410, %s411
      %p420 = scmp.eq.s32.totalorder %s38, 0
      %p421 = por %p419, %p420
      %p422 = scmp.ne.s32.totalorder %s410, %s411
      %p423 = scmp.eq.s32.totalorder %s39, 1
      %p424 = por %p422, %p423
      %p426 = scmp.ne.s32.totalorder %s411, %s425
      %p427 = scmp.eq.s32.totalorder %s39, 0
      %p428 = por %p426, %p427
      %s429 = ssub.s32 %s33, %s40
      %p430 = scmp.eq.s32.totalorder %s429, 0
      %s432 = sadd.s32 %s431, 1
      %s433 = scalar_select %p430, %s431, %s432
      %p436 = pneg %p430
      %p437 = scmp.eq.s32.totalorder %s33, 1
      %p438 = por %p436, %p437
      %p439 = scmp.ne.s32.totalorder %s431, %s434
      %p440 = scmp.eq.s32.totalorder %s33, 0
      %p441 = por %p439, %p440
      %p442 = scmp.ne.s32.totalorder %s431, %s434
      %p443 = scmp.eq.s32.totalorder %s38, 1
      %p444 = por %p442, %p443
      %p445 = scmp.ne.s32.totalorder %s434, %s435
      %p446 = scmp.eq.s32.totalorder %s38, 0
      %p447 = por %p445, %p446
      %p448 = scmp.ne.s32.totalorder %s434, %s435
      %p449 = scmp.eq.s32.totalorder %s39, 1
      %p450 = por %p448, %p449
      %p452 = scmp.ne.s32.totalorder %s435, %s451
      %p453 = scmp.eq.s32.totalorder %s39, 0
      %p454 = por %p452, %p453
      %p455 = scmp.le.s32.totalorder 1, %s33
      %p456 = scmp.lt.s32.totalorder %s33, 3
      %p457 = pnand %p455, %p456
      %p458 = pneg %p457
      // Predicated region
      $region9: #{adapter_forward.1} parent=5 // pred_check
        _
      $region10: #{adapter_forward.1} parent=5 // pred_check_branch
        %460 = sbr.rel (%p457) target = $region12
      $region11: #{adapter_forward.1} parent=5 // pred_region
        %s461 = ssub.s32 %s33, 1
        // Predicated region
        $region13: #{adapter_forward.1} parent=11 // pred_check
          %p462 = pneg %p106
        $region14: #{adapter_forward.1} parent=11 // pred_check_branch
          %464 = sbr.rel (%p462) target = $region16
        $region15: #{adapter_forward.1} parent=11 // pred_region
          _
        $region16: #{adapter_forward.1} parent=11 // pred_fallthru
          _
        // Predicated region
        $region17: #{adapter_forward.1} parent=11 // pred_check
          %p465 = pneg %p127
        $region18: #{adapter_forward.1} parent=11 // pred_check_branch
          %467 = sbr.rel (%p465) target = $region20
        $region19: #{adapter_forward.1} parent=11 // pred_region
          %s469 = ssub.s32 16, 16
          %470 = vsyncadd [#allocation3], %s469
          %s472 = sshll.u32 [#allocation2], 4
          %s473 = int_to_ptr.vmem [resolvable:$true] %s472
          %475 = dma.hbm_to_vmem [thread:$0]  %s3, 16, %s473, [#allocation3]
        $region20: #{adapter_forward.1} parent=11 // pred_fallthru
          _
        // Predicated region
        $region21: #{adapter_forward.1} parent=11 // pred_check
          %p476 = pneg %p148
        $region22: #{adapter_forward.1} parent=11 // pred_check_branch
          %478 = sbr.rel (%p476) target = $region24
        $region23: #{adapter_forward.1} parent=11 // pred_region
          _
        $region24: #{adapter_forward.1} parent=11 // pred_fallthru
          _
        // Predicated region
        $region25: #{adapter_forward.1} parent=11 // pred_check
          %p479 = pneg %p169
        $region26: #{adapter_forward.1} parent=11 // pred_check_branch
          %481 = sbr.rel (%p479) target = $region28
        $region27: #{adapter_forward.1} parent=11 // pred_region
          %s483 = ssub.s32 96, 96
          %484 = vsyncadd [#allocation6], %s483
          %s485 = sshll.u32 [#allocation5], 4
          %s486 = int_to_ptr.vmem [resolvable:$true] %s485
          %491 = dma.hbm_to_vmem [thread:$0]  %s5, 96, %s486, [#allocation6], 16, 16, 1
        $region28: #{adapter_forward.1} parent=11 // pred_fallthru
          _
        // Predicated region
        $region29: #{adapter_forward.1} parent=11 // pred_check
          %p492 = pneg %p190
        $region30: #{adapter_forward.1} parent=11 // pred_check_branch
          %494 = sbr.rel (%p492) target = $region32
        $region31: #{adapter_forward.1} parent=11 // pred_region
          _
        $region32: #{adapter_forward.1} parent=11 // pred_fallthru
          _
        // Predicated region
        $region33: #{adapter_forward.1} parent=11 // pred_check
          %p495 = pneg %p211
        $region34: #{adapter_forward.1} parent=11 // pred_check_branch
          %497 = sbr.rel (%p495) target = $region36
        $region35: #{adapter_forward.1} parent=11 // pred_region
          %s499 = ssub.s32 32, 32
          %500 = vsyncadd [#allocation6], %s499
          %s501 = sshll.u32 [#allocation7], 4
          %s502 = int_to_ptr.vmem [resolvable:$true] %s501
          %507 = dma.hbm_to_vmem [thread:$0]  %s7, 32, %s502, [#allocation6], 16, 16, 1
        $region36: #{adapter_forward.1} parent=11 // pred_fallthru
          _
        // Predicated region
        $region37: #{adapter_forward.1} parent=11 // pred_check
          %p508 = pneg %p232
        $region38: #{adapter_forward.1} parent=11 // pred_check_branch
          %510 = sbr.rel (%p508) target = $region40
        $region39: #{adapter_forward.1} parent=11 // pred_region
          %s512 = ssub.s32 32, 32
          %513 = vsyncadd [#allocation9], %s512
          %s514 = sshll.u32 [#allocation8], 4
          %s515 = int_to_ptr.vmem [resolvable:$true] %s514
          %520 = dma.hbm_to_vmem [thread:$0]  %s8, 32, %s515, [#allocation9], 16, 16, 1
        $region40: #{adapter_forward.1} parent=11 // pred_fallthru
          _
        // Predicated region
        $region41: #{adapter_forward.1} parent=11 // pred_check
          %p521 = pneg %p253
        $region42: #{adapter_forward.1} parent=11 // pred_check_branch
          %523 = sbr.rel (%p521) target = $region44
        $region43: #{adapter_forward.1} parent=11 // pred_region
          %s525 = ssub.s32 32, 32
          %526 = vsyncadd [#allocation9], %s525
          %s527 = sshll.u32 [#allocation10], 4
          %s528 = int_to_ptr.vmem [resolvable:$true] %s527
          %533 = dma.hbm_to_vmem [thread:$0]  %s9, 32, %s528, [#allocation9], 16, 16, 1
        $region44: #{adapter_forward.1} parent=11 // pred_fallthru
          _
        // Predicated region
        $region45: #{adapter_forward.1} parent=11 // pred_check
          %p534 = pneg %p274
        $region46: #{adapter_forward.1} parent=11 // pred_check_branch
          %536 = sbr.rel (%p534) target = $region48
        $region47: #{adapter_forward.1} parent=11 // pred_region
          _
        $region48: #{adapter_forward.1} parent=11 // pred_fallthru
          _
        // Predicated region
        $region49: #{adapter_forward.1} parent=11 // pred_check
          %p537 = pneg %p295
        $region50: #{adapter_forward.1} parent=11 // pred_check_branch
          %539 = sbr.rel (%p537) target = $region52
        $region51: #{adapter_forward.1} parent=11 // pred_region
          %s541 = ssub.s32 32, 32
          %542 = vsyncadd [#allocation12], %s541
          %s543 = sshll.u32 [#allocation11], 4
          %s544 = int_to_ptr.vmem [resolvable:$true] %s543
          %549 = dma.hbm_to_vmem [thread:$0]  %s11, 32, %s544, [#allocation12], 16, 16, 1
        $region52: #{adapter_forward.1} parent=11 // pred_fallthru
          _
        // Predicated region
        $region53: #{adapter_forward.1} parent=11 // pred_check
          %p550 = pneg %p316
        $region54: #{adapter_forward.1} parent=11 // pred_check_branch
          %552 = sbr.rel (%p550) target = $region56
        $region55: #{adapter_forward.1} parent=11 // pred_region
          _
        $region56: #{adapter_forward.1} parent=11 // pred_fallthru
          _
        // Predicated region
        $region57: #{adapter_forward.1} parent=11 // pred_check
          %p553 = pneg %p337
        $region58: #{adapter_forward.1} parent=11 // pred_check_branch
          %555 = sbr.rel (%p553) target = $region60
        $region59: #{adapter_forward.1} parent=11 // pred_region
          %s557 = ssub.s32 32, 32
          %558 = vsyncadd [#allocation12], %s557
          %s559 = sshll.u32 [#allocation13], 4
          %s560 = int_to_ptr.vmem [resolvable:$true] %s559
          %565 = dma.hbm_to_vmem [thread:$0]  %s13, 32, %s560, [#allocation12], 16, 16, 1
        $region60: #{adapter_forward.1} parent=11 // pred_fallthru
          _
        // Predicated region
        $region61: #{adapter_forward.1} parent=11 // pred_check
          %p566 = pneg %p358
        $region62: #{adapter_forward.1} parent=11 // pred_check_branch
          %568 = sbr.rel (%p566) target = $region64
        $region63: #{adapter_forward.1} parent=11 // pred_region
          %s570 = ssub.s32 32, 32
          %571 = vsyncadd [#allocation15], %s570
          %s572 = sshll.u32 [#allocation14], 4
          %s573 = int_to_ptr.vmem [resolvable:$true] %s572
          %578 = dma.hbm_to_vmem [thread:$0]  %s14, 32, %s573, [#allocation15], 16, 16, 1
        $region64: #{adapter_forward.1} parent=11 // pred_fallthru
          _
        // Predicated region
        $region65: #{adapter_forward.1} parent=11 // pred_check
          %p579 = pneg %p379
        $region66: #{adapter_forward.1} parent=11 // pred_check_branch
          %581 = sbr.rel (%p579) target = $region68
        $region67: #{adapter_forward.1} parent=11 // pred_region
          %s583 = ssub.s32 32, 32
          %584 = vsyncadd [#allocation15], %s583
          %s585 = sshll.u32 [#allocation16], 4
          %s586 = int_to_ptr.vmem [resolvable:$true] %s585
          %591 = dma.hbm_to_vmem [thread:$0]  %s15, 32, %s586, [#allocation15], 16, 16, 1
        $region68: #{adapter_forward.1} parent=11 // pred_fallthru
          _
        // Predicated region
        $region69: #{adapter_forward.1} parent=11 // pred_check
          %p592 = pneg %p400
        $region70: #{adapter_forward.1} parent=11 // pred_check_branch
          %594 = sbr.rel (%p592) target = $region72
        $region71: #{adapter_forward.1} parent=11 // pred_region
          %s596 = ssub.s32 256, 256
          %597 = vsyncadd [#allocation18], %s596
          %s598 = sshll.u32 [#allocation17], 4
          %s599 = int_to_ptr.vmem [resolvable:$true] %s598
          %604 = dma.hbm_to_vmem [thread:$0]  %s16, 256, %s599, [#allocation18], 64, 64, 4
        $region72: #{adapter_forward.1} parent=11 // pred_fallthru
          _
        // Predicated region
        $region73: #{adapter_forward.1} parent=11 // pred_check
          %p605 = pneg %p421
        $region74: #{adapter_forward.1} parent=11 // pred_check_branch
          %607 = sbr.rel (%p605) target = $region76
        $region75: #{adapter_forward.1} parent=11 // pred_region
          %s609 = ssub.s32 16, 16
          %610 = vsyncadd [#allocation18], %s609
          %s612 = sshll.u32 [#allocation19], 4
          %s613 = int_to_ptr.vmem [resolvable:$true] %s612
          %615 = dma.hbm_to_vmem [thread:$0]  %s17, 16, %s613, [#allocation18]
        $region76: #{adapter_forward.1} parent=11 // pred_fallthru
          _
      $region12: #{adapter_forward.1} parent=5 // pred_fallthru
        _
      %p616 = scmp.lt.s32.totalorder %s33, 2
      // Predicated region
      $region77: #{adapter_forward.1} parent=5 // pred_check
        %p617 = pneg %p616
      $region78: #{adapter_forward.1} parent=5 // pred_check_branch
        %619 = sbr.rel (%p617) target = $region80
      $region79: #{adapter_forward.1} parent=5 // pred_region
        // Predicated region
        $region81: #{adapter_forward.1} parent=79 // pred_check
          %p620 = pneg %p53
        $region82: #{adapter_forward.1} parent=79 // pred_check_branch
          %622 = sbr.rel (%p620) target = $region84
        $region83: #{adapter_forward.1} parent=79 // pred_region
          %p623 = scmp.lt.s32.totalorder %s33, 1
          %s624 = scalar_select %p623, %s33, 1
          %s625 = smul.addr %s624, 8
          %s626 = scalar_lea.vmem %s0, %s625
        $region84: #{adapter_forward.1} parent=79 // pred_fallthru
          _
        // Predicated region
        $region85: #{adapter_forward.1} parent=79 // pred_check
          %p627 = pneg %p79
        $region86: #{adapter_forward.1} parent=79 // pred_check_branch
          %629 = sbr.rel (%p627) target = $region88
        $region87: #{adapter_forward.1} parent=79 // pred_region
          %p630 = scmp.lt.s32.totalorder %s33, 1
          %s631 = scalar_select %p630, %s33, 1
          %s632 = scalar_lea.vmem %s1, %s631
        $region88: #{adapter_forward.1} parent=79 // pred_fallthru
          _
      $region80: #{adapter_forward.1} parent=5 // pred_fallthru
        _
      %p633 = scmp.le.s32.totalorder 1, %s33
      %p634 = scmp.lt.s32.totalorder %s33, 3
      %p635 = pnand %p633, %p634
      %p636 = pneg %p635
      // Predicated region
      $region89: #{adapter_forward.1} parent=5 // pred_check
        _
      $region90: #{adapter_forward.1} parent=5 // pred_check_branch
        %638 = sbr.rel (%p635) target = $region92
      $region91: #{adapter_forward.1} parent=5 // pred_region
        %s639 = ssub.s32 %s33, 1
        // Predicated region
        $region93: #{adapter_forward.1} parent=91 // pred_check
          %p640 = pneg %p127
        $region94: #{adapter_forward.1} parent=91 // pred_check_branch
          %642 = sbr.rel (%p640) target = $region96
        $region95: #{adapter_forward.1} parent=91 // pred_region
          %643 = dma.done [#allocation3], 16
        $region96: #{adapter_forward.1} parent=91 // pred_fallthru
          _
        // Predicated region
        $region97: #{adapter_forward.1} parent=91 // pred_check
          %p644 = pneg %p169
        $region98: #{adapter_forward.1} parent=91 // pred_check_branch
          %646 = sbr.rel (%p644) target = $region100
        $region99: #{adapter_forward.1} parent=91 // pred_region
          %647 = dma.done [#allocation6], 96
        $region100: #{adapter_forward.1} parent=91 // pred_fallthru
          _
        // Predicated region
        $region101: #{adapter_forward.1} parent=91 // pred_check
          %p648 = pneg %p211
        $region102: #{adapter_forward.1} parent=91 // pred_check_branch
          %650 = sbr.rel (%p648) target = $region104
        $region103: #{adapter_forward.1} parent=91 // pred_region
          %651 = dma.done [#allocation6], 32
        $region104: #{adapter_forward.1} parent=91 // pred_fallthru
          _
        // Predicated region
        $region105: #{adapter_forward.1} parent=91 // pred_check
          %p652 = pneg %p232
        $region106: #{adapter_forward.1} parent=91 // pred_check_branch
          %654 = sbr.rel (%p652) target = $region108
        $region107: #{adapter_forward.1} parent=91 // pred_region
          %655 = dma.done [#allocation9], 32
        $region108: #{adapter_forward.1} parent=91 // pred_fallthru
          _
        // Predicated region
        $region109: #{adapter_forward.1} parent=91 // pred_check
          %p656 = pneg %p253
        $region110: #{adapter_forward.1} parent=91 // pred_check_branch
          %658 = sbr.rel (%p656) target = $region112
        $region111: #{adapter_forward.1} parent=91 // pred_region
          %659 = dma.done [#allocation9], 32
        $region112: #{adapter_forward.1} parent=91 // pred_fallthru
          _
        // Predicated region
        $region113: #{adapter_forward.1} parent=91 // pred_check
          %p660 = pneg %p295
        $region114: #{adapter_forward.1} parent=91 // pred_check_branch
          %662 = sbr.rel (%p660) target = $region116
        $region115: #{adapter_forward.1} parent=91 // pred_region
          %663 = dma.done [#allocation12], 32
        $region116: #{adapter_forward.1} parent=91 // pred_fallthru
          _
        // Predicated region
        $region117: #{adapter_forward.1} parent=91 // pred_check
          %p664 = pneg %p337
        $region118: #{adapter_forward.1} parent=91 // pred_check_branch
          %666 = sbr.rel (%p664) target = $region120
        $region119: #{adapter_forward.1} parent=91 // pred_region
          %667 = dma.done [#allocation12], 32
        $region120: #{adapter_forward.1} parent=91 // pred_fallthru
          _
        // Predicated region
        $region121: #{adapter_forward.1} parent=91 // pred_check
          %p668 = pneg %p358
        $region122: #{adapter_forward.1} parent=91 // pred_check_branch
          %670 = sbr.rel (%p668) target = $region124
        $region123: #{adapter_forward.1} parent=91 // pred_region
          %671 = dma.done [#allocation15], 32
        $region124: #{adapter_forward.1} parent=91 // pred_fallthru
          _
        // Predicated region
        $region125: #{adapter_forward.1} parent=91 // pred_check
          %p672 = pneg %p379
        $region126: #{adapter_forward.1} parent=91 // pred_check_branch
          %674 = sbr.rel (%p672) target = $region128
        $region127: #{adapter_forward.1} parent=91 // pred_region
          %675 = dma.done [#allocation15], 32
        $region128: #{adapter_forward.1} parent=91 // pred_fallthru
          _
        // Predicated region
        $region129: #{adapter_forward.1} parent=91 // pred_check
          %p676 = pneg %p400
        $region130: #{adapter_forward.1} parent=91 // pred_check_branch
          %678 = sbr.rel (%p676) target = $region132
        $region131: #{adapter_forward.1} parent=91 // pred_region
          %679 = dma.done [#allocation18], 256
        $region132: #{adapter_forward.1} parent=91 // pred_fallthru
          _
        // Predicated region
        $region133: #{adapter_forward.1} parent=91 // pred_check
          %p680 = pneg %p421
        $region134: #{adapter_forward.1} parent=91 // pred_check_branch
          %682 = sbr.rel (%p680) target = $region136
        $region135: #{adapter_forward.1} parent=91 // pred_region
          %683 = dma.done [#allocation18], 16
        $region136: #{adapter_forward.1} parent=91 // pred_fallthru
          _
        %p684 = scmp.lt.s32.totalorder %s38, 1
        %s685 = scalar_select %p684, %s38, 1
        %s686 = smul.addr %s685, 8
        %s687 = scalar_lea.vmem %s0, %s686
        %p688 = pneg %p59
        %p689 = pneg %p56
        %p690 = scmp.lt.s32.totalorder %s38, 1
        %s691 = scalar_select %p690, %s38, 1
        %s692 = scalar_lea.vmem %s1, %s691
        %p693 = pneg %p85
        %p694 = pneg %p82
        %p695 = pneg %p106
        %p696 = pneg %p103
        %p697 = pneg %p127
        %p698 = pneg %p124
        %p699 = pneg %p148
        %p700 = pneg %p145
        %p701 = pneg %p169
        %p702 = pneg %p166
        %p703 = pneg %p190
        %p704 = pneg %p187
        %p705 = pneg %p211
        %p706 = pneg %p208
        %p707 = pneg %p232
        %p708 = pneg %p229
        %p709 = pneg %p253
        %p710 = pneg %p250
        %p711 = pneg %p274
        %p712 = pneg %p271
        %p713 = pneg %p295
        %p714 = pneg %p292
        %p715 = pneg %p316
        %p716 = pneg %p313
        %p717 = pneg %p337
        %p718 = pneg %p334
        %p719 = pneg %p358
        %p720 = pneg %p355
        %p721 = pneg %p379
        %p722 = pneg %p376
        %p723 = pneg %p400
        %p724 = pneg %p397
        %p725 = pneg %p421
        %p726 = pneg %p418
        %p727 = pneg %p447
        %p728 = pneg %p444
        %s729 = sand.u32 %s434, 1
        %s730 = scalar_lea.sflag [#allocation4], %s729
        %s731 = sand.u32 %s434, 1
        %s732 = smul.addr %s731, 8
        %s733 = scalar_lea.vmem [#allocation20], %s732
        %p734 = scmp.lt.s32.totalorder %s38, 1
        %s735 = scalar_select %p734, %s38, 1
        %s736 = smul.addr %s735, 8
        %s737 = scalar_lea.vmem %s0, %s736
        %p738 = scmp.lt.s32.totalorder %s38, 1
        %s739 = scalar_select %p738, %s38, 1
        %s740 = scalar_lea.vmem %s1, %s739
        %v742 = vld [vmem:[%s740] sm:$0x1]
        %v743 = vld [vmem:[%s737] sm:$0xff]
        %v744 = vld [vmem:[%s2] sm:$0xf]
        %v745 = vld [vmem:[%s2 + $0x4] sm:$0xf]
        %v746 = vld [vmem:[%s2 + $0x8] sm:$0xf]
        %v747 = vld [vmem:[%s2 + $0xc] sm:$0xf]
        %v748 = vld [vmem:[%s2 + $0x10] sm:$0xf]
        %v749 = vld [vmem:[%s2 + $0x14] sm:$0xf]
        %v750 = vld [vmem:[%s2 + $0x18] sm:$0xf]
        %v751 = vld [vmem:[%s2 + $0x1c] sm:$0xf]
        %v752 = vld [vmem:[#allocation2] sm:$0x1]
        %v753 = vpack.c.bf16 %v743, %v743
        %v755 = vlaneseq
        %v756 = vshrl.u32 %v755, 7
        %v757 = vsub.s32 0, %v756
        %v758 = vrot.slane %v752, %v757
        %v768 = vunpack.c.l.b16 %v744
        %v769 = vunpack.c.l.b16 %v745
        %v770 = vunpack.c.l.b16 %v746
        %v771 = vunpack.c.l.b16 %v747
        %v772 = vunpack.c.l.b16 %v748
        %v773 = vunpack.c.l.b16 %v749
        %v774 = vunpack.c.l.b16 %v750
        %v775 = vunpack.c.l.b16 %v751
        %v776 = vpack.c.b16 %v769, %v768
        %v777 = vpack.c.b16 %v771, %v770
        %v778 = vpack.c.b16 %v773, %v772
        %v779 = vpack.c.b16 %v775, %v774
        %vm784 = vcmask 523264
        %v786 = vsel %vm784, %v753, 0
        %788 = vmatprep.subr.bf16.mxu0 0
        %789 = vmatpush1.bf16.msra.mxu0 %v776
        %790 = vmatprep.subr.bf16.mxu0 0
        %791 = vmatpush1.bf16.msra.mxu0 %v777
        %792 = vmatprep.subr.bf16.mxu0 0
        %793 = vmatpush1.bf16.msra.mxu0 %v778
        %794 = vmatprep.subr.bf16.mxu0 0
        %795 = vmatpush1.bf16.msra.mxu0 %v779
        %796 = vmatprep.subr.bf16.mxu0 0
        %797 = vmatpush1.bf16.msra.mxu0 0
        %798 = vmatprep.subr.bf16.mxu0 0
        %799 = vmatpush1.bf16.msra.mxu0 0
        %800 = vmatprep.subr.bf16.mxu0 0
        %801 = vmatpush1.bf16.msra.mxu0 0
        %802 = vmatprep.subr.bf16.mxu0 0
        %803 = vmatpush1.bf16.msra.mxu0 0
        %804 = vmatprep.subr.bf16.mxu0 0
        %805 = vmatpush1.bf16.msra.mxu0 0
        %806 = vmatprep.subr.bf16.mxu0 0
        %807 = vmatpush1.bf16.msra.mxu0 0
        %808 = vmatprep.subr.bf16.mxu0 0
        %809 = vmatpush1.bf16.msra.mxu0 0
        %810 = vmatprep.subr.bf16.mxu0 0
        %811 = vmatpush1.bf16.msra.mxu0 0
        %812 = vmatprep.subr.bf16.mxu0 0
        %813 = vmatpush1.bf16.msra.mxu0 0
        %814 = vmatprep.subr.bf16.mxu0 0
        %815 = vmatpush1.bf16.msra.mxu0 0
        %816 = vmatprep.subr.bf16.mxu0 0
        %817 = vmatpush1.bf16.msra.mxu0 0
        %818 = vmatprep.subr.bf16.mxu0 0
        %819 = vmatpush1.bf16.msra.mxu0 0
        %820 = vmatprep.mubr.bf16.mxu0 0
        %821 = vmatmul.mubr.bf16.gmra.mrb[0].mxu0 %v786
        %v822 = vpop.f32.mrb[0].mxu0
        %v823 = vadd.f32 %v758, %v822
        %v824 = vpop.f32.mrb[0].mxu0
        %v825 = vpop.f32.mrb[0].mxu0
        %v826 = vpop.f32.mrb[0].mxu0
        %827 = vdwg.mxu0
        %v828 = vld [vmem:[%s4] sm:$0xf]
        %v829 = vld [vmem:[%s4 + $0x4] sm:$0xf]
        %v830 = vld [vmem:[%s4 + $0x8] sm:$0xf]
        %v831 = vld [vmem:[%s4 + $0xc] sm:$0xf]
        %v832 = vld [vmem:[#allocation5] sm:$0x1]
        %v833 = vpack.c.bf16 %v823, %v823
        %v835 = vlaneseq
        %v836 = vshrl.u32 %v835, 7
        %v837 = vsub.s32 0, %v836
        %v838 = vrot.slane %v832, %v837
        %v844 = vunpack.c.l.b16 %v828
        %v845 = vunpack.c.l.b16 %v829
        %v846 = vunpack.c.l.b16 %v830
        %v847 = vunpack.c.l.b16 %v831
        %v848 = vpack.c.b16 %v845, %v844
        %v849 = vpack.c.b16 %v847, %v846
        %vm852 = vcmask 261120
        %v854 = vsel %vm852, %v833, 0
        %856 = vmatprep.subr.bf16.mxu0 0
        %857 = vmatpush1.bf16.msra.mxu0 %v848
        %858 = vmatprep.subr.bf16.mxu0 0
        %859 = vmatpush1.bf16.msra.mxu0 %v849
        %860 = vmatprep.subr.bf16.mxu0 0
        %861 = vmatpush1.bf16.msra.mxu0 0
        %862 = vmatprep.subr.bf16.mxu0 0
        %863 = vmatpush1.bf16.msra.mxu0 0
        %864 = vmatprep.subr.bf16.mxu0 0
        %865 = vmatpush1.bf16.msra.mxu0 0
        %866 = vmatprep.subr.bf16.mxu0 0
        %867 = vmatpush1.bf16.msra.mxu0 0
        %868 = vmatprep.subr.bf16.mxu0 0
        %869 = vmatpush1.bf16.msra.mxu0 0
        %870 = vmatprep.subr.bf16.mxu0 0
        %871 = vmatpush1.bf16.msra.mxu0 0
        %872 = vmatprep.subr.bf16.mxu0 0
        %873 = vmatpush1.bf16.msra.mxu0 0
        %874 = vmatprep.subr.bf16.mxu0 0
        %875 = vmatpush1.bf16.msra.mxu0 0
        %876 = vmatprep.subr.bf16.mxu0 0
        %877 = vmatpush1.bf16.msra.mxu0 0
        %878 = vmatprep.subr.bf16.mxu0 0
        %879 = vmatpush1.bf16.msra.mxu0 0
        %880 = vmatprep.subr.bf16.mxu0 0
        %881 = vmatpush1.bf16.msra.mxu0 0
        %882 = vmatprep.subr.bf16.mxu0 0
        %883 = vmatpush1.bf16.msra.mxu0 0
        %884 = vmatprep.subr.bf16.mxu0 0
        %885 = vmatpush1.bf16.msra.mxu0 0
        %886 = vmatprep.subr.bf16.mxu0 0
        %887 = vmatpush1.bf16.msra.mxu0 0
        %888 = vmatprep.mubr.bf16.mxu0 0
        %889 = vmatmul.mubr.bf16.gmra.mrb[0].mxu0 %v854
        %v890 = vpop.f32.mrb[0].mxu0
        %v891 = vadd.f32 %v838, %v890
        %v892 = vpop.f32.mrb[0].mxu0
        %v893 = vpop.f32.mrb[0].mxu0
        %v894 = vpop.f32.mrb[0].mxu0
        %895 = vdwg.mxu0
        %s896 = scalar_lea.vmem %s4, 16
        %v897 = vld [vmem:[%s896] sm:$0xf]
        %v898 = vld [vmem:[%s896 + $0x4] sm:$0xf]
        %v899 = vld [vmem:[%s896 + $0x8] sm:$0xf]
        %v900 = vld [vmem:[%s896 + $0xc] sm:$0xf]
        %s901 = scalar_lea.vmem [#allocation5], 1
        %v902 = vld [vmem:[%s901] sm:$0x1]
        %v904 = vlaneseq
        %v905 = vshrl.u32 %v904, 7
        %v906 = vsub.s32 0, %v905
        %v907 = vrot.slane %v902, %v906
        %v913 = vunpack.c.l.b16 %v897
        %v914 = vunpack.c.l.b16 %v898
        %v915 = vunpack.c.l.b16 %v899
        %v916 = vunpack.c.l.b16 %v900
        %v917 = vpack.c.b16 %v914, %v913
        %v918 = vpack.c.b16 %v916, %v915
        %921 = vmatprep.subr.bf16.mxu0 0
        %922 = vmatpush1.bf16.msra.mxu0 %v917
        %923 = vmatprep.subr.bf16.mxu0 0
        %924 = vmatpush1.bf16.msra.mxu0 %v918
        %925 = vmatprep.subr.bf16.mxu0 0
        %926 = vmatpush1.bf16.msra.mxu0 0
        %927 = vmatprep.subr.bf16.mxu0 0
        %928 = vmatpush1.bf16.msra.mxu0 0
        %929 = vmatprep.subr.bf16.mxu0 0
        %930 = vmatpush1.bf16.msra.mxu0 0
        %931 = vmatprep.subr.bf16.mxu0 0
        %932 = vmatpush1.bf16.msra.mxu0 0
        %933 = vmatprep.subr.bf16.mxu0 0
        %934 = vmatpush1.bf16.msra.mxu0 0
        %935 = vmatprep.subr.bf16.mxu0 0
        %936 = vmatpush1.bf16.msra.mxu0 0
        %937 = vmatprep.subr.bf16.mxu0 0
        %938 = vmatpush1.bf16.msra.mxu0 0
        %939 = vmatprep.subr.bf16.mxu0 0
        %940 = vmatpush1.bf16.msra.mxu0 0
        %941 = vmatprep.subr.bf16.mxu0 0
        %942 = vmatpush1.bf16.msra.mxu0 0
        %943 = vmatprep.subr.bf16.mxu0 0
        %944 = vmatpush1.bf16.msra.mxu0 0
        %945 = vmatprep.subr.bf16.mxu0 0
        %946 = vmatpush1.bf16.msra.mxu0 0
        %947 = vmatprep.subr.bf16.mxu0 0
        %948 = vmatpush1.bf16.msra.mxu0 0
        %949 = vmatprep.subr.bf16.mxu0 0
        %950 = vmatpush1.bf16.msra.mxu0 0
        %951 = vmatprep.subr.bf16.mxu0 0
        %952 = vmatpush1.bf16.msra.mxu0 0
        %953 = vmatprep.mubr.bf16.mxu0 0
        %954 = vmatmul.mubr.bf16.gmra.mrb[0].mxu0 %v854
        %v955 = vpop.f32.mrb[0].mxu0
        %v956 = vadd.f32 %v907, %v955
        %v957 = vpop.f32.mrb[0].mxu0
        %v958 = vpop.f32.mrb[0].mxu0
        %v959 = vpop.f32.mrb[0].mxu0
        %960 = vdwg.mxu0
        %s961 = scalar_lea.vmem %s4, 32
        %v962 = vld [vmem:[%s961] sm:$0xf]
        %v963 = vld [vmem:[%s961 + $0x4] sm:$0xf]
        %v964 = vld [vmem:[%s961 + $0x8] sm:$0xf]
        %v965 = vld [vmem:[%s961 + $0xc] sm:$0xf]
        %s966 = scalar_lea.vmem [#allocation5], 2
        %v967 = vld [vmem:[%s966] sm:$0x1]
        %v969 = vlaneseq
        %v970 = vshrl.u32 %v969, 7
        %v971 = vsub.s32 0, %v970
        %v972 = vrot.slane %v967, %v971
        %v978 = vunpack.c.l.b16 %v962
        %v979 = vunpack.c.l.b16 %v963
        %v980 = vunpack.c.l.b16 %v964
        %v981 = vunpack.c.l.b16 %v965
        %v982 = vpack.c.b16 %v979, %v978
        %v983 = vpack.c.b16 %v981, %v980
        %986 = vmatprep.subr.bf16.mxu0 0
        %987 = vmatpush1.bf16.msra.mxu0 %v982
        %988 = vmatprep.subr.bf16.mxu0 0
        %989 = vmatpush1.bf16.msra.mxu0 %v983
        %990 = vmatprep.subr.bf16.mxu0 0
        %991 = vmatpush1.bf16.msra.mxu0 0
        %992 = vmatprep.subr.bf16.mxu0 0
        %993 = vmatpush1.bf16.msra.mxu0 0
        %994 = vmatprep.subr.bf16.mxu0 0
        %995 = vmatpush1.bf16.msra.mxu0 0
        %996 = vmatprep.subr.bf16.mxu0 0
        %997 = vmatpush1.bf16.msra.mxu0 0
        %998 = vmatprep.subr.bf16.mxu0 0
        %999 = vmatpush1.bf16.msra.mxu0 0
        %1000 = vmatprep.subr.bf16.mxu0 0
        %1001 = vmatpush1.bf16.msra.mxu0 0
        %1002 = vmatprep.subr.bf16.mxu0 0
        %1003 = vmatpush1.bf16.msra.mxu0 0
        %1004 = vmatprep.subr.bf16.mxu0 0
        %1005 = vmatpush1.bf16.msra.mxu0 0
        %1006 = vmatprep.subr.bf16.mxu0 0
        %1007 = vmatpush1.bf16.msra.mxu0 0
        %1008 = vmatprep.subr.bf16.mxu0 0
        %1009 = vmatpush1.bf16.msra.mxu0 0
        %1010 = vmatprep.subr.bf16.mxu0 0
        %1011 = vmatpush1.bf16.msra.mxu0 0
        %1012 = vmatprep.subr.bf16.mxu0 0
        %1013 = vmatpush1.bf16.msra.mxu0 0
        %1014 = vmatprep.subr.bf16.mxu0 0
        %1015 = vmatpush1.bf16.msra.mxu0 0
        %1016 = vmatprep.subr.bf16.mxu0 0
        %1017 = vmatpush1.bf16.msra.mxu0 0
        %1018 = vmatprep.mubr.bf16.mxu0 0
        %1019 = vmatmul.mubr.bf16.gmra.mrb[0].mxu0 %v854
        %v1020 = vpop.f32.mrb[0].mxu0
        %v1021 = vadd.f32 %v972, %v1020
        %v1022 = vpop.f32.mrb[0].mxu0
        %v1023 = vpop.f32.mrb[0].mxu0
        %v1024 = vpop.f32.mrb[0].mxu0
        %1025 = vdwg.mxu0
        %v1026 = vld [vmem:[%s6] sm:$0xf]
        %v1027 = vld [vmem:[%s6 + $0x4] sm:$0xf]
        %v1028 = vld [vmem:[%s6 + $0x8] sm:$0xf]
        %v1029 = vld [vmem:[%s6 + $0xc] sm:$0xf]
        %v1030 = vpack.c.bf16 %v891, %v891
        %v1031 = vpack.c.bf16 %v956, %v956
        %v1032 = vpack.c.bf16 %v1021, %v1021
        %vm1033 = vcmask 130048
        %v1035 = vsel %vm1033, %v1030, 0
        %v1038 = vsel %vm1033, %v1031, 0
        %1040 = vmatprep.subr.bf16.mxu0 0
        %1041 = vmatpush1.bf16.xpose.msra.mxu0 %v1038
        %1042 = vmatprep.subr.bf16.mxu0 0
        %1043 = vmatpush1.bf16.xpose.msra.mxu0 0
        %1044 = vmatprep.subr.bf16.mxu0 0
        %1045 = vmatpush1.bf16.xpose.msra.mxu0 0
        %1046 = vmatprep.subr.bf16.mxu0 0
        %1047 = vmatpush1.bf16.xpose.msra.mxu0 0
        %1048 = vmatprep.subr.bf16.mxu0 0
        %1049 = vmatpush1.bf16.xpose.msra.mxu0 0
        %1050 = vmatprep.subr.bf16.mxu0 0
        %1051 = vmatpush1.bf16.xpose.msra.mxu0 0
        %1052 = vmatprep.subr.bf16.mxu0 0
        %1053 = vmatpush1.bf16.xpose.msra.mxu0 0
        %1054 = vmatprep.subr.bf16.mxu0 0
        %1055 = vmatpush1.bf16.xpose.msra.mxu0 0
        %1056 = vmatprep.subr.bf16.mxu0 0
        %1057 = vmatpush1.bf16.xpose.msra.mxu0 0
        %1058 = vmatprep.subr.bf16.mxu0 0
        %1059 = vmatpush1.bf16.xpose.msra.mxu0 0
        %1060 = vmatprep.subr.bf16.mxu0 0
        %1061 = vmatpush1.bf16.xpose.msra.mxu0 0
        %1062 = vmatprep.subr.bf16.mxu0 0
        %1063 = vmatpush1.bf16.xpose.msra.mxu0 0
        %1064 = vmatprep.subr.bf16.mxu0 0
        %1065 = vmatpush1.bf16.xpose.msra.mxu0 0
        %1066 = vmatprep.subr.bf16.mxu0 0
        %1067 = vmatpush1.bf16.xpose.msra.mxu0 0
        %1068 = vmatprep.subr.bf16.mxu0 0
        %1069 = vmatpush1.bf16.xpose.msra.mxu0 0
        %1070 = vmatprep.subr.bf16.mxu0 0
        %1071 = vmatpush1.bf16.xpose.msra.mxu0 0
        %1072 = vmatprep.mubr.bf16.mxu0 0
        %1073 = vmatmul.mubr.bf16.gmra.mrb[0].mxu0 %v1035
        %v1074 = vpop.f32.mrb[0].mxu0
        %v1075 = vadd.f32 0.0, %v1074
        %v1076 = vpop.f32.mrb[0].mxu0
        %v1077 = vpop.f32.mrb[0].mxu0
        %v1078 = vpop.f32.mrb[0].mxu0
        %1079 = vdwg.mxu0
        %v1080 = vmul.f32 %v1075, 0.25
        %v1082 = vlaneseq
        %v1083 = vshrl.u32 %v1082, 7
        %v1084 = vsub.s32 0, %v1083
        %v1085 = vrot.slane %v742, %v1084
        %v1087 = vadd.f32 %v1080, %v1085
        %vm1088 = vcmask 64512
        %v1089 = vsel %vm1088, %v1087, -inf
        %1090 = vmax.xlane.f32.xlu0 %v1089
        %v1091 = vpop.xlane.xlu0 %1090
        %v1092 = vsub.f32 %v1087, %v1091
        %v1093 = vmul.f32 %v1092, 1.442695
        %v1094 = vpow.pop %v1093
        %v1095 = vsel %vm1088, %v1094, 0.0
        %1096 = vadd.xlane.f32.xlu0 %v1095
        %v1097 = vpop.xlane.xlu0 %1096
        %v1098 = vrcp.pop %v1097
        %v1099 = vmul.f32 %v1094, %v1098
        %v1100 = vpack.c.bf16 %v1099, %v1099
        %v1102 = vsel %vm1088, %v1100, 0
        %vm1104 = vcmask 1043456
        %v1106 = vsel %vm1104, %v1032, 0
        %1108 = vmatprep.subr.bf16.mxu0 0
        %1109 = vmatpush1.bf16.msra.mxu0 %v1106
        %1110 = vmatprep.subr.bf16.mxu0 0
        %1111 = vmatpush1.bf16.msra.mxu0 0
        %1112 = vmatprep.subr.bf16.mxu0 0
        %1113 = vmatpush1.bf16.msra.mxu0 0
        %1114 = vmatprep.subr.bf16.mxu0 0
        %1115 = vmatpush1.bf16.msra.mxu0 0
        %1116 = vmatprep.subr.bf16.mxu0 0
        %1117 = vmatpush1.bf16.msra.mxu0 0
        %1118 = vmatprep.subr.bf16.mxu0 0
        %1119 = vmatpush1.bf16.msra.mxu0 0
        %1120 = vmatprep.subr.bf16.mxu0 0
        %1121 = vmatpush1.bf16.msra.mxu0 0
        %1122 = vmatprep.subr.bf16.mxu0 0
        %1123 = vmatpush1.bf16.msra.mxu0 0
        %1124 = vmatprep.subr.bf16.mxu0 0
        %1125 = vmatpush1.bf16.msra.mxu0 0
        %1126 = vmatprep.subr.bf16.mxu0 0
        %1127 = vmatpush1.bf16.msra.mxu0 0
        %1128 = vmatprep.subr.bf16.mxu0 0
        %1129 = vmatpush1.bf16.msra.mxu0 0
        %1130 = vmatprep.subr.bf16.mxu0 0
        %1131 = vmatpush1.bf16.msra.mxu0 0
        %1132 = vmatprep.subr.bf16.mxu0 0
        %1133 = vmatpush1.bf16.msra.mxu0 0
        %1134 = vmatprep.subr.bf16.mxu0 0
        %1135 = vmatpush1.bf16.msra.mxu0 0
        %1136 = vmatprep.subr.bf16.mxu0 0
        %1137 = vmatpush1.bf16.msra.mxu0 0
        %1138 = vmatprep.subr.bf16.mxu0 0
        %1139 = vmatpush1.bf16.msra.mxu0 0
        %1140 = vmatprep.mubr.bf16.mxu0 0
        %1141 = vmatmul.mubr.bf16.gmra.mrb[0].mxu0 %v1102
        %v1142 = vpop.f32.mrb[0].mxu0
        %v1143 = vadd.f32 0.0, %v1142
        %v1144 = vpop.f32.mrb[0].mxu0
        %v1145 = vpop.f32.mrb[0].mxu0
        %v1146 = vpop.f32.mrb[0].mxu0
        %1147 = vdwg.mxu0
        %v1148 = vpack.c.bf16 %v1143, %v1143
        %1150 = vrot.lane.b32.xlu0 %v1030, 112
        %v1151 = vpop.permute.xlu0 %1150
        %1153 = vrot.lane.b32.xlu0 %v1031, 112
        %v1154 = vpop.permute.xlu0 %1153
        %v1156 = vsel %vm1033, %v1151, 0
        %v1159 = vsel %vm1033, %v1154, 0
        %1161 = vmatprep.subr.bf16.mxu0 0
        %1162 = vmatpush1.bf16.xpose.msra.mxu0 %v1159
        %1163 = vmatprep.subr.bf16.mxu0 0
        %1164 = vmatpush1.bf16.xpose.msra.mxu0 0
        %1165 = vmatprep.subr.bf16.mxu0 0
        %1166 = vmatpush1.bf16.xpose.msra.mxu0 0
        %1167 = vmatprep.subr.bf16.mxu0 0
        %1168 = vmatpush1.bf16.xpose.msra.mxu0 0
        %1169 = vmatprep.subr.bf16.mxu0 0
        %1170 = vmatpush1.bf16.xpose.msra.mxu0 0
        %1171 = vmatprep.subr.bf16.mxu0 0
        %1172 = vmatpush1.bf16.xpose.msra.mxu0 0
        %1173 = vmatprep.subr.bf16.mxu0 0
        %1174 = vmatpush1.bf16.xpose.msra.mxu0 0
        %1175 = vmatprep.subr.bf16.mxu0 0
        %1176 = vmatpush1.bf16.xpose.msra.mxu0 0
        %1177 = vmatprep.subr.bf16.mxu0 0
        %1178 = vmatpush1.bf16.xpose.msra.mxu0 0
        %1179 = vmatprep.subr.bf16.mxu0 0
        %1180 = vmatpush1.bf16.xpose.msra.mxu0 0
        %1181 = vmatprep.subr.bf16.mxu0 0
        %1182 = vmatpush1.bf16.xpose.msra.mxu0 0
        %1183 = vmatprep.subr.bf16.mxu0 0
        %1184 = vmatpush1.bf16.xpose.msra.mxu0 0
        %1185 = vmatprep.subr.bf16.mxu0 0
        %1186 = vmatpush1.bf16.xpose.msra.mxu0 0
        %1187 = vmatprep.subr.bf16.mxu0 0
        %1188 = vmatpush1.bf16.xpose.msra.mxu0 0
        %1189 = vmatprep.subr.bf16.mxu0 0
        %1190 = vmatpush1.bf16.xpose.msra.mxu0 0
        %1191 = vmatprep.subr.bf16.mxu0 0
        %1192 = vmatpush1.bf16.xpose.msra.mxu0 0
        %1193 = vmatprep.mubr.bf16.mxu0 0
        %1194 = vmatmul.mubr.bf16.gmra.mrb[0].mxu0 %v1156
        %v1195 = vpop.f32.mrb[0].mxu0
        %v1196 = vadd.f32 0.0, %v1195
        %v1197 = vpop.f32.mrb[0].mxu0
        %v1198 = vpop.f32.mrb[0].mxu0
        %v1199 = vpop.f32.mrb[0].mxu0
        %1200 = vdwg.mxu0
        %v1201 = vmul.f32 %v1196, 0.25
        %v1202 = vadd.f32 %v1201, %v1085
        %v1203 = vsel %vm1088, %v1202, -inf
        %1204 = vmax.xlane.f32.xlu0 %v1203
        %v1205 = vpop.xlane.xlu0 %1204
        %v1206 = vsub.f32 %v1202, %v1205
        %v1207 = vmul.f32 %v1206, 1.442695
        %v1208 = vpow.pop %v1207
        %v1209 = vsel %vm1088, %v1208, 0.0
        %1210 = vadd.xlane.f32.xlu0 %v1209
        %v1211 = vpop.xlane.xlu0 %1210
        %v1212 = vrcp.pop %v1211
        %v1213 = vmul.f32 %v1208, %v1212
        %v1214 = vpack.c.bf16 %v1213, %v1213
        %1216 = vrot.lane.b32.xlu0 %v1032, 112
        %v1217 = vpop.permute.xlu0 %1216
        %v1219 = vsel %vm1088, %v1214, 0
        %v1222 = vsel %vm1104, %v1217, 0
        %1224 = vmatprep.subr.bf16.mxu0 0
        %1225 = vmatpush1.bf16.msra.mxu0 %v1222
        %1226 = vmatprep.subr.bf16.mxu0 0
        %1227 = vmatpush1.bf16.msra.mxu0 0
        %1228 = vmatprep.subr.bf16.mxu0 0
        %1229 = vmatpush1.bf16.msra.mxu0 0
        %1230 = vmatprep.subr.bf16.mxu0 0
        %1231 = vmatpush1.bf16.msra.mxu0 0
        %1232 = vmatprep.subr.bf16.mxu0 0
        %1233 = vmatpush1.bf16.msra.mxu0 0
        %1234 = vmatprep.subr.bf16.mxu0 0
        %1235 = vmatpush1.bf16.msra.mxu0 0
        %1236 = vmatprep.subr.bf16.mxu0 0
        %1237 = vmatpush1.bf16.msra.mxu0 0
        %1238 = vmatprep.subr.bf16.mxu0 0
        %1239 = vmatpush1.bf16.msra.mxu0 0
        %1240 = vmatprep.subr.bf16.mxu0 0
        %1241 = vmatpush1.bf16.msra.mxu0 0
        %1242 = vmatprep.subr.bf16.mxu0 0
        %1243 = vmatpush1.bf16.msra.mxu0 0
        %1244 = vmatprep.subr.bf16.mxu0 0
        %1245 = vmatpush1.bf16.msra.mxu0 0
        %1246 = vmatprep.subr.bf16.mxu0 0
        %1247 = vmatpush1.bf16.msra.mxu0 0
        %1248 = vmatprep.subr.bf16.mxu0 0
        %1249 = vmatpush1.bf16.msra.mxu0 0
        %1250 = vmatprep.subr.bf16.mxu0 0
        %1251 = vmatpush1.bf16.msra.mxu0 0
        %1252 = vmatprep.subr.bf16.mxu0 0
        %1253 = vmatpush1.bf16.msra.mxu0 0
        %1254 = vmatprep.subr.bf16.mxu0 0
        %1255 = vmatpush1.bf16.msra.mxu0 0
        %1256 = vmatprep.mubr.bf16.mxu0 0
        %1257 = vmatmul.mubr.bf16.gmra.mrb[0].mxu0 %v1219
        %v1258 = vpop.f32.mrb[0].mxu0
        %v1259 = vadd.f32 0.0, %v1258
        %v1260 = vpop.f32.mrb[0].mxu0
        %v1261 = vpop.f32.mrb[0].mxu0
        %v1262 = vpop.f32.mrb[0].mxu0
        %1263 = vdwg.mxu0
        %v1264 = vpack.c.bf16 %v1259, %v1259
        %v1267 = vunpack.c.l.b16 %v1028
        %v1268 = vunpack.c.l.b16 %v1029
        %v1269 = vpack.c.b16 %v1268, %v1267
        %v1272 = vsel %vm1033, %v1264, 0
        %1274 = vmatprep.subr.bf16.mxu0 0
        %1275 = vmatpush1.bf16.msra.mxu0 %v1269
        %1276 = vmatprep.subr.bf16.mxu0 0
        %1277 = vmatpush1.bf16.msra.mxu0 0
        %1278 = vmatprep.subr.bf16.mxu0 0
        %1279 = vmatpush1.bf16.msra.mxu0 0
        %1280 = vmatprep.subr.bf16.mxu0 0
        %1281 = vmatpush1.bf16.msra.mxu0 0
        %1282 = vmatprep.subr.bf16.mxu0 0
        %1283 = vmatpush1.bf16.msra.mxu0 0
        %1284 = vmatprep.subr.bf16.mxu0 0
        %1285 = vmatpush1.bf16.msra.mxu0 0
        %1286 = vmatprep.subr.bf16.mxu0 0
        %1287 = vmatpush1.bf16.msra.mxu0 0
        %1288 = vmatprep.subr.bf16.mxu0 0
        %1289 = vmatpush1.bf16.msra.mxu0 0
        %1290 = vmatprep.subr.bf16.mxu0 0
        %1291 = vmatpush1.bf16.msra.mxu0 0
        %1292 = vmatprep.subr.bf16.mxu0 0
        %1293 = vmatpush1.bf16.msra.mxu0 0
        %1294 = vmatprep.subr.bf16.mxu0 0
        %1295 = vmatpush1.bf16.msra.mxu0 0
        %1296 = vmatprep.subr.bf16.mxu0 0
        %1297 = vmatpush1.bf16.msra.mxu0 0
        %1298 = vmatprep.subr.bf16.mxu0 0
        %1299 = vmatpush1.bf16.msra.mxu0 0
        %1300 = vmatprep.subr.bf16.mxu0 0
        %1301 = vmatpush1.bf16.msra.mxu0 0
        %1302 = vmatprep.subr.bf16.mxu0 0
        %1303 = vmatpush1.bf16.msra.mxu0 0
        %1304 = vmatprep.subr.bf16.mxu0 0
        %1305 = vmatpush1.bf16.msra.mxu0 0
        %1306 = vmatprep.mubr.bf16.mxu0 0
        %1307 = vmatmul.mubr.bf16.gmra.mrb[0].mxu0 %v1272
        %v1308 = vpop.f32.mrb[0].mxu0
        %v1309 = vadd.f32 0.0, %v1308
        %v1310 = vpop.f32.mrb[0].mxu0
        %v1311 = vpop.f32.mrb[0].mxu0
        %v1312 = vpop.f32.mrb[0].mxu0
        %1313 = vdwg.mxu0
        %v1316 = vunpack.c.l.b16 %v1026
        %v1317 = vunpack.c.l.b16 %v1027
        %v1318 = vpack.c.b16 %v1317, %v1316
        %v1321 = vsel %vm1033, %v1148, 0
        %1323 = vmatprep.subr.bf16.mxu0 0
        %1324 = vmatpush1.bf16.msra.mxu0 %v1318
        %1325 = vmatprep.subr.bf16.mxu0 0
        %1326 = vmatpush1.bf16.msra.mxu0 0
        %1327 = vmatprep.subr.bf16.mxu0 0
        %1328 = vmatpush1.bf16.msra.mxu0 0
        %1329 = vmatprep.subr.bf16.mxu0 0
        %1330 = vmatpush1.bf16.msra.mxu0 0
        %1331 = vmatprep.subr.bf16.mxu0 0
        %1332 = vmatpush1.bf16.msra.mxu0 0
        %1333 = vmatprep.subr.bf16.mxu0 0
        %1334 = vmatpush1.bf16.msra.mxu0 0
        %1335 = vmatprep.subr.bf16.mxu0 0
        %1336 = vmatpush1.bf16.msra.mxu0 0
        %1337 = vmatprep.subr.bf16.mxu0 0
        %1338 = vmatpush1.bf16.msra.mxu0 0
        %1339 = vmatprep.subr.bf16.mxu0 0
        %1340 = vmatpush1.bf16.msra.mxu0 0
        %1341 = vmatprep.subr.bf16.mxu0 0
        %1342 = vmatpush1.bf16.msra.mxu0 0
        %1343 = vmatprep.subr.bf16.mxu0 0
        %1344 = vmatpush1.bf16.msra.mxu0 0
        %1345 = vmatprep.subr.bf16.mxu0 0
        %1346 = vmatpush1.bf16.msra.mxu0 0
        %1347 = vmatprep.subr.bf16.mxu0 0
        %1348 = vmatpush1.bf16.msra.mxu0 0
        %1349 = vmatprep.subr.bf16.mxu0 0
        %1350 = vmatpush1.bf16.msra.mxu0 0
        %1351 = vmatprep.subr.bf16.mxu0 0
        %1352 = vmatpush1.bf16.msra.mxu0 0
        %1353 = vmatprep.subr.bf16.mxu0 0
        %1354 = vmatpush1.bf16.msra.mxu0 0
        %1355 = vmatprep.mubr.bf16.mxu0 0
        %1356 = vmatmul.mubr.bf16.gmra.mrb[0].mxu0 %v1321
        %v1357 = vpop.f32.mrb[0].mxu0
        %v1358 = vadd.f32 %v1309, %v1357
        %v1359 = vpop.f32.mrb[0].mxu0
        %v1360 = vpop.f32.mrb[0].mxu0
        %v1361 = vpop.f32.mrb[0].mxu0
        %1362 = vdwg.mxu0
        %v1363 = vld [vmem:[#allocation7] sm:$0x1]
        %v1365 = vlaneseq
        %v1366 = vshrl.u32 %v1365, 7
        %v1367 = vsub.s32 0, %v1366
        %v1368 = vrot.slane %v1363, %v1367
        %v1370 = vadd.f32 %v1358, %v1368
        %v1371 = vadd.f32 %v1370, %v823
        %v1372 = vld [vmem:[#allocation8] sm:$0x1]
        %v1373 = vld [vmem:[#allocation10] sm:$0x1]
        %v1374 = vsel %vm852, %v1371, 0.0
        %1375 = vadd.xlane.f32.xlu0 %v1374
        %v1376 = vpop.xlane.xlu0 %1375
        %v1377 = vrcp.pop 32.0
        %v1378 = vmul.f32 %v1376, %v1377
        %v1379 = vsub.f32 %v1371, %v1378
        %v1380 = vmul.f32 %v1379, %v1379
        %v1381 = vsel %vm852, %v1380, 0.0
        %1382 = vadd.xlane.f32.xlu0 %v1381
        %v1383 = vpop.xlane.xlu0 %1382
        %v1384 = vmul.f32 %v1383, %v1377
        %v1385 = vadd.f32 %v1384, 1e-12
        %v1386 = vrsqrt.pop %v1385
        %v1387 = vmul.f32 %v1379, %v1386
        %v1389 = vlaneseq
        %v1390 = vshrl.u32 %v1389, 7
        %v1391 = vsub.s32 0, %v1390
        %v1392 = vrot.slane %v1372, %v1391
        %v1394 = vmul.f32 %v1387, %v1392
        %v1396 = vlaneseq
        %v1397 = vshrl.u32 %v1396, 7
        %v1398 = vsub.s32 0, %v1397
        %v1399 = vrot.slane %v1373, %v1398
        %v1401 = vadd.f32 %v1394, %v1399
        %v1402 = vld [vmem:[%s10] sm:$0xf]
        %v1403 = vld [vmem:[%s10 + $0x4] sm:$0xf]
        %v1404 = vld [vmem:[%s10 + $0x8] sm:$0xf]
        %v1405 = vld [vmem:[%s10 + $0xc] sm:$0xf]
        %v1406 = vld [vmem:[#allocation11] sm:$0x1]
        %v1407 = vpack.c.bf16 %v1401, %v1401
        %v1409 = vlaneseq
        %v1410 = vshrl.u32 %v1409, 7
        %v1411 = vsub.s32 0, %v1410
        %v1412 = vrot.slane %v1406, %v1411
        %v1418 = vunpack.c.l.b16 %v1402
        %v1419 = vunpack.c.l.b16 %v1403
        %v1420 = vunpack.c.l.b16 %v1404
        %v1421 = vunpack.c.l.b16 %v1405
        %v1422 = vpack.c.b16 %v1419, %v1418
        %v1423 = vpack.c.b16 %v1421, %v1420
        %v1427 = vsel %vm852, %v1407, 0
        %1429 = vmatprep.subr.bf16.mxu0 0
        %1430 = vmatpush1.bf16.msra.mxu0 %v1422
        %1431 = vmatprep.subr.bf16.mxu0 0
        %1432 = vmatpush1.bf16.msra.mxu0 %v1423
        %1433 = vmatprep.subr.bf16.mxu0 0
        %1434 = vmatpush1.bf16.msra.mxu0 0
        %1435 = vmatprep.subr.bf16.mxu0 0
        %1436 = vmatpush1.bf16.msra.mxu0 0
        %1437 = vmatprep.subr.bf16.mxu0 0
        %1438 = vmatpush1.bf16.msra.mxu0 0
        %1439 = vmatprep.subr.bf16.mxu0 0
        %1440 = vmatpush1.bf16.msra.mxu0 0
        %1441 = vmatprep.subr.bf16.mxu0 0
        %1442 = vmatpush1.bf16.msra.mxu0 0
        %1443 = vmatprep.subr.bf16.mxu0 0
        %1444 = vmatpush1.bf16.msra.mxu0 0
        %1445 = vmatprep.subr.bf16.mxu0 0
        %1446 = vmatpush1.bf16.msra.mxu0 0
        %1447 = vmatprep.subr.bf16.mxu0 0
        %1448 = vmatpush1.bf16.msra.mxu0 0
        %1449 = vmatprep.subr.bf16.mxu0 0
        %1450 = vmatpush1.bf16.msra.mxu0 0
        %1451 = vmatprep.subr.bf16.mxu0 0
        %1452 = vmatpush1.bf16.msra.mxu0 0
        %1453 = vmatprep.subr.bf16.mxu0 0
        %1454 = vmatpush1.bf16.msra.mxu0 0
        %1455 = vmatprep.subr.bf16.mxu0 0
        %1456 = vmatpush1.bf16.msra.mxu0 0
        %1457 = vmatprep.subr.bf16.mxu0 0
        %1458 = vmatpush1.bf16.msra.mxu0 0
        %1459 = vmatprep.subr.bf16.mxu0 0
        %1460 = vmatpush1.bf16.msra.mxu0 0
        %1461 = vmatprep.mubr.bf16.mxu0 0
        %1462 = vmatmul.mubr.bf16.gmra.mrb[0].mxu0 %v1427
        %v1463 = vpop.f32.mrb[0].mxu0
        %v1464 = vadd.f32 %v1412, %v1463
        %v1465 = vpop.f32.mrb[0].mxu0
        %v1466 = vpop.f32.mrb[0].mxu0
        %v1467 = vpop.f32.mrb[0].mxu0
        %1468 = vdwg.mxu0
        %v1469 = vmul.f32 %v1464, 0.5
        %v1470 = vmul.f32 %v1464, 0.044715
        %v1471 = vmul.f32 %v1470, %v1464
        %v1472 = vmul.f32 %v1471, %v1464
        %v1473 = vadd.f32 %v1464, %v1472
        %v1474 = vmul.f32 %v1473, 0.7978846
        %v1475 = vtanh.pop %v1474
        %v1476 = vadd.f32 %v1475, 1.0
        %v1477 = vmul.f32 %v1469, %v1476
        %v1478 = vld [vmem:[%s12] sm:$0xf]
        %v1479 = vld [vmem:[%s12 + $0x4] sm:$0xf]
        %v1480 = vld [vmem:[%s12 + $0x8] sm:$0xf]
        %v1481 = vld [vmem:[%s12 + $0xc] sm:$0xf]
        %v1482 = vld [vmem:[%s12 + $0x10] sm:$0xf]
        %v1483 = vld [vmem:[%s12 + $0x14] sm:$0xf]
        %v1484 = vld [vmem:[%s12 + $0x18] sm:$0xf]
        %v1485 = vld [vmem:[%s12 + $0x1c] sm:$0xf]
        %v1486 = vld [vmem:[#allocation13] sm:$0x1]
        %v1487 = vpack.c.bf16 %v1477, %v1477
        %v1489 = vlaneseq
        %v1490 = vshrl.u32 %v1489, 7
        %v1491 = vsub.s32 0, %v1490
        %v1492 = vrot.slane %v1486, %v1491
        %v1502 = vunpack.c.l.b16 %v1478
        %v1503 = vunpack.c.l.b16 %v1479
        %v1504 = vunpack.c.l.b16 %v1480
        %v1505 = vunpack.c.l.b16 %v1481
        %v1506 = vunpack.c.l.b16 %v1482
        %v1507 = vunpack.c.l.b16 %v1483
        %v1508 = vunpack.c.l.b16 %v1484
        %v1509 = vunpack.c.l.b16 %v1485
        %v1510 = vpack.c.b16 %v1503, %v1502
        %v1511 = vpack.c.b16 %v1505, %v1504
        %v1512 = vpack.c.b16 %v1507, %v1506
        %v1513 = vpack.c.b16 %v1509, %v1508
        %v1519 = vsel %vm784, %v1487, 0
        %1521 = vmatprep.subr.bf16.mxu0 0
        %1522 = vmatpush1.bf16.msra.mxu0 %v1510
        %1523 = vmatprep.subr.bf16.mxu0 0
        %1524 = vmatpush1.bf16.msra.mxu0 %v1511
        %1525 = vmatprep.subr.bf16.mxu0 0
        %1526 = vmatpush1.bf16.msra.mxu0 %v1512
        %1527 = vmatprep.subr.bf16.mxu0 0
        %1528 = vmatpush1.bf16.msra.mxu0 %v1513
        %1529 = vmatprep.subr.bf16.mxu0 0
        %1530 = vmatpush1.bf16.msra.mxu0 0
        %1531 = vmatprep.subr.bf16.mxu0 0
        %1532 = vmatpush1.bf16.msra.mxu0 0
        %1533 = vmatprep.subr.bf16.mxu0 0
        %1534 = vmatpush1.bf16.msra.mxu0 0
        %1535 = vmatprep.subr.bf16.mxu0 0
        %1536 = vmatpush1.bf16.msra.mxu0 0
        %1537 = vmatprep.subr.bf16.mxu0 0
        %1538 = vmatpush1.bf16.msra.mxu0 0
        %1539 = vmatprep.subr.bf16.mxu0 0
        %1540 = vmatpush1.bf16.msra.mxu0 0
        %1541 = vmatprep.subr.bf16.mxu0 0
        %1542 = vmatpush1.bf16.msra.mxu0 0
        %1543 = vmatprep.subr.bf16.mxu0 0
        %1544 = vmatpush1.bf16.msra.mxu0 0
        %1545 = vmatprep.subr.bf16.mxu0 0
        %1546 = vmatpush1.bf16.msra.mxu0 0
        %1547 = vmatprep.subr.bf16.mxu0 0
        %1548 = vmatpush1.bf16.msra.mxu0 0
        %1549 = vmatprep.subr.bf16.mxu0 0
        %1550 = vmatpush1.bf16.msra.mxu0 0
        %1551 = vmatprep.subr.bf16.mxu0 0
        %1552 = vmatpush1.bf16.msra.mxu0 0
        %1553 = vmatprep.mubr.bf16.mxu0 0
        %1554 = vmatmul.mubr.bf16.gmra.mrb[0].mxu0 %v1519
        %v1555 = vpop.f32.mrb[0].mxu0
        %v1556 = vadd.f32 %v1492, %v1555
        %v1557 = vpop.f32.mrb[0].mxu0
        %v1558 = vpop.f32.mrb[0].mxu0
        %v1559 = vpop.f32.mrb[0].mxu0
        %1560 = vdwg.mxu0
        %v1561 = vadd.f32 %v1556, %v1401
        %v1562 = vld [vmem:[#allocation14] sm:$0x1]
        %v1563 = vld [vmem:[#allocation16] sm:$0x1]
        %v1564 = vsel %vm852, %v1561, 0.0
        %1565 = vadd.xlane.f32.xlu0 %v1564
        %v1566 = vpop.xlane.xlu0 %1565
        %v1567 = vmul.f32 %v1566, %v1377
        %v1568 = vsub.f32 %v1561, %v1567
        %v1569 = vmul.f32 %v1568, %v1568
        %v1570 = vsel %vm852, %v1569, 0.0
        %1571 = vadd.xlane.f32.xlu0 %v1570
        %v1572 = vpop.xlane.xlu0 %1571
        %v1573 = vmul.f32 %v1572, %v1377
        %v1574 = vadd.f32 %v1573, 1e-12
        %v1575 = vrsqrt.pop %v1574
        %v1576 = vmul.f32 %v1568, %v1575
        %v1578 = vlaneseq
        %v1579 = vshrl.u32 %v1578, 7
        %v1580 = vsub.s32 0, %v1579
        %v1581 = vrot.slane %v1562, %v1580
        %v1583 = vmul.f32 %v1576, %v1581
        %v1585 = vlaneseq
        %v1586 = vshrl.u32 %v1585, 7
        %v1587 = vsub.s32 0, %v1586
        %v1588 = vrot.slane %v1563, %v1587
        %v1590 = vadd.f32 %v1583, %v1588
        %s1591 = scalar_lea.vmem %s4, 48
        %v1592 = vld [vmem:[%s1591] sm:$0xf]
        %v1593 = vld [vmem:[%s1591 + $0x4] sm:$0xf]
        %v1594 = vld [vmem:[%s1591 + $0x8] sm:$0xf]
        %v1595 = vld [vmem:[%s1591 + $0xc] sm:$0xf]
        %s1596 = scalar_lea.vmem [#allocation5], 3
        %v1597 = vld [vmem:[%s1596] sm:$0x1]
        %v1598 = vpack.c.bf16 %v1590, %v1590
        %v1600 = vlaneseq
        %v1601 = vshrl.u32 %v1600, 7
        %v1602 = vsub.s32 0, %v1601
        %v1603 = vrot.slane %v1597, %v1602
        %v1609 = vunpack.c.l.b16 %v1592
        %v1610 = vunpack.c.l.b16 %v1593
        %v1611 = vunpack.c.l.b16 %v1594
        %v1612 = vunpack.c.l.b16 %v1595
        %v1613 = vpack.c.b16 %v1610, %v1609
        %v1614 = vpack.c.b16 %v1612, %v1611
        %v1618 = vsel %vm852, %v1598, 0
        %1620 = vmatprep.subr.bf16.mxu0 0
        %1621 = vmatpush1.bf16.msra.mxu0 %v1613
        %1622 = vmatprep.subr.bf16.mxu0 0
        %1623 = vmatpush1.bf16.msra.mxu0 %v1614
        %1624 = vmatprep.subr.bf16.mxu0 0
        %1625 = vmatpush1.bf16.msra.mxu0 0
        %1626 = vmatprep.subr.bf16.mxu0 0
        %1627 = vmatpush1.bf16.msra.mxu0 0
        %1628 = vmatprep.subr.bf16.mxu0 0
        %1629 = vmatpush1.bf16.msra.mxu0 0
        %1630 = vmatprep.subr.bf16.mxu0 0
        %1631 = vmatpush1.bf16.msra.mxu0 0
        %1632 = vmatprep.subr.bf16.mxu0 0
        %1633 = vmatpush1.bf16.msra.mxu0 0
        %1634 = vmatprep.subr.bf16.mxu0 0
        %1635 = vmatpush1.bf16.msra.mxu0 0
        %1636 = vmatprep.subr.bf16.mxu0 0
        %1637 = vmatpush1.bf16.msra.mxu0 0
        %1638 = vmatprep.subr.bf16.mxu0 0
        %1639 = vmatpush1.bf16.msra.mxu0 0
        %1640 = vmatprep.subr.bf16.mxu0 0
        %1641 = vmatpush1.bf16.msra.mxu0 0
        %1642 = vmatprep.subr.bf16.mxu0 0
        %1643 = vmatpush1.bf16.msra.mxu0 0
        %1644 = vmatprep.subr.bf16.mxu0 0
        %1645 = vmatpush1.bf16.msra.mxu0 0
        %1646 = vmatprep.subr.bf16.mxu0 0
        %1647 = vmatpush1.bf16.msra.mxu0 0
        %1648 = vmatprep.subr.bf16.mxu0 0
        %1649 = vmatpush1.bf16.msra.mxu0 0
        %1650 = vmatprep.subr.bf16.mxu0 0
        %1651 = vmatpush1.bf16.msra.mxu0 0
        %1652 = vmatprep.mubr.bf16.mxu0 0
        %1653 = vmatmul.mubr.bf16.gmra.mrb[0].mxu0 %v1618
        %v1654 = vpop.f32.mrb[0].mxu0
        %v1655 = vadd.f32 %v1603, %v1654
        %v1656 = vpop.f32.mrb[0].mxu0
        %v1657 = vpop.f32.mrb[0].mxu0
        %v1658 = vpop.f32.mrb[0].mxu0
        %1659 = vdwg.mxu0
        %s1660 = scalar_lea.vmem %s4, 64
        %v1661 = vld [vmem:[%s1660] sm:$0xf]
        %v1662 = vld [vmem:[%s1660 + $0x4] sm:$0xf]
        %v1663 = vld [vmem:[%s1660 + $0x8] sm:$0xf]
        %v1664 = vld [vmem:[%s1660 + $0xc] sm:$0xf]
        %s1665 = scalar_lea.vmem [#allocation5], 4
        %v1666 = vld [vmem:[%s1665] sm:$0x1]
        %v1668 = vlaneseq
        %v1669 = vshrl.u32 %v1668, 7
        %v1670 = vsub.s32 0, %v1669
        %v1671 = vrot.slane %v1666, %v1670
        %v1677 = vunpack.c.l.b16 %v1661
        %v1678 = vunpack.c.l.b16 %v1662
        %v1679 = vunpack.c.l.b16 %v1663
        %v1680 = vunpack.c.l.b16 %v1664
        %v1681 = vpack.c.b16 %v1678, %v1677
        %v1682 = vpack.c.b16 %v1680, %v1679
        %1685 = vmatprep.subr.bf16.mxu0 0
        %1686 = vmatpush1.bf16.msra.mxu0 %v1681
        %1687 = vmatprep.subr.bf16.mxu0 0
        %1688 = vmatpush1.bf16.msra.mxu0 %v1682
        %1689 = vmatprep.subr.bf16.mxu0 0
        %1690 = vmatpush1.bf16.msra.mxu0 0
        %1691 = vmatprep.subr.bf16.mxu0 0
        %1692 = vmatpush1.bf16.msra.mxu0 0
        %1693 = vmatprep.subr.bf16.mxu0 0
        %1694 = vmatpush1.bf16.msra.mxu0 0
        %1695 = vmatprep.subr.bf16.mxu0 0
        %1696 = vmatpush1.bf16.msra.mxu0 0
        %1697 = vmatprep.subr.bf16.mxu0 0
        %1698 = vmatpush1.bf16.msra.mxu0 0
        %1699 = vmatprep.subr.bf16.mxu0 0
        %1700 = vmatpush1.bf16.msra.mxu0 0
        %1701 = vmatprep.subr.bf16.mxu0 0
        %1702 = vmatpush1.bf16.msra.mxu0 0
        %1703 = vmatprep.subr.bf16.mxu0 0
        %1704 = vmatpush1.bf16.msra.mxu0 0
        %1705 = vmatprep.subr.bf16.mxu0 0
        %1706 = vmatpush1.bf16.msra.mxu0 0
        %1707 = vmatprep.subr.bf16.mxu0 0
        %1708 = vmatpush1.bf16.msra.mxu0 0
        %1709 = vmatprep.subr.bf16.mxu0 0
        %1710 = vmatpush1.bf16.msra.mxu0 0
        %1711 = vmatprep.subr.bf16.mxu0 0
        %1712 = vmatpush1.bf16.msra.mxu0 0
        %1713 = vmatprep.subr.bf16.mxu0 0
        %1714 = vmatpush1.bf16.msra.mxu0 0
        %1715 = vmatprep.subr.bf16.mxu0 0
        %1716 = vmatpush1.bf16.msra.mxu0 0
        %1717 = vmatprep.mubr.bf16.mxu0 0
        %1718 = vmatmul.mubr.bf16.gmra.mrb[0].mxu0 %v1618
        %v1719 = vpop.f32.mrb[0].mxu0
        %v1720 = vadd.f32 %v1671, %v1719
        %v1721 = vpop.f32.mrb[0].mxu0
        %v1722 = vpop.f32.mrb[0].mxu0
        %v1723 = vpop.f32.mrb[0].mxu0
        %1724 = vdwg.mxu0
        %s1725 = scalar_lea.vmem %s4, 80
        %v1726 = vld [vmem:[%s1725] sm:$0xf]
        %v1727 = vld [vmem:[%s1725 + $0x4] sm:$0xf]
        %v1728 = vld [vmem:[%s1725 + $0x8] sm:$0xf]
        %v1729 = vld [vmem:[%s1725 + $0xc] sm:$0xf]
        %s1730 = scalar_lea.vmem [#allocation5], 5
        %v1731 = vld [vmem:[%s1730] sm:$0x1]
        %v1733 = vlaneseq
        %v1734 = vshrl.u32 %v1733, 7
        %v1735 = vsub.s32 0, %v1734
        %v1736 = vrot.slane %v1731, %v1735
        %v1742 = vunpack.c.l.b16 %v1726
        %v1743 = vunpack.c.l.b16 %v1727
        %v1744 = vunpack.c.l.b16 %v1728
        %v1745 = vunpack.c.l.b16 %v1729
        %v1746 = vpack.c.b16 %v1743, %v1742
        %v1747 = vpack.c.b16 %v1745, %v1744
        %1750 = vmatprep.subr.bf16.mxu0 0
        %1751 = vmatpush1.bf16.msra.mxu0 %v1746
        %1752 = vmatprep.subr.bf16.mxu0 0
        %1753 = vmatpush1.bf16.msra.mxu0 %v1747
        %1754 = vmatprep.subr.bf16.mxu0 0
        %1755 = vmatpush1.bf16.msra.mxu0 0
        %1756 = vmatprep.subr.bf16.mxu0 0
        %1757 = vmatpush1.bf16.msra.mxu0 0
        %1758 = vmatprep.subr.bf16.mxu0 0
        %1759 = vmatpush1.bf16.msra.mxu0 0
        %1760 = vmatprep.subr.bf16.mxu0 0
        %1761 = vmatpush1.bf16.msra.mxu0 0
        %1762 = vmatprep.subr.bf16.mxu0 0
        %1763 = vmatpush1.bf16.msra.mxu0 0
        %1764 = vmatprep.subr.bf16.mxu0 0
        %1765 = vmatpush1.bf16.msra.mxu0 0
        %1766 = vmatprep.subr.bf16.mxu0 0
        %1767 = vmatpush1.bf16.msra.mxu0 0
        %1768 = vmatprep.subr.bf16.mxu0 0
        %1769 = vmatpush1.bf16.msra.mxu0 0
        %1770 = vmatprep.subr.bf16.mxu0 0
        %1771 = vmatpush1.bf16.msra.mxu0 0
        %1772 = vmatprep.subr.bf16.mxu0 0
        %1773 = vmatpush1.bf16.msra.mxu0 0
        %1774 = vmatprep.subr.bf16.mxu0 0
        %1775 = vmatpush1.bf16.msra.mxu0 0
        %1776 = vmatprep.subr.bf16.mxu0 0
        %1777 = vmatpush1.bf16.msra.mxu0 0
        %1778 = vmatprep.subr.bf16.mxu0 0
        %1779 = vmatpush1.bf16.msra.mxu0 0
        %1780 = vmatprep.subr.bf16.mxu0 0
        %1781 = vmatpush1.bf16.msra.mxu0 0
        %1782 = vmatprep.mubr.bf16.mxu0 0
        %1783 = vmatmul.mubr.bf16.gmra.mrb[0].mxu0 %v1618
        %v1784 = vpop.f32.mrb[0].mxu0
        %v1785 = vadd.f32 %v1736, %v1784
        %v1786 = vpop.f32.mrb[0].mxu0
        %v1787 = vpop.f32.mrb[0].mxu0
        %v1788 = vpop.f32.mrb[0].mxu0
        %1789 = vdwg.mxu0
        %s1790 = scalar_lea.vmem %s6, 16
        %v1791 = vld [vmem:[%s1790] sm:$0xf]
        %v1792 = vld [vmem:[%s1790 + $0x4] sm:$0xf]
        %v1793 = vld [vmem:[%s1790 + $0x8] sm:$0xf]
        %v1794 = vld [vmem:[%s1790 + $0xc] sm:$0xf]
        %v1795 = vpack.c.bf16 %v1655, %v1655
        %v1796 = vpack.c.bf16 %v1720, %v1720
        %v1797 = vpack.c.bf16 %v1785, %v1785
        %v1799 = vsel %vm1033, %v1795, 0
        %v1802 = vsel %vm1033, %v1796, 0
        %1804 = vmatprep.subr.bf16.mxu0 0
        %1805 = vmatpush1.bf16.xpose.msra.mxu0 %v1802
        %1806 = vmatprep.subr.bf16.mxu0 0
        %1807 = vmatpush1.bf16.xpose.msra.mxu0 0
        %1808 = vmatprep.subr.bf16.mxu0 0
        %1809 = vmatpush1.bf16.xpose.msra.mxu0 0
        %1810 = vmatprep.subr.bf16.mxu0 0
        %1811 = vmatpush1.bf16.xpose.msra.mxu0 0
        %1812 = vmatprep.subr.bf16.mxu0 0
        %1813 = vmatpush1.bf16.xpose.msra.mxu0 0
        %1814 = vmatprep.subr.bf16.mxu0 0
        %1815 = vmatpush1.bf16.xpose.msra.mxu0 0
        %1816 = vmatprep.subr.bf16.mxu0 0
        %1817 = vmatpush1.bf16.xpose.msra.mxu0 0
        %1818 = vmatprep.subr.bf16.mxu0 0
        %1819 = vmatpush1.bf16.xpose.msra.mxu0 0
        %1820 = vmatprep.subr.bf16.mxu0 0
        %1821 = vmatpush1.bf16.xpose.msra.mxu0 0
        %1822 = vmatprep.subr.bf16.mxu0 0
        %1823 = vmatpush1.bf16.xpose.msra.mxu0 0
        %1824 = vmatprep.subr.bf16.mxu0 0
        %1825 = vmatpush1.bf16.xpose.msra.mxu0 0
        %1826 = vmatprep.subr.bf16.mxu0 0
        %1827 = vmatpush1.bf16.xpose.msra.mxu0 0
        %1828 = vmatprep.subr.bf16.mxu0 0
        %1829 = vmatpush1.bf16.xpose.msra.mxu0 0
        %1830 = vmatprep.subr.bf16.mxu0 0
        %1831 = vmatpush1.bf16.xpose.msra.mxu0 0
        %1832 = vmatprep.subr.bf16.mxu0 0
        %1833 = vmatpush1.bf16.xpose.msra.mxu0 0
        %1834 = vmatprep.subr.bf16.mxu0 0
        %1835 = vmatpush1.bf16.xpose.msra.mxu0 0
        %1836 = vmatprep.mubr.bf16.mxu0 0
        %1837 = vmatmul.mubr.bf16.gmra.mrb[0].mxu0 %v1799
        %v1838 = vpop.f32.mrb[0].mxu0
        %v1839 = vadd.f32 0.0, %v1838
        %v1840 = vpop.f32.mrb[0].mxu0
        %v1841 = vpop.f32.mrb[0].mxu0
        %v1842 = vpop.f32.mrb[0].mxu0
        %1843 = vdwg.mxu0
        %v1844 = vmul.f32 %v1839, 0.25
        %v1845 = vadd.f32 %v1844, %v1085
        %v1846 = vsel %vm1088, %v1845, -inf
        %1847 = vmax.xlane.f32.xlu0 %v1846
        %v1848 = vpop.xlane.xlu0 %1847
        %v1849 = vsub.f32 %v1845, %v1848
        %v1850 = vmul.f32 %v1849, 1.442695
        %v1851 = vpow.pop %v1850
        %v1852 = vsel %vm1088, %v1851, 0.0
        %1853 = vadd.xlane.f32.xlu0 %v1852
        %v1854 = vpop.xlane.xlu0 %1853
        %v1855 = vrcp.pop %v1854
        %v1856 = vmul.f32 %v1851, %v1855
        %v1857 = vpack.c.bf16 %v1856, %v1856
        %v1859 = vsel %vm1088, %v1857, 0
        %v1862 = vsel %vm1104, %v1797, 0
        %1864 = vmatprep.subr.bf16.mxu0 0
        %1865 = vmatpush1.bf16.msra.mxu0 %v1862
        %1866 = vmatprep.subr.bf16.mxu0 0
        %1867 = vmatpush1.bf16.msra.mxu0 0
        %1868 = vmatprep.subr.bf16.mxu0 0
        %1869 = vmatpush1.bf16.msra.mxu0 0
        %1870 = vmatprep.subr.bf16.mxu0 0
        %1871 = vmatpush1.bf16.msra.mxu0 0
        %1872 = vmatprep.subr.bf16.mxu0 0
        %1873 = vmatpush1.bf16.msra.mxu0 0
        %1874 = vmatprep.subr.bf16.mxu0 0
        %1875 = vmatpush1.bf16.msra.mxu0 0
        %1876 = vmatprep.subr.bf16.mxu0 0
        %1877 = vmatpush1.bf16.msra.mxu0 0
        %1878 = vmatprep.subr.bf16.mxu0 0
        %1879 = vmatpush1.bf16.msra.mxu0 0
        %1880 = vmatprep.subr.bf16.mxu0 0
        %1881 = vmatpush1.bf16.msra.mxu0 0
        %1882 = vmatprep.subr.bf16.mxu0 0
        %1883 = vmatpush1.bf16.msra.mxu0 0
        %1884 = vmatprep.subr.bf16.mxu0 0
        %1885 = vmatpush1.bf16.msra.mxu0 0
        %1886 = vmatprep.subr.bf16.mxu0 0
        %1887 = vmatpush1.bf16.msra.mxu0 0
        %1888 = vmatprep.subr.bf16.mxu0 0
        %1889 = vmatpush1.bf16.msra.mxu0 0
        %1890 = vmatprep.subr.bf16.mxu0 0
        %1891 = vmatpush1.bf16.msra.mxu0 0
        %1892 = vmatprep.subr.bf16.mxu0 0
        %1893 = vmatpush1.bf16.msra.mxu0 0
        %1894 = vmatprep.subr.bf16.mxu0 0
        %1895 = vmatpush1.bf16.msra.mxu0 0
        %1896 = vmatprep.mubr.bf16.mxu0 0
        %1897 = vmatmul.mubr.bf16.gmra.mrb[0].mxu0 %v1859
        %v1898 = vpop.f32.mrb[0].mxu0
        %v1899 = vadd.f32 0.0, %v1898
        %v1900 = vpop.f32.mrb[0].mxu0
        %v1901 = vpop.f32.mrb[0].mxu0
        %v1902 = vpop.f32.mrb[0].mxu0
        %1903 = vdwg.mxu0
        %v1904 = vpack.c.bf16 %v1899, %v1899
        %1906 = vrot.lane.b32.xlu0 %v1795, 112
        %v1907 = vpop.permute.xlu0 %1906
        %1909 = vrot.lane.b32.xlu0 %v1796, 112
        %v1910 = vpop.permute.xlu0 %1909
        %v1912 = vsel %vm1033, %v1907, 0
        %v1915 = vsel %vm1033, %v1910, 0
        %1917 = vmatprep.subr.bf16.mxu0 0
        %1918 = vmatpush1.bf16.xpose.msra.mxu0 %v1915
        %1919 = vmatprep.subr.bf16.mxu0 0
        %1920 = vmatpush1.bf16.xpose.msra.mxu0 0
        %1921 = vmatprep.subr.bf16.mxu0 0
        %1922 = vmatpush1.bf16.xpose.msra.mxu0 0
        %1923 = vmatprep.subr.bf16.mxu0 0
        %1924 = vmatpush1.bf16.xpose.msra.mxu0 0
        %1925 = vmatprep.subr.bf16.mxu0 0
        %1926 = vmatpush1.bf16.xpose.msra.mxu0 0
        %1927 = vmatprep.subr.bf16.mxu0 0
        %1928 = vmatpush1.bf16.xpose.msra.mxu0 0
        %1929 = vmatprep.subr.bf16.mxu0 0
        %1930 = vmatpush1.bf16.xpose.msra.mxu0 0
        %1931 = vmatprep.subr.bf16.mxu0 0
        %1932 = vmatpush1.bf16.xpose.msra.mxu0 0
        %1933 = vmatprep.subr.bf16.mxu0 0
        %1934 = vmatpush1.bf16.xpose.msra.mxu0 0
        %1935 = vmatprep.subr.bf16.mxu0 0
        %1936 = vmatpush1.bf16.xpose.msra.mxu0 0
        %1937 = vmatprep.subr.bf16.mxu0 0
        %1938 = vmatpush1.bf16.xpose.msra.mxu0 0
        %1939 = vmatprep.subr.bf16.mxu0 0
        %1940 = vmatpush1.bf16.xpose.msra.mxu0 0
        %1941 = vmatprep.subr.bf16.mxu0 0
        %1942 = vmatpush1.bf16.xpose.msra.mxu0 0
        %1943 = vmatprep.subr.bf16.mxu0 0
        %1944 = vmatpush1.bf16.xpose.msra.mxu0 0
        %1945 = vmatprep.subr.bf16.mxu0 0
        %1946 = vmatpush1.bf16.xpose.msra.mxu0 0
        %1947 = vmatprep.subr.bf16.mxu0 0
        %1948 = vmatpush1.bf16.xpose.msra.mxu0 0
        %1949 = vmatprep.mubr.bf16.mxu0 0
        %1950 = vmatmul.mubr.bf16.gmra.mrb[0].mxu0 %v1912
        %v1951 = vpop.f32.mrb[0].mxu0
        %v1952 = vadd.f32 0.0, %v1951
        %v1953 = vpop.f32.mrb[0].mxu0
        %v1954 = vpop.f32.mrb[0].mxu0
        %v1955 = vpop.f32.mrb[0].mxu0
        %1956 = vdwg.mxu0
        %v1957 = vmul.f32 %v1952, 0.25
        %v1958 = vadd.f32 %v1957, %v1085
        %v1959 = vsel %vm1088, %v1958, -inf
        %1960 = vmax.xlane.f32.xlu0 %v1959
        %v1961 = vpop.xlane.xlu0 %1960
        %v1962 = vsub.f32 %v1958, %v1961
        %v1963 = vmul.f32 %v1962, 1.442695
        %v1964 = vpow.pop %v1963
        %v1965 = vsel %vm1088, %v1964, 0.0
        %1966 = vadd.xlane.f32.xlu0 %v1965
        %v1967 = vpop.xlane.xlu0 %1966
        %v1968 = vrcp.pop %v1967
        %v1969 = vmul.f32 %v1964, %v1968
        %v1970 = vpack.c.bf16 %v1969, %v1969
        %1972 = vrot.lane.b32.xlu0 %v1797, 112
        %v1973 = vpop.permute.xlu0 %1972
        %v1975 = vsel %vm1088, %v1970, 0
        %v1978 = vsel %vm1104, %v1973, 0
        %1980 = vmatprep.subr.bf16.mxu0 0
        %1981 = vmatpush1.bf16.msra.mxu0 %v1978
        %1982 = vmatprep.subr.bf16.mxu0 0
        %1983 = vmatpush1.bf16.msra.mxu0 0
        %1984 = vmatprep.subr.bf16.mxu0 0
        %1985 = vmatpush1.bf16.msra.mxu0 0
        %1986 = vmatprep.subr.bf16.mxu0 0
        %1987 = vmatpush1.bf16.msra.mxu0 0
        %1988 = vmatprep.subr.bf16.mxu0 0
        %1989 = vmatpush1.bf16.msra.mxu0 0
        %1990 = vmatprep.subr.bf16.mxu0 0
        %1991 = vmatpush1.bf16.msra.mxu0 0
        %1992 = vmatprep.subr.bf16.mxu0 0
        %1993 = vmatpush1.bf16.msra.mxu0 0
        %1994 = vmatprep.subr.bf16.mxu0 0
        %1995 = vmatpush1.bf16.msra.mxu0 0
        %1996 = vmatprep.subr.bf16.mxu0 0
        %1997 = vmatpush1.bf16.msra.mxu0 0
        %1998 = vmatprep.subr.bf16.mxu0 0
        %1999 = vmatpush1.bf16.msra.mxu0 0
        %2000 = vmatprep.subr.bf16.mxu0 0
        %2001 = vmatpush1.bf16.msra.mxu0 0
        %2002 = vmatprep.subr.bf16.mxu0 0
        %2003 = vmatpush1.bf16.msra.mxu0 0
        %2004 = vmatprep.subr.bf16.mxu0 0
        %2005 = vmatpush1.bf16.msra.mxu0 0
        %2006 = vmatprep.subr.bf16.mxu0 0
        %2007 = vmatpush1.bf16.msra.mxu0 0
        %2008 = vmatprep.subr.bf16.mxu0 0
        %2009 = vmatpush1.bf16.msra.mxu0 0
        %2010 = vmatprep.subr.bf16.mxu0 0
        %2011 = vmatpush1.bf16.msra.mxu0 0
        %2012 = vmatprep.mubr.bf16.mxu0 0
        %2013 = vmatmul.mubr.bf16.gmra.mrb[0].mxu0 %v1975
        %v2014 = vpop.f32.mrb[0].mxu0
        %v2015 = vadd.f32 0.0, %v2014
        %v2016 = vpop.f32.mrb[0].mxu0
        %v2017 = vpop.f32.mrb[0].mxu0
        %v2018 = vpop.f32.mrb[0].mxu0
        %2019 = vdwg.mxu0
        %v2020 = vpack.c.bf16 %v2015, %v2015
        %v2023 = vunpack.c.l.b16 %v1793
        %v2024 = vunpack.c.l.b16 %v1794
        %v2025 = vpack.c.b16 %v2024, %v2023
        %v2028 = vsel %vm1033, %v2020, 0
        %2030 = vmatprep.subr.bf16.mxu0 0
        %2031 = vmatpush1.bf16.msra.mxu0 %v2025
        %2032 = vmatprep.subr.bf16.mxu0 0
        %2033 = vmatpush1.bf16.msra.mxu0 0
        %2034 = vmatprep.subr.bf16.mxu0 0
        %2035 = vmatpush1.bf16.msra.mxu0 0
        %2036 = vmatprep.subr.bf16.mxu0 0
        %2037 = vmatpush1.bf16.msra.mxu0 0
        %2038 = vmatprep.subr.bf16.mxu0 0
        %2039 = vmatpush1.bf16.msra.mxu0 0
        %2040 = vmatprep.subr.bf16.mxu0 0
        %2041 = vmatpush1.bf16.msra.mxu0 0
        %2042 = vmatprep.subr.bf16.mxu0 0
        %2043 = vmatpush1.bf16.msra.mxu0 0
        %2044 = vmatprep.subr.bf16.mxu0 0
        %2045 = vmatpush1.bf16.msra.mxu0 0
        %2046 = vmatprep.subr.bf16.mxu0 0
        %2047 = vmatpush1.bf16.msra.mxu0 0
        %2048 = vmatprep.subr.bf16.mxu0 0
        %2049 = vmatpush1.bf16.msra.mxu0 0
        %2050 = vmatprep.subr.bf16.mxu0 0
        %2051 = vmatpush1.bf16.msra.mxu0 0
        %2052 = vmatprep.subr.bf16.mxu0 0
        %2053 = vmatpush1.bf16.msra.mxu0 0
        %2054 = vmatprep.subr.bf16.mxu0 0
        %2055 = vmatpush1.bf16.msra.mxu0 0
        %2056 = vmatprep.subr.bf16.mxu0 0
        %2057 = vmatpush1.bf16.msra.mxu0 0
        %2058 = vmatprep.subr.bf16.mxu0 0
        %2059 = vmatpush1.bf16.msra.mxu0 0
        %2060 = vmatprep.subr.bf16.mxu0 0
        %2061 = vmatpush1.bf16.msra.mxu0 0
        %2062 = vmatprep.mubr.bf16.mxu0 0
        %2063 = vmatmul.mubr.bf16.gmra.mrb[0].mxu0 %v2028
        %v2064 = vpop.f32.mrb[0].mxu0
        %v2065 = vadd.f32 0.0, %v2064
        %v2066 = vpop.f32.mrb[0].mxu0
        %v2067 = vpop.f32.mrb[0].mxu0
        %v2068 = vpop.f32.mrb[0].mxu0
        %2069 = vdwg.mxu0
        %v2072 = vunpack.c.l.b16 %v1791
        %v2073 = vunpack.c.l.b16 %v1792
        %v2074 = vpack.c.b16 %v2073, %v2072
        %v2077 = vsel %vm1033, %v1904, 0
        %2079 = vmatprep.subr.bf16.mxu0 0
        %2080 = vmatpush1.bf16.msra.mxu0 %v2074
        %2081 = vmatprep.subr.bf16.mxu0 0
        %2082 = vmatpush1.bf16.msra.mxu0 0
        %2083 = vmatprep.subr.bf16.mxu0 0
        %2084 = vmatpush1.bf16.msra.mxu0 0
        %2085 = vmatprep.subr.bf16.mxu0 0
        %2086 = vmatpush1.bf16.msra.mxu0 0
        %2087 = vmatprep.subr.bf16.mxu0 0
        %2088 = vmatpush1.bf16.msra.mxu0 0
        %2089 = vmatprep.subr.bf16.mxu0 0
        %2090 = vmatpush1.bf16.msra.mxu0 0
        %2091 = vmatprep.subr.bf16.mxu0 0
        %2092 = vmatpush1.bf16.msra.mxu0 0
        %2093 = vmatprep.subr.bf16.mxu0 0
        %2094 = vmatpush1.bf16.msra.mxu0 0
        %2095 = vmatprep.subr.bf16.mxu0 0
        %2096 = vmatpush1.bf16.msra.mxu0 0
        %2097 = vmatprep.subr.bf16.mxu0 0
        %2098 = vmatpush1.bf16.msra.mxu0 0
        %2099 = vmatprep.subr.bf16.mxu0 0
        %2100 = vmatpush1.bf16.msra.mxu0 0
        %2101 = vmatprep.subr.bf16.mxu0 0
        %2102 = vmatpush1.bf16.msra.mxu0 0
        %2103 = vmatprep.subr.bf16.mxu0 0
        %2104 = vmatpush1.bf16.msra.mxu0 0
        %2105 = vmatprep.subr.bf16.mxu0 0
        %2106 = vmatpush1.bf16.msra.mxu0 0
        %2107 = vmatprep.subr.bf16.mxu0 0
        %2108 = vmatpush1.bf16.msra.mxu0 0
        %2109 = vmatprep.subr.bf16.mxu0 0
        %2110 = vmatpush1.bf16.msra.mxu0 0
        %2111 = vmatprep.mubr.bf16.mxu0 0
        %2112 = vmatmul.mubr.bf16.gmra.mrb[0].mxu0 %v2077
        %v2113 = vpop.f32.mrb[0].mxu0
        %v2114 = vadd.f32 %v2065, %v2113
        %v2115 = vpop.f32.mrb[0].mxu0
        %v2116 = vpop.f32.mrb[0].mxu0
        %v2117 = vpop.f32.mrb[0].mxu0
        %2118 = vdwg.mxu0
        %s2119 = scalar_lea.vmem [#allocation7], 1
        %v2120 = vld [vmem:[%s2119] sm:$0x1]
        %v2122 = vlaneseq
        %v2123 = vshrl.u32 %v2122, 7
        %v2124 = vsub.s32 0, %v2123
        %v2125 = vrot.slane %v2120, %v2124
        %v2127 = vadd.f32 %v2114, %v2125
        %v2128 = vadd.f32 %v2127, %v1590
        %s2129 = scalar_lea.vmem [#allocation8], 1
        %v2130 = vld [vmem:[%s2129] sm:$0x1]
        %s2131 = scalar_lea.vmem [#allocation10], 1
        %v2132 = vld [vmem:[%s2131] sm:$0x1]
        %v2133 = vsel %vm852, %v2128, 0.0
        %2134 = vadd.xlane.f32.xlu0 %v2133
        %v2135 = vpop.xlane.xlu0 %2134
        %v2136 = vmul.f32 %v2135, %v1377
        %v2137 = vsub.f32 %v2128, %v2136
        %v2138 = vmul.f32 %v2137, %v2137
        %v2139 = vsel %vm852, %v2138, 0.0
        %2140 = vadd.xlane.f32.xlu0 %v2139
        %v2141 = vpop.xlane.xlu0 %2140
        %v2142 = vmul.f32 %v2141, %v1377
        %v2143 = vadd.f32 %v2142, 1e-12
        %v2144 = vrsqrt.pop %v2143
        %v2145 = vmul.f32 %v2137, %v2144
        %v2147 = vlaneseq
        %v2148 = vshrl.u32 %v2147, 7
        %v2149 = vsub.s32 0, %v2148
        %v2150 = vrot.slane %v2130, %v2149
        %v2152 = vmul.f32 %v2145, %v2150
        %v2154 = vlaneseq
        %v2155 = vshrl.u32 %v2154, 7
        %v2156 = vsub.s32 0, %v2155
        %v2157 = vrot.slane %v2132, %v2156
        %v2159 = vadd.f32 %v2152, %v2157
        %s2160 = scalar_lea.vmem %s10, 16
        %v2161 = vld [vmem:[%s2160] sm:$0xf]
        %v2162 = vld [vmem:[%s2160 + $0x4] sm:$0xf]
        %v2163 = vld [vmem:[%s2160 + $0x8] sm:$0xf]
        %v2164 = vld [vmem:[%s2160 + $0xc] sm:$0xf]
        %s2165 = scalar_lea.vmem [#allocation11], 1
        %v2166 = vld [vmem:[%s2165] sm:$0x1]
        %v2167 = vpack.c.bf16 %v2159, %v2159
        %v2169 = vlaneseq
        %v2170 = vshrl.u32 %v2169, 7
        %v2171 = vsub.s32 0, %v2170
        %v2172 = vrot.slane %v2166, %v2171
        %v2178 = vunpack.c.l.b16 %v2161
        %v2179 = vunpack.c.l.b16 %v2162
        %v2180 = vunpack.c.l.b16 %v2163
        %v2181 = vunpack.c.l.b16 %v2164
        %v2182 = vpack.c.b16 %v2179, %v2178
        %v2183 = vpack.c.b16 %v2181, %v2180
        %v2187 = vsel %vm852, %v2167, 0
        %2189 = vmatprep.subr.bf16.mxu0 0
        %2190 = vmatpush1.bf16.msra.mxu0 %v2182
        %2191 = vmatprep.subr.bf16.mxu0 0
        %2192 = vmatpush1.bf16.msra.mxu0 %v2183
        %2193 = vmatprep.subr.bf16.mxu0 0
        %2194 = vmatpush1.bf16.msra.mxu0 0
        %2195 = vmatprep.subr.bf16.mxu0 0
        %2196 = vmatpush1.bf16.msra.mxu0 0
        %2197 = vmatprep.subr.bf16.mxu0 0
        %2198 = vmatpush1.bf16.msra.mxu0 0
        %2199 = vmatprep.subr.bf16.mxu0 0
        %2200 = vmatpush1.bf16.msra.mxu0 0
        %2201 = vmatprep.subr.bf16.mxu0 0
        %2202 = vmatpush1.bf16.msra.mxu0 0
        %2203 = vmatprep.subr.bf16.mxu0 0
        %2204 = vmatpush1.bf16.msra.mxu0 0
        %2205 = vmatprep.subr.bf16.mxu0 0
        %2206 = vmatpush1.bf16.msra.mxu0 0
        %2207 = vmatprep.subr.bf16.mxu0 0
        %2208 = vmatpush1.bf16.msra.mxu0 0
        %2209 = vmatprep.subr.bf16.mxu0 0
        %2210 = vmatpush1.bf16.msra.mxu0 0
        %2211 = vmatprep.subr.bf16.mxu0 0
        %2212 = vmatpush1.bf16.msra.mxu0 0
        %2213 = vmatprep.subr.bf16.mxu0 0
        %2214 = vmatpush1.bf16.msra.mxu0 0
        %2215 = vmatprep.subr.bf16.mxu0 0
        %2216 = vmatpush1.bf16.msra.mxu0 0
        %2217 = vmatprep.subr.bf16.mxu0 0
        %2218 = vmatpush1.bf16.msra.mxu0 0
        %2219 = vmatprep.subr.bf16.mxu0 0
        %2220 = vmatpush1.bf16.msra.mxu0 0
        %2221 = vmatprep.mubr.bf16.mxu0 0
        %2222 = vmatmul.mubr.bf16.gmra.mrb[0].mxu0 %v2187
        %v2223 = vpop.f32.mrb[0].mxu0
        %v2224 = vadd.f32 %v2172, %v2223
        %v2225 = vpop.f32.mrb[0].mxu0
        %v2226 = vpop.f32.mrb[0].mxu0
        %v2227 = vpop.f32.mrb[0].mxu0
        %2228 = vdwg.mxu0
        %v2229 = vmul.f32 %v2224, 0.5
        %v2230 = vmul.f32 %v2224, 0.044715
        %v2231 = vmul.f32 %v2230, %v2224
        %v2232 = vmul.f32 %v2231, %v2224
        %v2233 = vadd.f32 %v2224, %v2232
        %v2234 = vmul.f32 %v2233, 0.7978846
        %v2235 = vtanh.pop %v2234
        %v2236 = vadd.f32 %v2235, 1.0
        %v2237 = vmul.f32 %v2229, %v2236
        %s2238 = scalar_lea.vmem %s12, 32
        %v2239 = vld [vmem:[%s2238] sm:$0xf]
        %v2240 = vld [vmem:[%s2238 + $0x4] sm:$0xf]
        %v2241 = vld [vmem:[%s2238 + $0x8] sm:$0xf]
        %v2242 = vld [vmem:[%s2238 + $0xc] sm:$0xf]
        %v2243 = vld [vmem:[%s2238 + $0x10] sm:$0xf]
        %v2244 = vld [vmem:[%s2238 + $0x14] sm:$0xf]
        %v2245 = vld [vmem:[%s2238 + $0x18] sm:$0xf]
        %v2246 = vld [vmem:[%s2238 + $0x1c] sm:$0xf]
        %s2247 = scalar_lea.vmem [#allocation13], 1
        %v2248 = vld [vmem:[%s2247] sm:$0x1]
        %v2249 = vpack.c.bf16 %v2237, %v2237
        %v2251 = vlaneseq
        %v2252 = vshrl.u32 %v2251, 7
        %v2253 = vsub.s32 0, %v2252
        %v2254 = vrot.slane %v2248, %v2253
        %v2264 = vunpack.c.l.b16 %v2239
        %v2265 = vunpack.c.l.b16 %v2240
        %v2266 = vunpack.c.l.b16 %v2241
        %v2267 = vunpack.c.l.b16 %v2242
        %v2268 = vunpack.c.l.b16 %v2243
        %v2269 = vunpack.c.l.b16 %v2244
        %v2270 = vunpack.c.l.b16 %v2245
        %v2271 = vunpack.c.l.b16 %v2246
        %v2272 = vpack.c.b16 %v2265, %v2264
        %v2273 = vpack.c.b16 %v2267, %v2266
        %v2274 = vpack.c.b16 %v2269, %v2268
        %v2275 = vpack.c.b16 %v2271, %v2270
        %v2281 = vsel %vm784, %v2249, 0
        %2283 = vmatprep.subr.bf16.mxu0 0
        %2284 = vmatpush1.bf16.msra.mxu0 %v2272
        %2285 = vmatprep.subr.bf16.mxu0 0
        %2286 = vmatpush1.bf16.msra.mxu0 %v2273
        %2287 = vmatprep.subr.bf16.mxu0 0
        %2288 = vmatpush1.bf16.msra.mxu0 %v2274
        %2289 = vmatprep.subr.bf16.mxu0 0
        %2290 = vmatpush1.bf16.msra.mxu0 %v2275
        %2291 = vmatprep.subr.bf16.mxu0 0
        %2292 = vmatpush1.bf16.msra.mxu0 0
        %2293 = vmatprep.subr.bf16.mxu0 0
        %2294 = vmatpush1.bf16.msra.mxu0 0
        %2295 = vmatprep.subr.bf16.mxu0 0
        %2296 = vmatpush1.bf16.msra.mxu0 0
        %2297 = vmatprep.subr.bf16.mxu0 0
        %2298 = vmatpush1.bf16.msra.mxu0 0
        %2299 = vmatprep.subr.bf16.mxu0 0
        %2300 = vmatpush1.bf16.msra.mxu0 0
        %2301 = vmatprep.subr.bf16.mxu0 0
        %2302 = vmatpush1.bf16.msra.mxu0 0
        %2303 = vmatprep.subr.bf16.mxu0 0
        %2304 = vmatpush1.bf16.msra.mxu0 0
        %2305 = vmatprep.subr.bf16.mxu0 0
        %2306 = vmatpush1.bf16.msra.mxu0 0
        %2307 = vmatprep.subr.bf16.mxu0 0
        %2308 = vmatpush1.bf16.msra.mxu0 0
        %2309 = vmatprep.subr.bf16.mxu0 0
        %2310 = vmatpush1.bf16.msra.mxu0 0
        %2311 = vmatprep.subr.bf16.mxu0 0
        %2312 = vmatpush1.bf16.msra.mxu0 0
        %2313 = vmatprep.subr.bf16.mxu0 0
        %2314 = vmatpush1.bf16.msra.mxu0 0
        %2315 = vmatprep.mubr.bf16.mxu0 0
        %2316 = vmatmul.mubr.bf16.gmra.mrb[0].mxu0 %v2281
        %v2317 = vpop.f32.mrb[0].mxu0
        %v2318 = vadd.f32 %v2254, %v2317
        %v2319 = vpop.f32.mrb[0].mxu0
        %v2320 = vpop.f32.mrb[0].mxu0
        %v2321 = vpop.f32.mrb[0].mxu0
        %2322 = vdwg.mxu0
        %v2323 = vadd.f32 %v2318, %v2159
        %s2324 = scalar_lea.vmem [#allocation14], 1
        %v2325 = vld [vmem:[%s2324] sm:$0x1]
        %s2326 = scalar_lea.vmem [#allocation16], 1
        %v2327 = vld [vmem:[%s2326] sm:$0x1]
        %v2328 = vsel %vm852, %v2323, 0.0
        %2329 = vadd.xlane.f32.xlu0 %v2328
        %v2330 = vpop.xlane.xlu0 %2329
        %v2331 = vmul.f32 %v2330, %v1377
        %v2332 = vsub.f32 %v2323, %v2331
        %v2333 = vmul.f32 %v2332, %v2332
        %v2334 = vsel %vm852, %v2333, 0.0
        %2335 = vadd.xlane.f32.xlu0 %v2334
        %v2336 = vpop.xlane.xlu0 %2335
        %v2337 = vmul.f32 %v2336, %v1377
        %v2338 = vadd.f32 %v2337, 1e-12
        %v2339 = vrsqrt.pop %v2338
        %v2340 = vmul.f32 %v2332, %v2339
        %v2342 = vlaneseq
        %v2343 = vshrl.u32 %v2342, 7
        %v2344 = vsub.s32 0, %v2343
        %v2345 = vrot.slane %v2325, %v2344
        %v2347 = vmul.f32 %v2340, %v2345
        %v2349 = vlaneseq
        %v2350 = vshrl.u32 %v2349, 7
        %v2351 = vsub.s32 0, %v2350
        %v2352 = vrot.slane %v2327, %v2351
        %v2354 = vadd.f32 %v2347, %v2352
        %v2355 = vld [vmem:[#allocation17] sm:$0xf]
        %v2356 = vld [vmem:[#allocation17 + $0x4] sm:$0xf]
        %v2357 = vld [vmem:[#allocation17 + $0x8] sm:$0xf]
        %v2358 = vld [vmem:[#allocation17 + $0xc] sm:$0xf]
        %v2359 = vld [vmem:[#allocation19] sm:$0x1]
        %v2360 = vpack.c.bf16 %v2354, %v2354
        %v2362 = vlaneseq
        %v2363 = vshrl.u32 %v2362, 7
        %v2364 = vsub.s32 0, %v2363
        %v2365 = vrot.slane %v2359, %v2364
        %v2371 = vunpack.c.l.b16 %v2355
        %v2372 = vunpack.c.l.b16 %v2356
        %v2373 = vunpack.c.l.b16 %v2357
        %v2374 = vunpack.c.l.b16 %v2358
        %v2375 = vpack.c.b16 %v2372, %v2371
        %v2376 = vpack.c.b16 %v2374, %v2373
        %v2380 = vsel %vm852, %v2360, 0
        %2382 = vmatprep.subr.bf16.mxu0 0
        %2383 = vmatpush1.bf16.msra.mxu0 %v2375
        %2384 = vmatprep.subr.bf16.mxu0 0
        %2385 = vmatpush1.bf16.msra.mxu0 %v2376
        %2386 = vmatprep.subr.bf16.mxu0 0
        %2387 = vmatpush1.bf16.msra.mxu0 0
        %2388 = vmatprep.subr.bf16.mxu0 0
        %2389 = vmatpush1.bf16.msra.mxu0 0
        %2390 = vmatprep.subr.bf16.mxu0 0
        %2391 = vmatpush1.bf16.msra.mxu0 0
        %2392 = vmatprep.subr.bf16.mxu0 0
        %2393 = vmatpush1.bf16.msra.mxu0 0
        %2394 = vmatprep.subr.bf16.mxu0 0
        %2395 = vmatpush1.bf16.msra.mxu0 0
        %2396 = vmatprep.subr.bf16.mxu0 0
        %2397 = vmatpush1.bf16.msra.mxu0 0
        %2398 = vmatprep.subr.bf16.mxu0 0
        %2399 = vmatpush1.bf16.msra.mxu0 0
        %2400 = vmatprep.subr.bf16.mxu0 0
        %2401 = vmatpush1.bf16.msra.mxu0 0
        %2402 = vmatprep.subr.bf16.mxu0 0
        %2403 = vmatpush1.bf16.msra.mxu0 0
        %2404 = vmatprep.subr.bf16.mxu0 0
        %2405 = vmatpush1.bf16.msra.mxu0 0
        %2406 = vmatprep.subr.bf16.mxu0 0
        %2407 = vmatpush1.bf16.msra.mxu0 0
        %2408 = vmatprep.subr.bf16.mxu0 0
        %2409 = vmatpush1.bf16.msra.mxu0 0
        %2410 = vmatprep.subr.bf16.mxu0 0
        %2411 = vmatpush1.bf16.msra.mxu0 0
        %2412 = vmatprep.subr.bf16.mxu0 0
        %2413 = vmatpush1.bf16.msra.mxu0 0
        %2414 = vmatprep.mubr.bf16.mxu0 0
        %2415 = vmatmul.mubr.bf16.gmra.mrb[0].mxu0 %v2380
        %v2416 = vpop.f32.mrb[0].mxu0
        %v2417 = vadd.f32 %v2365, %v2416
        %v2418 = vpop.f32.mrb[0].mxu0
        %v2419 = vpop.f32.mrb[0].mxu0
        %v2420 = vpop.f32.mrb[0].mxu0
        %2421 = vdwg.mxu0
        %v2422 = vadd.f32 %v743, %v2417
        %2423 = vst.msk [vmem:[%s733] sm:$0xff] %vm784, %v2422
        %s2424 = sand.u32 %s434, 1
        %s2425 = scalar_lea.sflag [#allocation4], %s2424
        %s2426 = sand.u32 %s434, 1
        %s2427 = smul.addr %s2426, 8
        %s2428 = scalar_lea.vmem [#allocation20], %s2427
        // Predicated region
        $region137: #{adapter_forward.1} parent=91 // pred_check
          %p2429 = pneg %p444
        $region138: #{adapter_forward.1} parent=91 // pred_check_branch
          %2431 = sbr.rel (%p2429) target = $region140
        $region139: #{adapter_forward.1} parent=91 // pred_region
          %s2433 = ssub.s32 128, 128
          %2434 = vsyncadd %s2425, %s2433
          %s2435 = smul.addr %s38, 128
          %s2436 = scalar_lea.hbm %s18, %s2435
          %s2438 = sshll.u32 %s2428, 4
          %s2439 = int_to_ptr.vmem [resolvable:$true] %s2438
          %2441 = dma.vmem_to_hbm [thread:$0]  %s2439, 128, %s2436, %s2425
        $region140: #{adapter_forward.1} parent=91 // pred_fallthru
          _
      $region92: #{adapter_forward.1} parent=5 // pred_fallthru
        _
      %p2442 = scmp.le.s32.totalorder 2, %s33
      // Predicated region
      $region141: #{adapter_forward.1} parent=5 // pred_check
        %p2443 = pneg %p2442
      $region142: #{adapter_forward.1} parent=5 // pred_check_branch
        %2445 = sbr.rel (%p2443) target = $region144
      $region143: #{adapter_forward.1} parent=5 // pred_region
        %s2446 = ssub.s32 %s33, 2
        // Predicated region
        $region145: #{adapter_forward.1} parent=143 // pred_check
          %p2447 = pneg %p450
        $region146: #{adapter_forward.1} parent=143 // pred_check_branch
          %2449 = sbr.rel (%p2447) target = $region148
        $region147: #{adapter_forward.1} parent=143 // pred_region
          %s2450 = sand.u32 %s435, 1
          %s2451 = scalar_lea.sflag [#allocation4], %s2450
          %s2452 = sand.u32 %s435, 1
          %s2453 = smul.addr %s2452, 8
          %s2454 = scalar_lea.vmem [#allocation20], %s2453
          %2455 = dma.done %s2451, 128
        $region148: #{adapter_forward.1} parent=143 // pred_fallthru
          _
      $region144: #{adapter_forward.1} parent=5 // pred_fallthru
        _
    $region6: #{adapter_forward.1} parent=1 // loop_footer
      %s37 = sadd.s32 1, %s33
    $region7: #{adapter_forward.1} parent=1 // loop_footer_branch
      %32 = sbr.rel target = $region3
    $region8: #{adapter_forward.1} parent=1 // loop_exit
      _
    %2456 = vsyncpa [#allocation3], 1
    %s2457 = scalar_lea.sflag [#allocation3], 1
    %2458 = vsyncpa %s2457, 1
    %2459 = vsyncpa [#allocation6], 1
    %2460 = vsyncpa [#allocation9], 1
    %2461 = vsyncpa [#allocation12], 1
    %2462 = vsyncpa [#allocation15], 1
    %2463 = vsyncpa [#allocation18], 1
    %2464 = vsyncpa [#allocation4], 1
    %s2465 = scalar_lea.sflag [#allocation4], 1
    %2466 = vsyncpa %s2465, 1

</llo_original>
